<compile_context>
chip_gen: v6e
topology: v6e:2x2x1
jax: 0.10.0
libtpu: 0.0.40
codegen_flags: <defaults>
</compile_context>

<pallas_src>
import jax
import jax.numpy as jnp
from jax import lax
from jax.experimental import pallas as pl
from jax.experimental.pallas import tpu as pltpu

LANE = 128


def _round_up(n, m):
    return (n + m - 1) // m * m


def ffn_kernel(xm_ref, xt_ref, xb_ref,
               w_in_ref, b_in_ref, w_dw_ref, b_dw_ref, w_out_ref, b_out_ref,
               o_ref, pad_ref):
    # Per grid step (= one batch element x one TH-row tile), channels padded to LANE:
    #   xm_ref:  (1, TH, W, Dp) bf16   -- this tile's rows
    #   xt_ref:  (1, 1,  W, Dp) bf16   -- row above the tile (clamped at image top)
    #   xb_ref:  (1, 1,  W, Dp) bf16   -- row below the tile (clamped at image bottom)
    #   w_in:   (Dp, Cp)   bf16        b_in:  (1, Cp) f32
    #   w_dw:   (9*Cp, Cp) bf16        b_dw:  (1, Cp) f32    (K = kh,kw,cin flattened)
    #   w_out:  (Cp, Dp)   bf16        b_out: (1, Dp) f32
    #   o_ref:  (1, TH, W, Dp) bf16
    #   pad_ref: VMEM (TH+2, W+2, Cp) bf16  -- zero-halo'd project_in output for the tile
    _, TH, W, Dp = xm_ref.shape
    Cp = w_in_ref.shape[1]
    t_idx = pl.program_id(1)

    # ---- project_in: 1x1 conv == one ((TH+2)*W, Dp) @ (Dp, Cp) MXU matmul ----
    xs = jnp.concatenate([xt_ref[0], xm_ref[0], xb_ref[0]], axis=0)       # (TH+2, W, Dp)
    t = jnp.dot(xs.reshape((TH + 2) * W, Dp), w_in_ref[...],
                preferred_element_type=jnp.float32) + b_in_ref[...]       # f32
    pad_ref[:, 1:W + 1, :] = t.reshape(TH + 2, W, Cp).astype(jnp.bfloat16)

    # ---- zero the 1-pixel column halo; zero row halos only at image edges ----
    pad_ref[:, 0:1, :] = jnp.zeros((TH + 2, 1, Cp), jnp.bfloat16)
    pad_ref[:, W + 1:W + 2, :] = jnp.zeros((TH + 2, 1, Cp), jnp.bfloat16)

    @pl.when(t_idx == 0)
    def _():
        pad_ref[0:1, :, :] = jnp.zeros((1, W + 2, Cp), jnp.bfloat16)

    @pl.when(t_idx == pl.num_programs(1) - 1)
    def _():
        pad_ref[TH + 1:TH + 2, :, :] = jnp.zeros((1, W + 2, Cp), jnp.bfloat16)

    # ---- dense 3x3 conv (padding=1): single im2col matmul, K = 9*Cp, f32 acc in MXU ----
    win = jnp.concatenate(
        [pad_ref[kh:kh + TH, kw:kw + W, :] for kh in range(3) for kw in range(3)],
        axis=-1).reshape(TH * W, 9 * Cp)                                  # bf16
    h = jnp.dot(win, w_dw_ref[...], preferred_element_type=jnp.float32) + b_dw_ref[...]

    # ---- ReLU (f32), then project_out 1x1 conv ----
    h = jnp.maximum(h, 0.0).astype(jnp.bfloat16)
    out = jnp.dot(h, w_out_ref[...], preferred_element_type=jnp.float32) + b_out_ref[...]
    o_ref[0] = out.reshape(TH, W, Dp).astype(o_ref.dtype)                 # lane-dense store


def _pick_row_tile(H, W, ch_p, budget_bytes=24 << 20):
    """Largest divisor of H whose per-step working set fits the VMEM budget."""
    # ~bytes of working set per image row: bf16 padded map, (W, 9*Cp) bf16 im2col slab,
    # and f32 matmul temporaries.
    per_row = (W + 2) * ch_p * 2 + W * 9 * ch_p * 2 + 2 * W * ch_p * 4
    th = max(1, min(H, budget_bytes // max(per_row, 1)))
    while H % th:   # TODO(synk): support non-divisor tiles with a masked last tile.
        th -= 1
    return th


def feedforward_pallas(x_nhwc, params, *, row_tile=None):
    """x_nhwc: (B, H, W, dim) float32. Returns (B, H, W, dim) float32."""
    B, H, W, dim = x_nhwc.shape
    w_in, b_in, w_dw, b_dw, w_out, b_out = params
    ch = w_in.shape[1]

    dim_p = _round_up(dim, LANE)
    ch_p = _round_up(ch, LANE)

    TH = row_tile if row_tile is not None else _pick_row_tile(H, W, ch_p)
    assert H % TH == 0, "row_tile must divide H"
    NT = H // TH

    # ---- wrapper-side prep: pad channels to lane multiples, bf16 matmul operands ----
    w_in_p = jnp.pad(w_in, ((0, dim_p - dim), (0, ch_p - ch))).astype(jnp.bfloat16)
    b_in_p = jnp.pad(b_in, ((0, 0), (0, ch_p - ch))).astype(jnp.float32)
    w_dw_p = jnp.pad(w_dw, ((0, 0), (0, 0), (0, ch_p - ch), (0, ch_p - ch)))
    w_dw_p = w_dw_p.astype(jnp.bfloat16).reshape(9 * ch_p, ch_p)      # (kh*kw*cin, cout)
    b_dw_p = jnp.pad(b_dw, ((0, 0), (0, ch_p - ch))).astype(jnp.float32)
    w_out_p = jnp.pad(w_out, ((0, ch_p - ch), (0, dim_p - dim))).astype(jnp.bfloat16)
    b_out_p = jnp.pad(b_out, ((0, 0), (0, dim_p - dim))).astype(jnp.float32)

    # Lane-dense activations: pad channel dim, cast to bf16.
    x_p = jnp.pad(x_nhwc, ((0, 0), (0, 0), (0, 0), (0, dim_p - dim))).astype(jnp.bfloat16)

    # ---- VMEM budget derived from actual block/scratch/temporary sizes ----
    blk_in = (TH + 2) * W * dim_p * 2
    blk_out = TH * W * dim_p * 2
    wts = (dim_p * ch_p + 9 * ch_p * ch_p + ch_p * dim_p) * 2 + (2 * ch_p + dim_p) * 4
    scratch = (TH + 2) * (W + 2) * ch_p * 2
    temps = TH * W * 9 * ch_p * 2 + (TH + 2) * W * ch_p * 4 + TH * W * (ch_p + dim_p) * 4
    vmem_bytes = 2 * (blk_in + blk_out + wts) + scratch + temps
    vmem_limit = int(min(max(2 * vmem_bytes, 32 << 20), 128 << 20))

    flops = 2 * B * H * W * (dim_p * ch_p + 9 * ch_p * ch_p + ch_p * dim_p)
    bytes_accessed = (x_p.size * 2 * (TH + 2) // TH + B * H * W * dim_p * 2
                      + (w_in_p.size + w_dw_p.size + w_out_p.size) * 2
                      + (b_in_p.size + b_dw_p.size + b_out_p.size) * 4)

    grid_spec = pltpu.PrefetchScalarGridSpec(
        num_scalar_prefetch=0,
        grid=(B, NT),
        in_specs=[
            # tile rows + clamped one-row top/bottom halo views of the same input
            pl.BlockSpec((1, TH, W, dim_p), lambda b, t: (b, t, 0, 0)),
            pl.BlockSpec((1, 1, W, dim_p),
                         lambda b, t: (b, jnp.maximum(t * TH - 1, 0), 0, 0)),
            pl.BlockSpec((1, 1, W, dim_p),
                         lambda b, t: (b, jnp.minimum((t + 1) * TH, H - 1), 0, 0)),
            pl.BlockSpec((dim_p, ch_p), lambda b, t: (0, 0)),
            pl.BlockSpec((1, ch_p), lambda b, t: (0, 0)),
            pl.BlockSpec((9 * ch_p, ch_p), lambda b, t: (0, 0)),
            pl.BlockSpec((1, ch_p), lambda b, t: (0, 0)),
            pl.BlockSpec((ch_p, dim_p), lambda b, t: (0, 0)),
            pl.BlockSpec((1, dim_p), lambda b, t: (0, 0)),
        ],
        out_specs=pl.BlockSpec((1, TH, W, dim_p), lambda b, t: (b, t, 0, 0)),
        scratch_shapes=[pltpu.VMEM((TH + 2, W + 2, ch_p), jnp.bfloat16)],
    )

    out_p = pl.pallas_call(
        ffn_kernel,
        out_shape=jax.ShapeDtypeStruct((B, H, W, dim_p), jnp.bfloat16),
        grid_spec=grid_spec,
        compiler_params=pltpu.CompilerParams(
            dimension_semantics=("parallel", "parallel"),
            vmem_limit_bytes=vmem_limit),
        cost_estimate=pl.CostEstimate(flops=flops, transcendentals=0,
                                      bytes_accessed=bytes_accessed),
    )(x_p, x_p, x_p, w_in_p, b_in_p, w_dw_p, b_dw_p, w_out_p, b_out_p)

    return out_p[..., :dim].astype(jnp.float32)


def feedforward_ref(x_nhwc, params):
    """Pure-JAX f32 reference (matches PyTorch forward, but in NHWC)."""
    w_in, b_in, w_dw, b_dw, w_out, b_out = params
    t = jnp.einsum('bhwc,cd->bhwd', x_nhwc, w_in) + b_in
    t = lax.conv_general_dilated(
        t, w_dw, window_strides=(1, 1), padding='SAME',
        dimension_numbers=('NHWC', 'HWIO', 'NHWC')) + b_dw
    t = jnp.maximum(t, 0.0)
    return jnp.einsum('bhwc,cd->bhwd', t, w_out) + b_out


def init_params(key, dim, ffn_expansion_factor):
    hidden = int(dim * ffn_expansion_factor)
    ch = hidden * 2
    ks = jax.random.split(key, 6)
    scale = 0.1
    w_in = scale * jax.random.normal(ks[0], (dim, ch), jnp.float32)
    b_in = scale * jax.random.normal(ks[1], (1, ch), jnp.float32)
    w_dw = scale * jax.random.normal(ks[2], (3, 3, ch, ch), jnp.float32)
    b_dw = scale * jax.random.normal(ks[3], (1, ch), jnp.float32)
    w_out = scale * jax.random.normal(ks[4], (ch, dim), jnp.float32)
    b_out = scale * jax.random.normal(ks[5], (1, dim), jnp.float32)
    return (w_in, b_in, w_dw, b_dw, w_out, b_out)


if __name__ == "__main__":
    key = jax.random.PRNGKey(0)
    k_x, k_p = jax.random.split(key)

    B, dim, H, W = 2, 4, 16, 16
    ffn_expansion_factor = 2.0

    # PyTorch-style NCHW input, converted to NHWC for the kernel.
    x_nchw = jax.random.normal(k_x, (B, dim, H, W), jnp.float32)
    x_nhwc = jnp.transpose(x_nchw, (0, 2, 3, 1))

    params = init_params(k_p, dim, ffn_expansion_factor)

    # row_tile=8 -> 2 row tiles per image, so the halo'd tiling path is exercised.
    out_nhwc = feedforward_pallas(x_nhwc, params, row_tile=8)
    out_nhwc = jax.block_until_ready(out_nhwc)

    ref_nhwc = feedforward_ref(x_nhwc, params)
    import numpy as np
    # bf16 matmul operands / bf16 scratch & output (f32 accumulation) -> loose tolerance.
    np.testing.assert_allclose(np.asarray(out_nhwc), np.asarray(ref_nhwc),
                               rtol=5e-2, atol=5e-2)

    # Back to NCHW if the caller wants PyTorch layout:
    _ = jnp.transpose(out_nhwc, (0, 3, 1, 2))

    print("KERNEL_OK")
</pallas_src>

<mosaic_0001>
module attributes {stable_mosaic.version = 11 : i64} {
  func.func @ffn_kernel(%arg0: i32, %arg1: i32, %arg2: memref<1x8x16x128xbf16, #tpu.memory_space<vmem>>, %arg3: memref<1x1x16x128xbf16, #tpu.memory_space<vmem>>, %arg4: memref<1x1x16x128xbf16, #tpu.memory_space<vmem>>, %arg5: memref<128x128xbf16, #tpu.memory_space<vmem>>, %arg6: memref<1x128xf32, #tpu.memory_space<vmem>>, %arg7: memref<1152x128xbf16, #tpu.memory_space<vmem>>, %arg8: memref<1x128xf32, #tpu.memory_space<vmem>>, %arg9: memref<128x128xbf16, #tpu.memory_space<vmem>>, %arg10: memref<1x128xf32, #tpu.memory_space<vmem>>, %arg11: memref<1x8x16x128xbf16, #tpu.memory_space<vmem>>, %arg12: memref<10x18x128xbf16, #tpu.memory_space<vmem>>) attributes {dimension_semantics = [#tpu.dimension_semantics<parallel>, #tpu.dimension_semantics<parallel>], iteration_bounds = array<i64: 2, 2>, scalar_prefetch = 0 : i64, scratch_operands = 1 : i64, tpu.core_type = #tpu.core_type<tc>, window_params = [{transform_indices = @transform_0, window_bounds = array<i64: 1, 8, 16, 128>}, {transform_indices = @transform_1, window_bounds = array<i64: 1, 1, 16, 128>}, {transform_indices = @transform_2, window_bounds = array<i64: 1, 1, 16, 128>}, {pipeline_mode = #tpu.pipeline_mode<synchronous>, transform_indices = @transform_3, window_bounds = array<i64: 128, 128>}, {pipeline_mode = #tpu.pipeline_mode<synchronous>, transform_indices = @transform_4, window_bounds = array<i64: 1, 128>}, {pipeline_mode = #tpu.pipeline_mode<synchronous>, transform_indices = @transform_5, window_bounds = array<i64: 1152, 128>}, {pipeline_mode = #tpu.pipeline_mode<synchronous>, transform_indices = @transform_6, window_bounds = array<i64: 1, 128>}, {pipeline_mode = #tpu.pipeline_mode<synchronous>, transform_indices = @transform_7, window_bounds = array<i64: 128, 128>}, {pipeline_mode = #tpu.pipeline_mode<synchronous>, transform_indices = @transform_8, window_bounds = array<i64: 1, 128>}, {transform_indices = @transform_9, window_bounds = array<i64: 1, 8, 16, 128>}]} {
    %c0 = arith.constant 0 : index
    %c0_0 = arith.constant 0 : index
    %c0_1 = arith.constant 0 : index
    %c0_2 = arith.constant 0 : index
    %0 = vector.load %arg3[%c0, %c0_0, %c0_1, %c0_2] : memref<1x1x16x128xbf16, #tpu.memory_space<vmem>>, vector<1x1x16x128xbf16>
    %1 = vector.shape_cast %0 : vector<1x1x16x128xbf16> to vector<1x16x128xbf16>
    %c0_3 = arith.constant 0 : index
    %c0_4 = arith.constant 0 : index
    %c0_5 = arith.constant 0 : index
    %c0_6 = arith.constant 0 : index
    %2 = vector.load %arg2[%c0_3, %c0_4, %c0_5, %c0_6] : memref<1x8x16x128xbf16, #tpu.memory_space<vmem>>, vector<1x8x16x128xbf16>
    %3 = vector.shape_cast %2 : vector<1x8x16x128xbf16> to vector<8x16x128xbf16>
    %c0_7 = arith.constant 0 : index
    %c0_8 = arith.constant 0 : index
    %c0_9 = arith.constant 0 : index
    %c0_10 = arith.constant 0 : index
    %4 = vector.load %arg4[%c0_7, %c0_8, %c0_9, %c0_10] : memref<1x1x16x128xbf16, #tpu.memory_space<vmem>>, vector<1x1x16x128xbf16>
    %5 = vector.shape_cast %4 : vector<1x1x16x128xbf16> to vector<1x16x128xbf16>
    %6 = tpu.concatenate %1, %3, %5 in 0 : vector<1x16x128xbf16>, vector<8x16x128xbf16>, vector<1x16x128xbf16> -> vector<10x16x128xbf16>
    %7 = vector.shape_cast %6 : vector<10x16x128xbf16> to vector<160x128xbf16>
    %c0_11 = arith.constant 0 : index
    %c0_12 = arith.constant 0 : index
    %8 = vector.load %arg5[%c0_11, %c0_12] : memref<128x128xbf16, #tpu.memory_space<vmem>>, vector<128x128xbf16>
    %cst = arith.constant dense<0.000000e+00> : vector<160x128xf32>
    %9 = tpu.matmul %7, %8, %cst {dimension_numbers = #tpu.dot_dimension_numbers<[1], [0], [0], [1], [0, 0, 1, 1], [], []>} : vector<160x128xbf16>, vector<128x128xbf16>, vector<160x128xf32> -> vector<160x128xf32>
    %c0_13 = arith.constant 0 : index
    %c0_14 = arith.constant 0 : index
    %10 = vector.load %arg6[%c0_13, %c0_14] : memref<1x128xf32, #tpu.memory_space<vmem>>, vector<1x128xf32>
    %11 = vector.broadcast %10 : vector<1x128xf32> to vector<160x128xf32>
    %12 = arith.addf %9, %11 : vector<160x128xf32>
    %13 = vector.shape_cast %12 : vector<160x128xf32> to vector<10x16x128xf32>
    %14 = arith.truncf %13 : vector<10x16x128xf32> to vector<10x16x128xbf16>
    %c0_15 = arith.constant 0 : index
    %c1 = arith.constant 1 : index
    %c0_16 = arith.constant 0 : index
    %15 = vector.load %arg12[%c0_15, %c1, %c0_16] : memref<10x18x128xbf16, #tpu.memory_space<vmem>>, vector<10x16x128xbf16>
    tpu.vector_store %arg12[%c0_15, %c1, %c0_16], %14 {strides = array<i32>} : memref<10x18x128xbf16, #tpu.memory_space<vmem>>, vector<10x16x128xbf16>,
    %cst_17 = arith.constant 0.000000e+00 : bf16
    %16 = vector.broadcast %cst_17 : bf16 to vector<10x1x128xbf16>
    %c0_18 = arith.constant 0 : index
    %c0_19 = arith.constant 0 : index
    %c0_20 = arith.constant 0 : index
    %17 = vector.load %arg12[%c0_18, %c0_19, %c0_20] : memref<10x18x128xbf16, #tpu.memory_space<vmem>>, vector<10x1x128xbf16>
    tpu.vector_store %arg12[%c0_18, %c0_19, %c0_20], %16 {strides = array<i32>} : memref<10x18x128xbf16, #tpu.memory_space<vmem>>, vector<10x1x128xbf16>,
    %cst_21 = arith.constant 0.000000e+00 : bf16
    %18 = vector.broadcast %cst_21 : bf16 to vector<10x1x128xbf16>
    %c0_22 = arith.constant 0 : index
    %c17 = arith.constant 17 : index
    %c0_23 = arith.constant 0 : index
    %19 = vector.load %arg12[%c0_22, %c17, %c0_23] : memref<10x18x128xbf16, #tpu.memory_space<vmem>>, vector<10x1x128xbf16>
    tpu.vector_store %arg12[%c0_22, %c17, %c0_23], %18 {strides = array<i32>} : memref<10x18x128xbf16, #tpu.memory_space<vmem>>, vector<10x1x128xbf16>,
    %c0_i32 = arith.constant 0 : i32
    %20 = arith.cmpi eq, %arg1, %c0_i32 : i32
    %21 = arith.extui %20 : i1 to i32
    %c0_i32_24 = arith.constant 0 : i32
    %22 = arith.cmpi ne, %21, %c0_i32_24 : i32
    scf.if %22 {
      %cst_67 = arith.constant 0.000000e+00 : bf16
      %55 = vector.broadcast %cst_67 : bf16 to vector<1x18x128xbf16>
      %c0_68 = arith.constant 0 : index
      %c0_69 = arith.constant 0 : index
      %c0_70 = arith.constant 0 : index
      %56 = vector.load %arg12[%c0_68, %c0_69, %c0_70] : memref<10x18x128xbf16, #tpu.memory_space<vmem>>, vector<1x18x128xbf16>
      tpu.vector_store %arg12[%c0_68, %c0_69, %c0_70], %55 {strides = array<i32>} : memref<10x18x128xbf16, #tpu.memory_space<vmem>>, vector<1x18x128xbf16>,
    } else {
    }
    %c1_i32 = arith.constant 1 : i32
    %23 = arith.cmpi eq, %arg1, %c1_i32 : i32
    %24 = arith.extui %23 : i1 to i32
    %c0_i32_25 = arith.constant 0 : i32
    %25 = arith.cmpi ne, %24, %c0_i32_25 : i32
    scf.if %25 {
      %cst_67 = arith.constant 0.000000e+00 : bf16
      %55 = vector.broadcast %cst_67 : bf16 to vector<1x18x128xbf16>
      %c9 = arith.constant 9 : index
      %c0_68 = arith.constant 0 : index
      %c0_69 = arith.constant 0 : index
      %56 = vector.load %arg12[%c9, %c0_68, %c0_69] : memref<10x18x128xbf16, #tpu.memory_space<vmem>>, vector<1x18x128xbf16>
      tpu.vector_store %arg12[%c9, %c0_68, %c0_69], %55 {strides = array<i32>} : memref<10x18x128xbf16, #tpu.memory_space<vmem>>, vector<1x18x128xbf16>,
    } else {
    }
    %c0_26 = arith.constant 0 : index
    %c0_27 = arith.constant 0 : index
    %c0_28 = arith.constant 0 : index
    %26 = vector.load %arg12[%c0_26, %c0_27, %c0_28] : memref<10x18x128xbf16, #tpu.memory_space<vmem>>, vector<8x16x128xbf16>
    %c0_29 = arith.constant 0 : index
    %c1_30 = arith.constant 1 : index
    %c0_31 = arith.constant 0 : index
    %27 = vector.load %arg12[%c0_29, %c1_30, %c0_31] : memref<10x18x128xbf16, #tpu.memory_space<vmem>>, vector<8x16x128xbf16>
    %c0_32 = arith.constant 0 : index
    %c2 = arith.constant 2 : index
    %c0_33 = arith.constant 0 : index
    %28 = vector.load %arg12[%c0_32, %c2, %c0_33] : memref<10x18x128xbf16, #tpu.memory_space<vmem>>, vector<8x16x128xbf16>
    %c1_34 = arith.constant 1 : index
    %c0_35 = arith.constant 0 : index
    %c0_36 = arith.constant 0 : index
    %29 = vector.load %arg12[%c1_34, %c0_35, %c0_36] : memref<10x18x128xbf16, #tpu.memory_space<vmem>>, vector<8x16x128xbf16>
    %c1_37 = arith.constant 1 : index
    %c1_38 = arith.constant 1 : index
    %c0_39 = arith.constant 0 : index
    %30 = vector.load %arg12[%c1_37, %c1_38, %c0_39] : memref<10x18x128xbf16, #tpu.memory_space<vmem>>, vector<8x16x128xbf16>
    %c1_40 = arith.constant 1 : index
    %c2_41 = arith.constant 2 : index
    %c0_42 = arith.constant 0 : index
    %31 = vector.load %arg12[%c1_40, %c2_41, %c0_42] : memref<10x18x128xbf16, #tpu.memory_space<vmem>>, vector<8x16x128xbf16>
    %c2_43 = arith.constant 2 : index
    %c0_44 = arith.constant 0 : index
    %c0_45 = arith.constant 0 : index
    %32 = vector.load %arg12[%c2_43, %c0_44, %c0_45] : memref<10x18x128xbf16, #tpu.memory_space<vmem>>, vector<8x16x128xbf16>
    %c2_46 = arith.constant 2 : index
    %c1_47 = arith.constant 1 : index
    %c0_48 = arith.constant 0 : index
    %33 = vector.load %arg12[%c2_46, %c1_47, %c0_48] : memref<10x18x128xbf16, #tpu.memory_space<vmem>>, vector<8x16x128xbf16>
    %c2_49 = arith.constant 2 : index
    %c2_50 = arith.constant 2 : index
    %c0_51 = arith.constant 0 : index
    %34 = vector.load %arg12[%c2_49, %c2_50, %c0_51] : memref<10x18x128xbf16, #tpu.memory_space<vmem>>, vector<8x16x128xbf16>
    %35 = tpu.concatenate %26, %27, %28, %29, %30, %31, %32, %33, %34 in 2 : vector<8x16x128xbf16>, vector<8x16x128xbf16>, vector<8x16x128xbf16>, vector<8x16x128xbf16>, vector<8x16x128xbf16>, vector<8x16x128xbf16>, vector<8x16x128xbf16>, vector<8x16x128xbf16>, vector<8x16x128xbf16> -> vector<8x16x1152xbf16>
    %36 = vector.shape_cast %35 : vector<8x16x1152xbf16> to vector<128x1152xbf16>
    %c0_52 = arith.constant 0 : index
    %c0_53 = arith.constant 0 : index
    %37 = vector.load %arg7[%c0_52, %c0_53] : memref<1152x128xbf16, #tpu.memory_space<vmem>>, vector<1152x128xbf16>
    %cst_54 = arith.constant dense<0.000000e+00> : vector<128x128xf32>
    %38 = tpu.matmul %36, %37, %cst_54 {dimension_numbers = #tpu.dot_dimension_numbers<[1], [0], [0], [1], [0, 0, 1, 1], [], []>} : vector<128x1152xbf16>, vector<1152x128xbf16>, vector<128x128xf32> -> vector<128x128xf32>
    %c0_55 = arith.constant 0 : index
    %c0_56 = arith.constant 0 : index
    %39 = vector.load %arg8[%c0_55, %c0_56] : memref<1x128xf32, #tpu.memory_space<vmem>>, vector<1x128xf32>
    %40 = vector.broadcast %39 : vector<1x128xf32> to vector<128x128xf32>
    %41 = arith.addf %38, %40 : vector<128x128xf32>
    %cst_57 = arith.constant 0.000000e+00 : f32
    %42 = vector.broadcast %cst_57 : f32 to vector<128x128xf32>
    %43 = arith.maximumf %41, %42 : vector<128x128xf32>
    %44 = arith.truncf %43 : vector<128x128xf32> to vector<128x128xbf16>
    %c0_58 = arith.constant 0 : index
    %c0_59 = arith.constant 0 : index
    %45 = vector.load %arg9[%c0_58, %c0_59] : memref<128x128xbf16, #tpu.memory_space<vmem>>, vector<128x128xbf16>
    %cst_60 = arith.constant dense<0.000000e+00> : vector<128x128xf32>
    %46 = tpu.matmul %44, %45, %cst_60 {dimension_numbers = #tpu.dot_dimension_numbers<[1], [0], [0], [1], [0, 0, 1, 1], [], []>} : vector<128x128xbf16>, vector<128x128xbf16>, vector<128x128xf32> -> vector<128x128xf32>
    %c0_61 = arith.constant 0 : index
    %c0_62 = arith.constant 0 : index
    %47 = vector.load %arg10[%c0_61, %c0_62] : memref<1x128xf32, #tpu.memory_space<vmem>>, vector<1x128xf32>
    %48 = vector.broadcast %47 : vector<1x128xf32> to vector<128x128xf32>
    %49 = arith.addf %46, %48 : vector<128x128xf32>
    %50 = vector.shape_cast %49 : vector<128x128xf32> to vector<8x16x128xf32>
    %51 = arith.truncf %50 : vector<8x16x128xf32> to vector<8x16x128xbf16>
    %c0_63 = arith.constant 0 : index
    %c0_64 = arith.constant 0 : index
    %c0_65 = arith.constant 0 : index
    %c0_66 = arith.constant 0 : index
    %52 = vector.load %arg11[%c0_63, %c0_64, %c0_65, %c0_66] : memref<1x8x16x128xbf16, #tpu.memory_space<vmem>>, vector<1x8x16x128xbf16>
    %53 = vector.shape_cast %52 : vector<1x8x16x128xbf16> to vector<8x16x128xbf16>
    %54 = vector.shape_cast %51 : vector<8x16x128xbf16> to vector<1x8x16x128xbf16>
    tpu.vector_store %arg11[%c0_63, %c0_64, %c0_65, %c0_66], %54 {strides = array<i32>} : memref<1x8x16x128xbf16, #tpu.memory_space<vmem>>, vector<1x8x16x128xbf16>,
    return
  }
  func.func @transform_0(%arg0: i32, %arg1: i32) -> (i32, i32, i32, i32) {
    %c0_i32 = arith.constant 0 : i32
    %c0_i32_0 = arith.constant 0 : i32
    %c0_i32_1 = arith.constant 0 : i32
    return %arg0, %arg1, %c0_i32, %c0_i32_0 : i32, i32, i32, i32
  }
  func.func @transform_1(%arg0: i32, %arg1: i32) -> (i32, i32, i32, i32) {
    %c8_i32 = arith.constant 8 : i32
    %0 = arith.muli %arg1, %c8_i32 : i32
    %c1_i32 = arith.constant 1 : i32
    %1 = arith.subi %0, %c1_i32 : i32
    %c0_i32 = arith.constant 0 : i32
    %2 = arith.maxsi %1, %c0_i32 : i32
    %c0_i32_0 = arith.constant 0 : i32
    %c0_i32_1 = arith.constant 0 : i32
    %c0_i32_2 = arith.constant 0 : i32
    return %arg0, %2, %c0_i32_0, %c0_i32_1 : i32, i32, i32, i32
  }
  func.func @transform_2(%arg0: i32, %arg1: i32) -> (i32, i32, i32, i32) {
    %c1_i32 = arith.constant 1 : i32
    %0 = arith.addi %arg1, %c1_i32 : i32
    %c8_i32 = arith.constant 8 : i32
    %1 = arith.muli %0, %c8_i32 : i32
    %c15_i32 = arith.constant 15 : i32
    %2 = arith.minsi %1, %c15_i32 : i32
    %c0_i32 = arith.constant 0 : i32
    %c0_i32_0 = arith.constant 0 : i32
    %c0_i32_1 = arith.constant 0 : i32
    return %arg0, %2, %c0_i32, %c0_i32_0 : i32, i32, i32, i32
  }
  func.func @transform_3(%arg0: i32, %arg1: i32) -> (i32, i32) {
    %c0_i32 = arith.constant 0 : i32
    %c0_i32_0 = arith.constant 0 : i32
    %c0_i32_1 = arith.constant 0 : i32
    return %c0_i32, %c0_i32_0 : i32, i32
  }
  func.func @transform_4(%arg0: i32, %arg1: i32) -> (i32, i32) {
    %c0_i32 = arith.constant 0 : i32
    %c0_i32_0 = arith.constant 0 : i32
    %c0_i32_1 = arith.constant 0 : i32
    return %c0_i32, %c0_i32_0 : i32, i32
  }
  func.func @transform_5(%arg0: i32, %arg1: i32) -> (i32, i32) {
    %c0_i32 = arith.constant 0 : i32
    %c0_i32_0 = arith.constant 0 : i32
    %c0_i32_1 = arith.constant 0 : i32
    return %c0_i32, %c0_i32_0 : i32, i32
  }
  func.func @transform_6(%arg0: i32, %arg1: i32) -> (i32, i32) {
    %c0_i32 = arith.constant 0 : i32
    %c0_i32_0 = arith.constant 0 : i32
    %c0_i32_1 = arith.constant 0 : i32
    return %c0_i32, %c0_i32_0 : i32, i32
  }
  func.func @transform_7(%arg0: i32, %arg1: i32) -> (i32, i32) {
    %c0_i32 = arith.constant 0 : i32
    %c0_i32_0 = arith.constant 0 : i32
    %c0_i32_1 = arith.constant 0 : i32
    return %c0_i32, %c0_i32_0 : i32, i32
  }
  func.func @transform_8(%arg0: i32, %arg1: i32) -> (i32, i32) {
    %c0_i32 = arith.constant 0 : i32
    %c0_i32_0 = arith.constant 0 : i32
    %c0_i32_1 = arith.constant 0 : i32
    return %c0_i32, %c0_i32_0 : i32, i32
  }
  func.func @transform_9(%arg0: i32, %arg1: i32) -> (i32, i32, i32, i32) {
    %c0_i32 = arith.constant 0 : i32
    %c0_i32_0 = arith.constant 0 : i32
    %c0_i32_1 = arith.constant 0 : i32
    return %arg0, %arg1, %c0_i32, %c0_i32_0 : i32, i32, i32, i32
  }
}

</mosaic_0001>

<llo_original>
// kernel: tpu_custom_call.1
$region0: #{tpu_custom_call.1}
  #allocation0 [shape = 'u32[]', space=smem, size = 0x4, offset = 0x4, fixed_abs, tag = 'smem constant byte address 0x4 - core index']
  #allocation1 [shape = 'u32[144,128]{1,0:T(1,128)}', space=vmem, size = 0x12000, scoped, tag = 'internal scratch']
  #allocation2 [shape = 'bf16[10,18,128]{2,1,0:T(8,128)(2,1)}', space=vmem, size = 0xf000, scoped, tag = 'scratch operand']
  %s0 = inlined_call_operand.hbm [shape: bf16[2,16,16,128], index: 0, kind: input, shape index: {}]
  %s1 = inlined_call_operand.hbm [shape: bf16[2,16,16,128], index: 1, kind: input, shape index: {}]
  %s2 = inlined_call_operand.hbm [shape: bf16[2,16,16,128], index: 2, kind: input, shape index: {}]
  %s3 = inlined_call_operand.hbm [shape: bf16[128,128], index: 3, kind: input, shape index: {}]
  %s4 = inlined_call_operand.vmem [shape: f32[1,128], index: 4, kind: input, shape index: {}]
  %s5 = inlined_call_operand.hbm [shape: bf16[1152,128], index: 5, kind: input, shape index: {}]
  %s6 = inlined_call_operand.vmem [shape: f32[1,128], index: 6, kind: input, shape index: {}]
  %s7 = inlined_call_operand.hbm [shape: bf16[128,128], index: 7, kind: input, shape index: {}]
  %s8 = inlined_call_operand.vmem [shape: f32[1,128], index: 8, kind: input, shape index: {}]
  %s9 = inlined_call_operand.hbm [shape: bf16[2,16,16,128], index: 9, kind: output, shape index: {}]
  %s10 = sld [smem:[#allocation0]]
  $region101: #{tpu_custom_call.1} parent=0
    _
  %s12 = ssub.s32 1, %s10
  %s13 = scalar_select 0, %s12, %s10
  $region1: #{tpu_custom_call.1} parent=0
    #allocation3 [shape = 'u8[65536]{0}', space=vmem, size = 0x10000, scoped, tag = 'input window, operand 0']
    #allocation4 [shape = 's32[2]{0}', space=sflag, size = 0x8, scoped, tag = 'scoped memory for tpu_custom_call.1']
    #allocation5 [shape = 's32[2]{0}', space=sflag, size = 0x8, scoped, tag = 'scoped memory for tpu_custom_call.1']
    #allocation6 [shape = 'u8[8192]{0}', space=vmem, size = 0x2000, scoped, tag = 'input window, operand 1']
    #allocation7 [shape = 's32[2]{0}', space=sflag, size = 0x8, scoped, tag = 'scoped memory for tpu_custom_call.1']
    #allocation8 [shape = 'u8[8192]{0}', space=vmem, size = 0x2000, scoped, tag = 'input window, operand 2']
    #allocation9 [shape = 'u8[32768]{0}', space=vmem, size = 0x8000, scoped, tag = 'input window, operand 3, single buffered']
    #allocation10 [shape = 's32[1]{0}', space=sflag, size = 0x4, scoped, tag = 'scoped memory for tpu_custom_call.1']
    #allocation11 [shape = 'u8[294912]{0}', space=vmem, size = 0x48000, scoped, tag = 'input window, operand 5, single buffered']
    #allocation12 [shape = 'u8[32768]{0}', space=vmem, size = 0x8000, scoped, tag = 'input window, operand 7, single buffered']
    #allocation13 [shape = 's32[1]{0}', space=sflag, size = 0x4, scoped, tag = 'scoped memory for tpu_custom_call.1']
    #allocation14 [shape = 'u8[65536]{0}', space=vmem, size = 0x10000, scoped, tag = 'output window, operand 0']
    %14 = vsyncpa [#allocation4], 0
    %s15 = scalar_lea.sflag [#allocation4], 1
    %16 = vsyncpa %s15, 0
    %17 = vsyncpa [#allocation7], 0
    %s18 = scalar_lea.sflag [#allocation7], 1
    %19 = vsyncpa %s18, 0
    %20 = vsyncpa [#allocation10], 0
    %21 = vsyncpa [#allocation13], 0
    %22 = vsyncpa [#allocation5], 0
    %s23 = scalar_lea.sflag [#allocation5], 1
    %24 = vsyncpa %s23, 0
    loop: start=0, step=1, limit=6
    $region2: #{tpu_custom_call.1} parent=1 // loop_pre_header
      _
    $region3: #{tpu_custom_call.1} parent=1 // loop_header
      %s26 = sphi 0, %s30
      %p27 = scmp.ge.s32.totalorder %s26, 6
      %s33 = sphi 0, %s45
      %s34 = sphi 0, %s41
      %s35 = sphi 0, %s33
      %s36 = sphi 0, %s34
      %s37 = sphi 0, %s35
      %s38 = sphi 0, %s36
      %s50 = sphi 0, %s52
      %s53 = sphi 0, %s50
      %s54 = sphi 0, %s53
      %s70 = sphi 0, %s54
      %s86 = sphi 0, %s88
      %s89 = sphi 0, %s86
      %s90 = sphi 0, %s89
      %s106 = sphi 0, %s90
      %s122 = sphi 0, %s124
      %s125 = sphi 0, %s122
      %s126 = sphi 0, %s125
      %s142 = sphi 0, %s126
      %s146 = sphi 0, %s146
      %s148 = sphi 0, %s146
      %s149 = sphi 0, %s148
      %s163 = sphi 0, %s149
      %s167 = sphi 0, %s167
      %s169 = sphi 0, %s167
      %s170 = sphi 0, %s169
      %s184 = sphi 0, %s170
      %s188 = sphi 0, %s188
      %s190 = sphi 0, %s188
      %s191 = sphi 0, %s190
      %s205 = sphi 0, %s191
      %s209 = sphi 0, %s209
      %s211 = sphi 0, %s209
      %s212 = sphi 0, %s211
      %s226 = sphi 0, %s212
      %s230 = sphi 0, %s230
      %s232 = sphi 0, %s230
      %s233 = sphi 0, %s232
      %s247 = sphi 0, %s233
      %s251 = sphi 0, %s251
      %s253 = sphi 0, %s251
      %s254 = sphi 0, %s253
      %s268 = sphi 0, %s254
      %s276 = sphi 0, %s278
      %s279 = sphi 0, %s276
      %s280 = sphi 0, %s279
      %s296 = sphi 0, %s280
    $region4: #{tpu_custom_call.1} parent=1 // loop_header_branch
      %29 = sbr.rel (%p27) target = $region8
    $region5: #{tpu_custom_call.1} parent=1 // loop_body
      %s31 = ssub.s32 %s26, 1
      %s32 = ssub.s32 %s26, 2
      %s39 = sadd.s32 1, %s34
      %p40 = scmp.ge.s32.totalorder %s39, 2
      %s41 = scalar_select %p40, 0, %s39
      %s42 = sadd.s32 1, %s33
      %s43 = scalar_select %p40, %s42, %s33
      %p44 = scmp.ge.s32.totalorder %s43, 2
      %s45 = scalar_select %p44, 0, %s43
      %s46 = ssub.s32 %s33, %s45
      %s47 = ssub.s32 %s34, %s41
      %s48 = sor.u32 %s46, %s47
      %p49 = scmp.eq.s32.totalorder %s48, 0
      %s51 = sadd.s32 %s50, 1
      %s52 = scalar_select %p49, %s50, %s51
      %p55 = pneg %p49
      %p56 = scmp.eq.s32.totalorder %s26, 3
      %p57 = por %p55, %p56
      %p58 = scmp.ne.s32.totalorder %s50, %s53
      %p59 = scmp.eq.s32.totalorder %s26, 0
      %p60 = por %p58, %p59
      %p61 = scmp.ne.s32.totalorder %s50, %s53
      %p62 = scmp.eq.s32.totalorder %s31, 3
      %p63 = por %p61, %p62
      %p64 = scmp.ne.s32.totalorder %s53, %s54
      %p65 = scmp.eq.s32.totalorder %s31, 0
      %p66 = por %p64, %p65
      %p67 = scmp.ne.s32.totalorder %s53, %s54
      %p68 = scmp.eq.s32.totalorder %s32, 3
      %p69 = por %p67, %p68
      %p71 = scmp.ne.s32.totalorder %s54, %s70
      %p72 = scmp.eq.s32.totalorder %s32, 0
      %p73 = por %p71, %p72
      %s74 = smul.u32 %s34, 8
      %s75 = ssub.s32 %s74, 1
      %p76 = scmp.gt.s32.totalorder %s75, 0
      %s77 = scalar_select %p76, %s75, 0
      %s78 = smul.u32 %s41, 8
      %s79 = ssub.s32 %s78, 1
      %p80 = scmp.gt.s32.totalorder %s79, 0
      %s81 = scalar_select %p80, %s79, 0
      %s82 = ssub.s32 %s33, %s45
      %s83 = ssub.s32 %s77, %s81
      %s84 = sor.u32 %s82, %s83
      %p85 = scmp.eq.s32.totalorder %s84, 0
      %s87 = sadd.s32 %s86, 1
      %s88 = scalar_select %p85, %s86, %s87
      %p91 = pneg %p85
      %p92 = scmp.eq.s32.totalorder %s26, 3
      %p93 = por %p91, %p92
      %p94 = scmp.ne.s32.totalorder %s86, %s89
      %p95 = scmp.eq.s32.totalorder %s26, 0
      %p96 = por %p94, %p95
      %p97 = scmp.ne.s32.totalorder %s86, %s89
      %p98 = scmp.eq.s32.totalorder %s31, 3
      %p99 = por %p97, %p98
      %p100 = scmp.ne.s32.totalorder %s89, %s90
      %p101 = scmp.eq.s32.totalorder %s31, 0
      %p102 = por %p100, %p101
      %p103 = scmp.ne.s32.totalorder %s89, %s90
      %p104 = scmp.eq.s32.totalorder %s32, 3
      %p105 = por %p103, %p104
      %p107 = scmp.ne.s32.totalorder %s90, %s106
      %p108 = scmp.eq.s32.totalorder %s32, 0
      %p109 = por %p107, %p108
      %s110 = sadd.s32 %s34, 1
      %s111 = smul.u32 %s110, 8
      %p112 = scmp.lt.s32.totalorder %s111, 15
      %s113 = scalar_select %p112, %s111, 15
      %s114 = sadd.s32 %s41, 1
      %s115 = smul.u32 %s114, 8
      %p116 = scmp.lt.s32.totalorder %s115, 15
      %s117 = scalar_select %p116, %s115, 15
      %s118 = ssub.s32 %s33, %s45
      %s119 = ssub.s32 %s113, %s117
      %s120 = sor.u32 %s118, %s119
      %p121 = scmp.eq.s32.totalorder %s120, 0
      %s123 = sadd.s32 %s122, 1
      %s124 = scalar_select %p121, %s122, %s123
      %p127 = pneg %p121
      %p128 = scmp.eq.s32.totalorder %s26, 3
      %p129 = por %p127, %p128
      %p130 = scmp.ne.s32.totalorder %s122, %s125
      %p131 = scmp.eq.s32.totalorder %s26, 0
      %p132 = por %p130, %p131
      %p133 = scmp.ne.s32.totalorder %s122, %s125
      %p134 = scmp.eq.s32.totalorder %s31, 3
      %p135 = por %p133, %p134
      %p136 = scmp.ne.s32.totalorder %s125, %s126
      %p137 = scmp.eq.s32.totalorder %s31, 0
      %p138 = por %p136, %p137
      %p139 = scmp.ne.s32.totalorder %s125, %s126
      %p140 = scmp.eq.s32.totalorder %s32, 3
      %p141 = por %p139, %p140
      %p143 = scmp.ne.s32.totalorder %s126, %s142
      %p144 = scmp.eq.s32.totalorder %s32, 0
      %p145 = por %p143, %p144
      %s147 = sadd.s32 %s146, 1
      %p150 = scmp.eq.s32.totalorder %s26, 3
      %p151 = scmp.ne.s32.totalorder %s146, %s148
      %p152 = scmp.eq.s32.totalorder %s26, 0
      %p153 = por %p151, %p152
      %p154 = scmp.ne.s32.totalorder %s146, %s148
      %p155 = scmp.eq.s32.totalorder %s31, 3
      %p156 = por %p154, %p155
      %p157 = scmp.ne.s32.totalorder %s148, %s149
      %p158 = scmp.eq.s32.totalorder %s31, 0
      %p159 = por %p157, %p158
      %p160 = scmp.ne.s32.totalorder %s148, %s149
      %p161 = scmp.eq.s32.totalorder %s32, 3
      %p162 = por %p160, %p161
      %p164 = scmp.ne.s32.totalorder %s149, %s163
      %p165 = scmp.eq.s32.totalorder %s32, 0
      %p166 = por %p164, %p165
      %s168 = sadd.s32 %s167, 1
      %p171 = scmp.eq.s32.totalorder %s26, 3
      %p172 = scmp.ne.s32.totalorder %s167, %s169
      %p173 = scmp.eq.s32.totalorder %s26, 0
      %p174 = por %p172, %p173
      %p175 = scmp.ne.s32.totalorder %s167, %s169
      %p176 = scmp.eq.s32.totalorder %s31, 3
      %p177 = por %p175, %p176
      %p178 = scmp.ne.s32.totalorder %s169, %s170
      %p179 = scmp.eq.s32.totalorder %s31, 0
      %p180 = por %p178, %p179
      %p181 = scmp.ne.s32.totalorder %s169, %s170
      %p182 = scmp.eq.s32.totalorder %s32, 3
      %p183 = por %p181, %p182
      %p185 = scmp.ne.s32.totalorder %s170, %s184
      %p186 = scmp.eq.s32.totalorder %s32, 0
      %p187 = por %p185, %p186
      %s189 = sadd.s32 %s188, 1
      %p192 = scmp.eq.s32.totalorder %s26, 3
      %p193 = scmp.ne.s32.totalorder %s188, %s190
      %p194 = scmp.eq.s32.totalorder %s26, 0
      %p195 = por %p193, %p194
      %p196 = scmp.ne.s32.totalorder %s188, %s190
      %p197 = scmp.eq.s32.totalorder %s31, 3
      %p198 = por %p196, %p197
      %p199 = scmp.ne.s32.totalorder %s190, %s191
      %p200 = scmp.eq.s32.totalorder %s31, 0
      %p201 = por %p199, %p200
      %p202 = scmp.ne.s32.totalorder %s190, %s191
      %p203 = scmp.eq.s32.totalorder %s32, 3
      %p204 = por %p202, %p203
      %p206 = scmp.ne.s32.totalorder %s191, %s205
      %p207 = scmp.eq.s32.totalorder %s32, 0
      %p208 = por %p206, %p207
      %s210 = sadd.s32 %s209, 1
      %p213 = scmp.eq.s32.totalorder %s26, 3
      %p214 = scmp.ne.s32.totalorder %s209, %s211
      %p215 = scmp.eq.s32.totalorder %s26, 0
      %p216 = por %p214, %p215
      %p217 = scmp.ne.s32.totalorder %s209, %s211
      %p218 = scmp.eq.s32.totalorder %s31, 3
      %p219 = por %p217, %p218
      %p220 = scmp.ne.s32.totalorder %s211, %s212
      %p221 = scmp.eq.s32.totalorder %s31, 0
      %p222 = por %p220, %p221
      %p223 = scmp.ne.s32.totalorder %s211, %s212
      %p224 = scmp.eq.s32.totalorder %s32, 3
      %p225 = por %p223, %p224
      %p227 = scmp.ne.s32.totalorder %s212, %s226
      %p228 = scmp.eq.s32.totalorder %s32, 0
      %p229 = por %p227, %p228
      %s231 = sadd.s32 %s230, 1
      %p234 = scmp.eq.s32.totalorder %s26, 3
      %p235 = scmp.ne.s32.totalorder %s230, %s232
      %p236 = scmp.eq.s32.totalorder %s26, 0
      %p237 = por %p235, %p236
      %p238 = scmp.ne.s32.totalorder %s230, %s232
      %p239 = scmp.eq.s32.totalorder %s31, 3
      %p240 = por %p238, %p239
      %p241 = scmp.ne.s32.totalorder %s232, %s233
      %p242 = scmp.eq.s32.totalorder %s31, 0
      %p243 = por %p241, %p242
      %p244 = scmp.ne.s32.totalorder %s232, %s233
      %p245 = scmp.eq.s32.totalorder %s32, 3
      %p246 = por %p244, %p245
      %p248 = scmp.ne.s32.totalorder %s233, %s247
      %p249 = scmp.eq.s32.totalorder %s32, 0
      %p250 = por %p248, %p249
      %s252 = sadd.s32 %s251, 1
      %p255 = scmp.eq.s32.totalorder %s26, 3
      %p256 = scmp.ne.s32.totalorder %s251, %s253
      %p257 = scmp.eq.s32.totalorder %s26, 0
      %p258 = por %p256, %p257
      %p259 = scmp.ne.s32.totalorder %s251, %s253
      %p260 = scmp.eq.s32.totalorder %s31, 3
      %p261 = por %p259, %p260
      %p262 = scmp.ne.s32.totalorder %s253, %s254
      %p263 = scmp.eq.s32.totalorder %s31, 0
      %p264 = por %p262, %p263
      %p265 = scmp.ne.s32.totalorder %s253, %s254
      %p266 = scmp.eq.s32.totalorder %s32, 3
      %p267 = por %p265, %p266
      %p269 = scmp.ne.s32.totalorder %s254, %s268
      %p270 = scmp.eq.s32.totalorder %s32, 0
      %p271 = por %p269, %p270
      %s272 = ssub.s32 %s33, %s45
      %s273 = ssub.s32 %s34, %s41
      %s274 = sor.u32 %s272, %s273
      %p275 = scmp.eq.s32.totalorder %s274, 0
      %s277 = sadd.s32 %s276, 1
      %s278 = scalar_select %p275, %s276, %s277
      %p281 = pneg %p275
      %p282 = scmp.eq.s32.totalorder %s26, 3
      %p283 = por %p281, %p282
      %p284 = scmp.ne.s32.totalorder %s276, %s279
      %p285 = scmp.eq.s32.totalorder %s26, 0
      %p286 = por %p284, %p285
      %p287 = scmp.ne.s32.totalorder %s276, %s279
      %p288 = scmp.eq.s32.totalorder %s31, 3
      %p289 = por %p287, %p288
      %p290 = scmp.ne.s32.totalorder %s279, %s280
      %p291 = scmp.eq.s32.totalorder %s31, 0
      %p292 = por %p290, %p291
      %p293 = scmp.ne.s32.totalorder %s279, %s280
      %p294 = scmp.eq.s32.totalorder %s32, 3
      %p295 = por %p293, %p294
      %p297 = scmp.ne.s32.totalorder %s280, %s296
      %p298 = scmp.eq.s32.totalorder %s32, 0
      %p299 = por %p297, %p298
      %p300 = scmp.le.s32.totalorder 1, %s26
      %p301 = scmp.lt.s32.totalorder %s26, 5
      %p302 = pnand %p300, %p301
      %p303 = pneg %p302
      // Predicated region
      $region9: #{tpu_custom_call.1} parent=5 // pred_check
        _
      $region10: #{tpu_custom_call.1} parent=5 // pred_check_branch
        %305 = sbr.rel (%p302) target = $region12
      $region11: #{tpu_custom_call.1} parent=5 // pred_region
        %s306 = ssub.s32 %s26, 1
        // Predicated region
        $region13: #{tpu_custom_call.1} parent=11 // pred_check
          %p307 = pneg %p159
        $region14: #{tpu_custom_call.1} parent=11 // pred_check_branch
          %309 = sbr.rel (%p307) target = $region16
        $region15: #{tpu_custom_call.1} parent=11 // pred_region
          %s311 = ssub.s32 1024, 1024
          %312 = vsyncadd [#allocation10], %s311
          %s313 = sshll.u32 [#allocation9], 4
          %s314 = int_to_ptr.vmem [resolvable:$true] %s313
          %319 = dma.hbm_to_vmem [thread:$0]  %s3, 1024, %s314, [#allocation10], 64, 64, 4
        $region16: #{tpu_custom_call.1} parent=11 // pred_fallthru
          _
        // Predicated region
        $region17: #{tpu_custom_call.1} parent=11 // pred_check
          %p320 = pneg %p180
        $region18: #{tpu_custom_call.1} parent=11 // pred_check_branch
          %322 = sbr.rel (%p320) target = $region20
        $region19: #{tpu_custom_call.1} parent=11 // pred_region
          _
        $region20: #{tpu_custom_call.1} parent=11 // pred_fallthru
          _
        // Predicated region
        $region21: #{tpu_custom_call.1} parent=11 // pred_check
          %p323 = pneg %p201
        $region22: #{tpu_custom_call.1} parent=11 // pred_check_branch
          %325 = sbr.rel (%p323) target = $region24
        $region23: #{tpu_custom_call.1} parent=11 // pred_region
          %s327 = ssub.s32 9216, 9216
          %328 = vsyncadd [#allocation10], %s327
          %s329 = sshll.u32 [#allocation11], 4
          %s330 = int_to_ptr.vmem [resolvable:$true] %s329
          %335 = dma.hbm_to_vmem [thread:$0]  %s5, 9216, %s330, [#allocation10], 64, 64, 4
        $region24: #{tpu_custom_call.1} parent=11 // pred_fallthru
          _
        // Predicated region
        $region25: #{tpu_custom_call.1} parent=11 // pred_check
          %p336 = pneg %p222
        $region26: #{tpu_custom_call.1} parent=11 // pred_check_branch
          %338 = sbr.rel (%p336) target = $region28
        $region27: #{tpu_custom_call.1} parent=11 // pred_region
          _
        $region28: #{tpu_custom_call.1} parent=11 // pred_fallthru
          _
        // Predicated region
        $region29: #{tpu_custom_call.1} parent=11 // pred_check
          %p339 = pneg %p243
        $region30: #{tpu_custom_call.1} parent=11 // pred_check_branch
          %341 = sbr.rel (%p339) target = $region32
        $region31: #{tpu_custom_call.1} parent=11 // pred_region
          %s343 = ssub.s32 1024, 1024
          %344 = vsyncadd [#allocation13], %s343
          %s345 = sshll.u32 [#allocation12], 4
          %s346 = int_to_ptr.vmem [resolvable:$true] %s345
          %351 = dma.hbm_to_vmem [thread:$0]  %s7, 1024, %s346, [#allocation13], 64, 64, 4
        $region32: #{tpu_custom_call.1} parent=11 // pred_fallthru
          _
        // Predicated region
        $region33: #{tpu_custom_call.1} parent=11 // pred_check
          %p352 = pneg %p264
        $region34: #{tpu_custom_call.1} parent=11 // pred_check_branch
          %354 = sbr.rel (%p352) target = $region36
        $region35: #{tpu_custom_call.1} parent=11 // pred_region
          _
        $region36: #{tpu_custom_call.1} parent=11 // pred_fallthru
          _
      $region12: #{tpu_custom_call.1} parent=5 // pred_fallthru
        _
      %p355 = scmp.lt.s32.totalorder %s26, 4
      // Predicated region
      $region37: #{tpu_custom_call.1} parent=5 // pred_check
        %p356 = pneg %p355
      $region38: #{tpu_custom_call.1} parent=5 // pred_check_branch
        %358 = sbr.rel (%p356) target = $region40
      $region39: #{tpu_custom_call.1} parent=5 // pred_region
        // Predicated region
        $region41: #{tpu_custom_call.1} parent=39 // pred_check
          %p359 = pneg %p60
        $region42: #{tpu_custom_call.1} parent=39 // pred_check_branch
          %361 = sbr.rel (%p359) target = $region44
        $region43: #{tpu_custom_call.1} parent=39 // pred_region
          %s362 = sand.u32 %s50, 1
          %s363 = scalar_lea.sflag [#allocation4], %s362
          %s364 = sand.u32 %s50, 1
          %s365 = smul.addr %s364, 64
          %s366 = scalar_lea.vmem [#allocation3], %s365
          %s367 = smul.u32 8, %s34
          %s369 = ssub.s32 1024, 1024
          %370 = vsyncadd %s363, %s369
          %s371 = smul.addr %s367, 2
          %s372 = smul.addr %s33, 32
          %s373 = sadd.s32 %s371, %s372
          %s374 = smul.addr %s373, 64
          %s375 = scalar_lea.hbm %s0, %s374
          %s376 = sshll.u32 %s366, 4
          %s377 = int_to_ptr.vmem [resolvable:$true] %s376
          %382 = dma.hbm_to_vmem [thread:$0]  %s375, 1024, %s377, %s363, 64, 64, 4
        $region44: #{tpu_custom_call.1} parent=39 // pred_fallthru
          _
        // Predicated region
        $region45: #{tpu_custom_call.1} parent=39 // pred_check
          %p383 = pneg %p96
        $region46: #{tpu_custom_call.1} parent=39 // pred_check_branch
          %385 = sbr.rel (%p383) target = $region48
        $region47: #{tpu_custom_call.1} parent=39 // pred_region
          %s386 = sand.u32 %s26, 1
          %s387 = scalar_lea.sflag [#allocation7], %s386
          %s388 = sand.u32 %s86, 1
          %s389 = smul.addr %s388, 8
          %s390 = scalar_lea.vmem [#allocation6], %s389
          %s391 = smul.u32 %s34, 8
          %s392 = ssub.s32 %s391, 1
          %p393 = scmp.gt.s32.totalorder %s392, 0
          %s394 = scalar_select %p393, %s392, 0
          %s396 = ssub.s32 128, 128
          %397 = vsyncadd %s387, %s396
          %s398 = smul.addr %s394, 2
          %s399 = smul.addr %s33, 32
          %s400 = sadd.s32 %s398, %s399
          %s401 = smul.addr %s400, 64
          %s402 = scalar_lea.hbm %s1, %s401
          %s403 = sshll.u32 %s390, 4
          %s404 = int_to_ptr.vmem [resolvable:$true] %s403
          %409 = dma.hbm_to_vmem [thread:$0]  %s402, 128, %s404, %s387, 64, 64, 4
        $region48: #{tpu_custom_call.1} parent=39 // pred_fallthru
          _
        // Predicated region
        $region49: #{tpu_custom_call.1} parent=39 // pred_check
          %p410 = pneg %p132
        $region50: #{tpu_custom_call.1} parent=39 // pred_check_branch
          %412 = sbr.rel (%p410) target = $region52
        $region51: #{tpu_custom_call.1} parent=39 // pred_region
          %s413 = sand.u32 %s26, 1
          %s414 = scalar_lea.sflag [#allocation7], %s413
          %s415 = sand.u32 %s122, 1
          %s416 = smul.addr %s415, 8
          %s417 = scalar_lea.vmem [#allocation8], %s416
          %s418 = sadd.s32 %s34, 1
          %s419 = smul.u32 %s418, 8
          %p420 = scmp.lt.s32.totalorder %s419, 15
          %s421 = scalar_select %p420, %s419, 15
          %s423 = ssub.s32 128, 128
          %424 = vsyncadd %s414, %s423
          %s425 = smul.addr %s421, 2
          %s426 = smul.addr %s33, 32
          %s427 = sadd.s32 %s425, %s426
          %s428 = smul.addr %s427, 64
          %s429 = scalar_lea.hbm %s2, %s428
          %s430 = sshll.u32 %s417, 4
          %s431 = int_to_ptr.vmem [resolvable:$true] %s430
          %436 = dma.hbm_to_vmem [thread:$0]  %s429, 128, %s431, %s414, 64, 64, 4
        $region52: #{tpu_custom_call.1} parent=39 // pred_fallthru
          _
      $region40: #{tpu_custom_call.1} parent=5 // pred_fallthru
        _
      %p437 = scmp.le.s32.totalorder 1, %s26
      %p438 = scmp.lt.s32.totalorder %s26, 5
      %p439 = pnand %p437, %p438
      %p440 = pneg %p439
      // Predicated region
      $region53: #{tpu_custom_call.1} parent=5 // pred_check
        _
      $region54: #{tpu_custom_call.1} parent=5 // pred_check_branch
        %442 = sbr.rel (%p439) target = $region56
      $region55: #{tpu_custom_call.1} parent=5 // pred_region
        %s443 = ssub.s32 %s26, 1
        %s444 = sand.u32 %s53, 1
        %s445 = scalar_lea.sflag [#allocation4], %s444
        %s446 = sand.u32 %s53, 1
        %s447 = smul.addr %s446, 64
        %s448 = scalar_lea.vmem [#allocation3], %s447
        // Predicated region
        $region57: #{tpu_custom_call.1} parent=55 // pred_check
          %p449 = pneg %p66
        $region58: #{tpu_custom_call.1} parent=55 // pred_check_branch
          %451 = sbr.rel (%p449) target = $region60
        $region59: #{tpu_custom_call.1} parent=55 // pred_region
          %452 = dma.done %s445, 1024
        $region60: #{tpu_custom_call.1} parent=55 // pred_fallthru
          _
        %s453 = sand.u32 %s31, 1
        %s454 = scalar_lea.sflag [#allocation7], %s453
        %s455 = sand.u32 %s89, 1
        %s456 = smul.addr %s455, 8
        %s457 = scalar_lea.vmem [#allocation6], %s456
        // Predicated region
        $region61: #{tpu_custom_call.1} parent=55 // pred_check
          %p458 = pneg %p102
        $region62: #{tpu_custom_call.1} parent=55 // pred_check_branch
          %460 = sbr.rel (%p458) target = $region64
        $region63: #{tpu_custom_call.1} parent=55 // pred_region
          %461 = dma.done %s454, 128
        $region64: #{tpu_custom_call.1} parent=55 // pred_fallthru
          _
        %s462 = sand.u32 %s31, 1
        %s463 = scalar_lea.sflag [#allocation7], %s462
        %s464 = sand.u32 %s125, 1
        %s465 = smul.addr %s464, 8
        %s466 = scalar_lea.vmem [#allocation8], %s465
        // Predicated region
        $region65: #{tpu_custom_call.1} parent=55 // pred_check
          %p467 = pneg %p138
        $region66: #{tpu_custom_call.1} parent=55 // pred_check_branch
          %469 = sbr.rel (%p467) target = $region68
        $region67: #{tpu_custom_call.1} parent=55 // pred_region
          %470 = dma.done %s463, 128
        $region68: #{tpu_custom_call.1} parent=55 // pred_fallthru
          _
        // Predicated region
        $region69: #{tpu_custom_call.1} parent=55 // pred_check
          %p471 = pneg %p159
        $region70: #{tpu_custom_call.1} parent=55 // pred_check_branch
          %473 = sbr.rel (%p471) target = $region72
        $region71: #{tpu_custom_call.1} parent=55 // pred_region
          %474 = dma.done [#allocation10], 1024
        $region72: #{tpu_custom_call.1} parent=55 // pred_fallthru
          _
        // Predicated region
        $region73: #{tpu_custom_call.1} parent=55 // pred_check
          %p475 = pneg %p201
        $region74: #{tpu_custom_call.1} parent=55 // pred_check_branch
          %477 = sbr.rel (%p475) target = $region76
        $region75: #{tpu_custom_call.1} parent=55 // pred_region
          %478 = dma.done [#allocation10], 9216
        $region76: #{tpu_custom_call.1} parent=55 // pred_fallthru
          _
        // Predicated region
        $region77: #{tpu_custom_call.1} parent=55 // pred_check
          %p479 = pneg %p243
        $region78: #{tpu_custom_call.1} parent=55 // pred_check_branch
          %481 = sbr.rel (%p479) target = $region80
        $region79: #{tpu_custom_call.1} parent=55 // pred_region
          %482 = dma.done [#allocation13], 1024
        $region80: #{tpu_custom_call.1} parent=55 // pred_fallthru
          _
        %s483 = sand.u32 %s53, 1
        %s484 = scalar_lea.sflag [#allocation4], %s483
        %s485 = sand.u32 %s53, 1
        %s486 = smul.addr %s485, 64
        %s487 = scalar_lea.vmem [#allocation3], %s486
        %p488 = pneg %p66
        %p489 = pneg %p63
        %s490 = sand.u32 %s31, 1
        %s491 = scalar_lea.sflag [#allocation7], %s490
        %s492 = sand.u32 %s89, 1
        %s493 = smul.addr %s492, 8
        %s494 = scalar_lea.vmem [#allocation6], %s493
        %p495 = pneg %p102
        %p496 = pneg %p99
        %s497 = sand.u32 %s31, 1
        %s498 = scalar_lea.sflag [#allocation7], %s497
        %s499 = sand.u32 %s125, 1
        %s500 = smul.addr %s499, 8
        %s501 = scalar_lea.vmem [#allocation8], %s500
        %p502 = pneg %p138
        %p503 = pneg %p135
        %p504 = pneg %p159
        %p505 = pneg %p156
        %p506 = pneg %p180
        %p507 = pneg %p177
        %p508 = pneg %p201
        %p509 = pneg %p198
        %p510 = pneg %p222
        %p511 = pneg %p219
        %p512 = pneg %p243
        %p513 = pneg %p240
        %p514 = pneg %p264
        %p515 = pneg %p261
        %p516 = pneg %p292
        %p517 = pneg %p289
        %s518 = sand.u32 %s279, 1
        %s519 = scalar_lea.sflag [#allocation5], %s518
        %s520 = sand.u32 %s279, 1
        %s521 = smul.addr %s520, 64
        %s522 = scalar_lea.vmem [#allocation14], %s521
        %s523 = smul.u32 8, %s36
        %s524 = smul.u32 %s36, 8
        %s525 = ssub.s32 %s524, 1
        %p526 = scmp.gt.s32.totalorder %s525, 0
        %s527 = scalar_select %p526, %s525, 0
        %s528 = sadd.s32 %s36, 1
        %s529 = smul.u32 %s528, 8
        %p530 = scmp.lt.s32.totalorder %s529, 15
        %s531 = scalar_select %p530, %s529, 15
        %s532 = smul.u32 8, %s36
        %v534 = vld [vmem:[%s457] sm:$0xf]
        %v535 = vld [vmem:[%s457 + $0x4] sm:$0xf]
        %v536 = vld [vmem:[%s448] sm:$0xf]
        %v537 = vld [vmem:[%s448 + $0x4] sm:$0xf]
        %v538 = vld [vmem:[%s448 + $0x8] sm:$0xf]
        %v539 = vld [vmem:[%s448 + $0xc] sm:$0xf]
        %v540 = vld [vmem:[%s448 + $0x10] sm:$0xf]
        %v541 = vld [vmem:[%s448 + $0x14] sm:$0xf]
        %v542 = vld [vmem:[%s448 + $0x18] sm:$0xf]
        %v543 = vld [vmem:[%s448 + $0x1c] sm:$0xf]
        %v544 = vld [vmem:[%s448 + $0x20] sm:$0xf]
        %v545 = vld [vmem:[%s448 + $0x24] sm:$0xf]
        %v546 = vld [vmem:[%s448 + $0x28] sm:$0xf]
        %v547 = vld [vmem:[%s448 + $0x2c] sm:$0xf]
        %v548 = vld [vmem:[%s448 + $0x30] sm:$0xf]
        %v549 = vld [vmem:[%s448 + $0x34] sm:$0xf]
        %v550 = vld [vmem:[%s448 + $0x38] sm:$0xf]
        %v551 = vld [vmem:[%s448 + $0x3c] sm:$0xf]
        %v552 = vld [vmem:[%s466] sm:$0xf]
        %v553 = vld [vmem:[%s466 + $0x4] sm:$0xf]
        %v554 = vld [vmem:[#allocation9] sm:$0xf]
        %v555 = vld [vmem:[#allocation9 + $0x4] sm:$0xf]
        %v556 = vld [vmem:[#allocation9 + $0x8] sm:$0xf]
        %v557 = vld [vmem:[#allocation9 + $0xc] sm:$0xf]
        %v558 = vld [vmem:[#allocation9 + $0x10] sm:$0xf]
        %v559 = vld [vmem:[#allocation9 + $0x14] sm:$0xf]
        %v560 = vld [vmem:[#allocation9 + $0x18] sm:$0xf]
        %v561 = vld [vmem:[#allocation9 + $0x1c] sm:$0xf]
        %v562 = vld [vmem:[#allocation9 + $0x20] sm:$0xf]
        %v563 = vld [vmem:[#allocation9 + $0x24] sm:$0xf]
        %v564 = vld [vmem:[#allocation9 + $0x28] sm:$0xf]
        %v565 = vld [vmem:[#allocation9 + $0x2c] sm:$0xf]
        %v566 = vld [vmem:[#allocation9 + $0x30] sm:$0xf]
        %v567 = vld [vmem:[#allocation9 + $0x34] sm:$0xf]
        %v568 = vld [vmem:[#allocation9 + $0x38] sm:$0xf]
        %v569 = vld [vmem:[#allocation9 + $0x3c] sm:$0xf]
        %v570 = vld [vmem:[%s4] sm:$0x1]
        %v572 = vlaneseq
        %v573 = vshrl.u32 %v572, 7
        %v574 = vsub.s32 0, %v573
        %v575 = vrot.slane %v570, %v574
        %v597 = vunpack.c.l.b16 %v534
        %v598 = vunpack.c.l.b16 %v535
        %v599 = vunpack.c.l.b16 %v536
        %v600 = vunpack.c.l.b16 %v537
        %v601 = vunpack.c.l.b16 %v538
        %v602 = vunpack.c.l.b16 %v539
        %v603 = vunpack.c.l.b16 %v540
        %v604 = vunpack.c.l.b16 %v541
        %v605 = vunpack.c.l.b16 %v542
        %v606 = vunpack.c.l.b16 %v543
        %v607 = vunpack.c.l.b16 %v544
        %v608 = vunpack.c.l.b16 %v545
        %v609 = vunpack.c.l.b16 %v546
        %v610 = vunpack.c.l.b16 %v547
        %v611 = vunpack.c.l.b16 %v548
        %v612 = vunpack.c.l.b16 %v549
        %v613 = vunpack.c.l.b16 %v550
        %v614 = vunpack.c.l.b16 %v551
        %v615 = vunpack.c.l.b16 %v552
        %v616 = vunpack.c.l.b16 %v553
        %v617 = vpack.c.b16 %v598, %v597
        %v618 = vpack.c.b16 %v600, %v599
        %v619 = vpack.c.b16 %v602, %v601
        %v620 = vpack.c.b16 %v604, %v603
        %v621 = vpack.c.b16 %v606, %v605
        %v622 = vpack.c.b16 %v608, %v607
        %v623 = vpack.c.b16 %v610, %v609
        %v624 = vpack.c.b16 %v612, %v611
        %v625 = vpack.c.b16 %v614, %v613
        %v626 = vpack.c.b16 %v616, %v615
        %v653 = vunpack.c.l.b16 %v554
        %v654 = vunpack.c.l.b16 %v555
        %v655 = vunpack.c.l.b16 %v556
        %v656 = vunpack.c.l.b16 %v557
        %v657 = vunpack.c.l.b16 %v558
        %v658 = vunpack.c.l.b16 %v559
        %v659 = vunpack.c.l.b16 %v560
        %v660 = vunpack.c.l.b16 %v561
        %v661 = vunpack.c.l.b16 %v562
        %v662 = vunpack.c.l.b16 %v563
        %v663 = vunpack.c.l.b16 %v564
        %v664 = vunpack.c.l.b16 %v565
        %v665 = vunpack.c.l.b16 %v566
        %v666 = vunpack.c.l.b16 %v567
        %v667 = vunpack.c.l.b16 %v568
        %v668 = vunpack.c.l.b16 %v569
        %v669 = vpack.c.b16 %v654, %v653
        %v670 = vpack.c.b16 %v656, %v655
        %v671 = vpack.c.b16 %v658, %v657
        %v672 = vpack.c.b16 %v660, %v659
        %v673 = vpack.c.b16 %v662, %v661
        %v674 = vpack.c.b16 %v664, %v663
        %v675 = vpack.c.b16 %v666, %v665
        %v676 = vpack.c.b16 %v668, %v667
        %685 = vmatprep.subr.bf16.mxu0 0
        %686 = vmatpush1.bf16.msra.mxu0 %v676
        %687 = vmatprep.subr.bf16.mxu0 0
        %688 = vmatpush1.bf16.msra.mxu0 %v675
        %689 = vmatprep.subr.bf16.mxu0 0
        %690 = vmatpush1.bf16.msra.mxu0 %v674
        %691 = vmatprep.subr.bf16.mxu0 0
        %692 = vmatpush1.bf16.msra.mxu0 %v673
        %693 = vmatprep.subr.bf16.mxu0 0
        %694 = vmatpush1.bf16.msra.mxu0 %v672
        %695 = vmatprep.subr.bf16.mxu0 0
        %696 = vmatpush1.bf16.msra.mxu0 %v671
        %697 = vmatprep.subr.bf16.mxu0 0
        %698 = vmatpush1.bf16.msra.mxu0 %v670
        %699 = vmatprep.subr.bf16.mxu0 0
        %700 = vmatpush1.bf16.msra.mxu0 %v669
        %701 = vmatprep.subr.bf16.mxu0 0
        %702 = vmatpush2.bf16.msra.mxu0 0
        %703 = vmatprep.subr.bf16.mxu0 0
        %704 = vmatpush2.bf16.msra.mxu0 0
        %705 = vmatprep.subr.bf16.mxu0 0
        %706 = vmatpush2.bf16.msra.mxu0 0
        %707 = vmatprep.subr.bf16.mxu0 0
        %708 = vmatpush2.bf16.msra.mxu0 0
        %709 = vmatprep.subr.bf16.mxu0 0
        %710 = vmatpush2.bf16.msra.mxu0 0
        %711 = vmatprep.subr.bf16.mxu0 0
        %712 = vmatpush2.bf16.msra.mxu0 0
        %713 = vmatprep.subr.bf16.mxu0 0
        %714 = vmatpush2.bf16.msra.mxu0 0
        %715 = vmatprep.subr.bf16.mxu0 0
        %716 = vmatpush2.bf16.msra.mxu0 0
        %717 = vmatprep.mubr.bf16.mxu0 0
        %718 = vmatmul.mubr.bf16.gmra.mxu0 %v617
        %v719 = vpop.f32.mrf.mxu0
        %v720 = vadd.f32 %v575, %v719
        %v721 = vpop.f32.mrf.mxu0
        %v722 = vpop.f32.mrf.mxu0
        %v723 = vadd.f32 %v575, %v722
        %v724 = vpop.f32.mrf.mxu0
        %725 = vmatprep.mubr.bf16.mxu0 0
        %726 = vmatmul.mubr.bf16.gmra.mxu0 %v618
        %v727 = vpop.f32.mrf.mxu0
        %v728 = vadd.f32 %v575, %v727
        %v729 = vpop.f32.mrf.mxu0
        %v730 = vpop.f32.mrf.mxu0
        %v731 = vadd.f32 %v575, %v730
        %v732 = vpop.f32.mrf.mxu0
        %733 = vmatprep.mubr.bf16.mxu0 0
        %734 = vmatmul.mubr.bf16.gmra.mxu0 %v619
        %v735 = vpop.f32.mrf.mxu0
        %v736 = vadd.f32 %v575, %v735
        %v737 = vpop.f32.mrf.mxu0
        %v738 = vpop.f32.mrf.mxu0
        %v739 = vadd.f32 %v575, %v738
        %v740 = vpop.f32.mrf.mxu0
        %741 = vmatprep.mubr.bf16.mxu0 0
        %742 = vmatmul.mubr.bf16.gmra.mxu0 %v620
        %v743 = vpop.f32.mrf.mxu0
        %v744 = vadd.f32 %v575, %v743
        %v745 = vpop.f32.mrf.mxu0
        %v746 = vpop.f32.mrf.mxu0
        %v747 = vadd.f32 %v575, %v746
        %v748 = vpop.f32.mrf.mxu0
        %749 = vmatprep.mubr.bf16.mxu0 0
        %750 = vmatmul.mubr.bf16.gmra.mxu0 %v621
        %v751 = vpop.f32.mrf.mxu0
        %v752 = vadd.f32 %v575, %v751
        %v753 = vpop.f32.mrf.mxu0
        %v754 = vpop.f32.mrf.mxu0
        %v755 = vadd.f32 %v575, %v754
        %v756 = vpop.f32.mrf.mxu0
        %757 = vmatprep.mubr.bf16.mxu0 0
        %758 = vmatmul.mubr.bf16.gmra.mxu0 %v622
        %v759 = vpop.f32.mrf.mxu0
        %v760 = vadd.f32 %v575, %v759
        %v761 = vpop.f32.mrf.mxu0
        %v762 = vpop.f32.mrf.mxu0
        %v763 = vadd.f32 %v575, %v762
        %v764 = vpop.f32.mrf.mxu0
        %765 = vmatprep.mubr.bf16.mxu0 0
        %766 = vmatmul.mubr.bf16.gmra.mxu0 %v623
        %v767 = vpop.f32.mrf.mxu0
        %v768 = vadd.f32 %v575, %v767
        %v769 = vpop.f32.mrf.mxu0
        %v770 = vpop.f32.mrf.mxu0
        %v771 = vadd.f32 %v575, %v770
        %v772 = vpop.f32.mrf.mxu0
        %773 = vmatprep.mubr.bf16.mxu0 0
        %774 = vmatmul.mubr.bf16.gmra.mxu0 %v624
        %v775 = vpop.f32.mrf.mxu0
        %v776 = vadd.f32 %v575, %v775
        %v777 = vpop.f32.mrf.mxu0
        %v778 = vpop.f32.mrf.mxu0
        %v779 = vadd.f32 %v575, %v778
        %v780 = vpop.f32.mrf.mxu0
        %781 = vmatprep.mubr.bf16.mxu0 0
        %782 = vmatmul.mubr.bf16.gmra.mxu0 %v625
        %v783 = vpop.f32.mrf.mxu0
        %v784 = vadd.f32 %v575, %v783
        %v785 = vpop.f32.mrf.mxu0
        %v786 = vpop.f32.mrf.mxu0
        %v787 = vadd.f32 %v575, %v786
        %v788 = vpop.f32.mrf.mxu0
        %789 = vmatprep.mubr.bf16.mxu0 0
        %790 = vmatmul.mubr.bf16.gmra.mxu0 %v626
        %v791 = vpop.f32.mrf.mxu0
        %v792 = vadd.f32 %v575, %v791
        %v793 = vpop.f32.mrf.mxu0
        %v794 = vpop.f32.mrf.mxu0
        %v795 = vadd.f32 %v575, %v794
        %v796 = vpop.f32.mrf.mxu0
        %797 = vdwg.mxu0
        %v798 = vpack.c.bf16 %v723, %v720
        %v799 = vpack.c.bf16 %v731, %v728
        %v800 = vpack.c.bf16 %v739, %v736
        %v801 = vpack.c.bf16 %v747, %v744
        %v802 = vpack.c.bf16 %v755, %v752
        %v803 = vpack.c.bf16 %v763, %v760
        %v804 = vpack.c.bf16 %v771, %v768
        %v805 = vpack.c.bf16 %v779, %v776
        %v806 = vpack.c.bf16 %v787, %v784
        %v807 = vpack.c.bf16 %v795, %v792
        %v818 = vunpack.c.l.b16 %v798
        %v819 = vunpack.c.h.b16 %v798
        %v820 = vunpack.c.l.b16 %v799
        %v821 = vunpack.c.h.b16 %v799
        %v822 = vunpack.c.l.b16 %v800
        %v823 = vunpack.c.h.b16 %v800
        %v824 = vunpack.c.l.b16 %v801
        %v825 = vunpack.c.h.b16 %v801
        %v826 = vunpack.c.l.b16 %v802
        %v827 = vunpack.c.h.b16 %v802
        %v828 = vunpack.c.l.b16 %v803
        %v829 = vunpack.c.h.b16 %v803
        %v830 = vunpack.c.l.b16 %v804
        %v831 = vunpack.c.h.b16 %v804
        %v832 = vunpack.c.l.b16 %v805
        %v833 = vunpack.c.h.b16 %v805
        %v834 = vunpack.c.l.b16 %v806
        %v835 = vunpack.c.h.b16 %v806
        %v836 = vunpack.c.l.b16 %v807
        %v837 = vunpack.c.h.b16 %v807
        %v838 = vpack.c.b16 %v818, %v818
        %v839 = vpack.c.b16 %v819, %v819
        %v840 = vpack.c.b16 %v820, %v820
        %v841 = vpack.c.b16 %v821, %v821
        %v842 = vpack.c.b16 %v822, %v822
        %v843 = vpack.c.b16 %v823, %v823
        %v844 = vpack.c.b16 %v824, %v824
        %v845 = vpack.c.b16 %v825, %v825
        %v846 = vpack.c.b16 %v826, %v826
        %v847 = vpack.c.b16 %v827, %v827
        %v848 = vpack.c.b16 %v828, %v828
        %v849 = vpack.c.b16 %v829, %v829
        %v850 = vpack.c.b16 %v830, %v830
        %v851 = vpack.c.b16 %v831, %v831
        %v852 = vpack.c.b16 %v832, %v832
        %v853 = vpack.c.b16 %v833, %v833
        %v854 = vpack.c.b16 %v834, %v834
        %v855 = vpack.c.b16 %v835, %v835
        %v856 = vpack.c.b16 %v836, %v836
        %v857 = vpack.c.b16 %v837, %v837
        %vm858 = vsmask.f32 256
        %vm859 = vsmask.f32 4368
        %vm860 = vmor %vm858, %vm859
        %v862 = vshrl.u32 %v838, 16
        %v864 = vrot.slane %v862, 7
        %v865 = vshll.u32 %v838, 16
        %v867 = vor.u32 %v864, %v865
        %v868 = vrot.slane %v864, 4
        %v870 = vshrl.u32 %v839, 16
        %v872 = vrot.slane %v870, 7
        %v873 = vshll.u32 %v839, 16
        %v875 = vor.u32 %v872, %v873
        %v876 = vsel %vm860, %v868, %v875
        %v877 = vrot.slane %v872, 4
        %v879 = vshrl.u32 %v840, 16
        %v881 = vrot.slane %v879, 7
        %v882 = vshll.u32 %v840, 16
        %v884 = vor.u32 %v881, %v882
        %v885 = vrot.slane %v881, 4
        %v887 = vshrl.u32 %v841, 16
        %v889 = vrot.slane %v887, 7
        %v890 = vshll.u32 %v841, 16
        %v892 = vor.u32 %v889, %v890
        %v893 = vsel %vm860, %v885, %v892
        %v894 = vrot.slane %v889, 4
        %v896 = vshrl.u32 %v842, 16
        %v898 = vrot.slane %v896, 7
        %v899 = vshll.u32 %v842, 16
        %v901 = vor.u32 %v898, %v899
        %v902 = vrot.slane %v898, 4
        %v904 = vshrl.u32 %v843, 16
        %v906 = vrot.slane %v904, 7
        %v907 = vshll.u32 %v843, 16
        %v909 = vor.u32 %v906, %v907
        %v910 = vsel %vm860, %v902, %v909
        %v911 = vrot.slane %v906, 4
        %v913 = vshrl.u32 %v844, 16
        %v915 = vrot.slane %v913, 7
        %v916 = vshll.u32 %v844, 16
        %v918 = vor.u32 %v915, %v916
        %v919 = vrot.slane %v915, 4
        %v921 = vshrl.u32 %v845, 16
        %v923 = vrot.slane %v921, 7
        %v924 = vshll.u32 %v845, 16
        %v926 = vor.u32 %v923, %v924
        %v927 = vsel %vm860, %v919, %v926
        %v928 = vrot.slane %v923, 4
        %v930 = vshrl.u32 %v846, 16
        %v932 = vrot.slane %v930, 7
        %v933 = vshll.u32 %v846, 16
        %v935 = vor.u32 %v932, %v933
        %v936 = vrot.slane %v932, 4
        %v938 = vshrl.u32 %v847, 16
        %v940 = vrot.slane %v938, 7
        %v941 = vshll.u32 %v847, 16
        %v943 = vor.u32 %v940, %v941
        %v944 = vsel %vm860, %v936, %v943
        %v945 = vrot.slane %v940, 4
        %v947 = vshrl.u32 %v848, 16
        %v949 = vrot.slane %v947, 7
        %v950 = vshll.u32 %v848, 16
        %v952 = vor.u32 %v949, %v950
        %v953 = vrot.slane %v949, 4
        %v955 = vshrl.u32 %v849, 16
        %v957 = vrot.slane %v955, 7
        %v958 = vshll.u32 %v849, 16
        %v960 = vor.u32 %v957, %v958
        %v961 = vsel %vm860, %v953, %v960
        %v962 = vrot.slane %v957, 4
        %v964 = vshrl.u32 %v850, 16
        %v966 = vrot.slane %v964, 7
        %v967 = vshll.u32 %v850, 16
        %v969 = vor.u32 %v966, %v967
        %v970 = vrot.slane %v966, 4
        %v972 = vshrl.u32 %v851, 16
        %v974 = vrot.slane %v972, 7
        %v975 = vshll.u32 %v851, 16
        %v977 = vor.u32 %v974, %v975
        %v978 = vsel %vm860, %v970, %v977
        %v979 = vrot.slane %v974, 4
        %v981 = vshrl.u32 %v852, 16
        %v983 = vrot.slane %v981, 7
        %v984 = vshll.u32 %v852, 16
        %v986 = vor.u32 %v983, %v984
        %v987 = vrot.slane %v983, 4
        %v989 = vshrl.u32 %v853, 16
        %v991 = vrot.slane %v989, 7
        %v992 = vshll.u32 %v853, 16
        %v994 = vor.u32 %v991, %v992
        %v995 = vsel %vm860, %v987, %v994
        %v996 = vrot.slane %v991, 4
        %v998 = vshrl.u32 %v854, 16
        %v1000 = vrot.slane %v998, 7
        %v1001 = vshll.u32 %v854, 16
        %v1003 = vor.u32 %v1000, %v1001
        %v1004 = vrot.slane %v1000, 4
        %v1006 = vshrl.u32 %v855, 16
        %v1008 = vrot.slane %v1006, 7
        %v1009 = vshll.u32 %v855, 16
        %v1011 = vor.u32 %v1008, %v1009
        %v1012 = vsel %vm860, %v1004, %v1011
        %v1013 = vrot.slane %v1008, 4
        %v1015 = vshrl.u32 %v856, 16
        %v1017 = vrot.slane %v1015, 7
        %v1018 = vshll.u32 %v856, 16
        %v1020 = vor.u32 %v1017, %v1018
        %v1021 = vrot.slane %v1017, 4
        %v1023 = vshrl.u32 %v857, 16
        %v1025 = vrot.slane %v1023, 7
        %v1026 = vshll.u32 %v857, 16
        %v1028 = vor.u32 %v1025, %v1026
        %v1029 = vsel %vm860, %v1021, %v1028
        %v1030 = vrot.slane %v1025, 4
        %vm1061 = vcmask 1043456
        %vm1062 = vsmask.f32 7938
        %vm1063 = vmand %vm1061, %vm1062
        %v1064 = vld [vmem:[#allocation2] sm:$0xf]
        %v1065 = vsel %vm1063, %v867, %v1064
        %1066 = vst [vmem:[#allocation2] sm:$0xf] %v1065
        %1067 = vst [vmem:[#allocation2 + $0x4] sm:$0xf] %v876
        %vm1068 = vcmask 1040384
        %vm1069 = vmand %vm1068, %vm858
        %v1070 = vld [vmem:[#allocation2 + $0x8] sm:$0x1]
        %v1071 = vsel %vm1069, %v877, %v1070
        %1072 = vst [vmem:[#allocation2 + $0x8] sm:$0x1] %v1071
        %v1073 = vld [vmem:[#allocation2 + $0xc] sm:$0xf]
        %v1074 = vsel %vm1063, %v884, %v1073
        %1075 = vst [vmem:[#allocation2 + $0xc] sm:$0xf] %v1074
        %1076 = vst [vmem:[#allocation2 + $0x10] sm:$0xf] %v893
        %v1077 = vld [vmem:[#allocation2 + $0x14] sm:$0x1]
        %v1078 = vsel %vm1069, %v894, %v1077
        %1079 = vst [vmem:[#allocation2 + $0x14] sm:$0x1] %v1078
        %v1080 = vld [vmem:[#allocation2 + $0x18] sm:$0xf]
        %v1081 = vsel %vm1063, %v901, %v1080
        %1082 = vst [vmem:[#allocation2 + $0x18] sm:$0xf] %v1081
        %1083 = vst [vmem:[#allocation2 + $0x1c] sm:$0xf] %v910
        %v1084 = vld [vmem:[#allocation2 + $0x20] sm:$0x1]
        %v1085 = vsel %vm1069, %v911, %v1084
        %1086 = vst [vmem:[#allocation2 + $0x20] sm:$0x1] %v1085
        %v1087 = vld [vmem:[#allocation2 + $0x24] sm:$0xf]
        %v1088 = vsel %vm1063, %v918, %v1087
        %1089 = vst [vmem:[#allocation2 + $0x24] sm:$0xf] %v1088
        %1090 = vst [vmem:[#allocation2 + $0x28] sm:$0xf] %v927
        %v1091 = vld [vmem:[#allocation2 + $0x2c] sm:$0x1]
        %v1092 = vsel %vm1069, %v928, %v1091
        %1093 = vst [vmem:[#allocation2 + $0x2c] sm:$0x1] %v1092
        %v1094 = vld [vmem:[#allocation2 + $0x30] sm:$0xf]
        %v1095 = vsel %vm1063, %v935, %v1094
        %1096 = vst [vmem:[#allocation2 + $0x30] sm:$0xf] %v1095
        %1097 = vst [vmem:[#allocation2 + $0x34] sm:$0xf] %v944
        %v1098 = vld [vmem:[#allocation2 + $0x38] sm:$0x1]
        %v1099 = vsel %vm1069, %v945, %v1098
        %1100 = vst [vmem:[#allocation2 + $0x38] sm:$0x1] %v1099
        %v1101 = vld [vmem:[#allocation2 + $0x3c] sm:$0xf]
        %v1102 = vsel %vm1063, %v952, %v1101
        %1103 = vst [vmem:[#allocation2 + $0x3c] sm:$0xf] %v1102
        %1104 = vst [vmem:[#allocation2 + $0x40] sm:$0xf] %v961
        %v1105 = vld [vmem:[#allocation2 + $0x44] sm:$0x1]
        %v1106 = vsel %vm1069, %v962, %v1105
        %1107 = vst [vmem:[#allocation2 + $0x44] sm:$0x1] %v1106
        %v1108 = vld [vmem:[#allocation2 + $0x48] sm:$0xf]
        %v1109 = vsel %vm1063, %v969, %v1108
        %1110 = vst [vmem:[#allocation2 + $0x48] sm:$0xf] %v1109
        %1111 = vst [vmem:[#allocation2 + $0x4c] sm:$0xf] %v978
        %v1112 = vld [vmem:[#allocation2 + $0x50] sm:$0x1]
        %v1113 = vsel %vm1069, %v979, %v1112
        %1114 = vst [vmem:[#allocation2 + $0x50] sm:$0x1] %v1113
        %v1115 = vld [vmem:[#allocation2 + $0x54] sm:$0xf]
        %v1116 = vsel %vm1063, %v986, %v1115
        %1117 = vst [vmem:[#allocation2 + $0x54] sm:$0xf] %v1116
        %1118 = vst [vmem:[#allocation2 + $0x58] sm:$0xf] %v995
        %v1119 = vld [vmem:[#allocation2 + $0x5c] sm:$0x1]
        %v1120 = vsel %vm1069, %v996, %v1119
        %1121 = vst [vmem:[#allocation2 + $0x5c] sm:$0x1] %v1120
        %v1122 = vld [vmem:[#allocation2 + $0x60] sm:$0xf]
        %v1123 = vsel %vm1063, %v1003, %v1122
        %1124 = vst [vmem:[#allocation2 + $0x60] sm:$0xf] %v1123
        %1125 = vst [vmem:[#allocation2 + $0x64] sm:$0xf] %v1012
        %v1126 = vld [vmem:[#allocation2 + $0x68] sm:$0x1]
        %v1127 = vsel %vm1069, %v1013, %v1126
        %1128 = vst [vmem:[#allocation2 + $0x68] sm:$0x1] %v1127
        %v1129 = vld [vmem:[#allocation2 + $0x6c] sm:$0xf]
        %v1130 = vsel %vm1063, %v1020, %v1129
        %1131 = vst [vmem:[#allocation2 + $0x6c] sm:$0xf] %v1130
        %1132 = vst [vmem:[#allocation2 + $0x70] sm:$0xf] %v1029
        %v1133 = vld [vmem:[#allocation2 + $0x74] sm:$0x1]
        %v1134 = vsel %vm1069, %v1030, %v1133
        %1135 = vst [vmem:[#allocation2 + $0x74] sm:$0x1] %v1134
        %v1136 = vld [vmem:[#allocation2] sm:$0x1]
        %v1137 = vsel %vm1069, 0, %v1136
        %1138 = vst [vmem:[#allocation2] sm:$0x1] %v1137
        %v1139 = vld [vmem:[#allocation2 + $0xc] sm:$0x1]
        %v1140 = vsel %vm1069, 0, %v1139
        %1141 = vst [vmem:[#allocation2 + $0xc] sm:$0x1] %v1140
        %v1142 = vld [vmem:[#allocation2 + $0x18] sm:$0x1]
        %v1143 = vsel %vm1069, 0, %v1142
        %1144 = vst [vmem:[#allocation2 + $0x18] sm:$0x1] %v1143
        %v1145 = vld [vmem:[#allocation2 + $0x24] sm:$0x1]
        %v1146 = vsel %vm1069, 0, %v1145
        %1147 = vst [vmem:[#allocation2 + $0x24] sm:$0x1] %v1146
        %v1148 = vld [vmem:[#allocation2 + $0x30] sm:$0x1]
        %v1149 = vsel %vm1069, 0, %v1148
        %1150 = vst [vmem:[#allocation2 + $0x30] sm:$0x1] %v1149
        %v1151 = vld [vmem:[#allocation2 + $0x3c] sm:$0x1]
        %v1152 = vsel %vm1069, 0, %v1151
        %1153 = vst [vmem:[#allocation2 + $0x3c] sm:$0x1] %v1152
        %v1154 = vld [vmem:[#allocation2 + $0x48] sm:$0x1]
        %v1155 = vsel %vm1069, 0, %v1154
        %1156 = vst [vmem:[#allocation2 + $0x48] sm:$0x1] %v1155
        %v1157 = vld [vmem:[#allocation2 + $0x54] sm:$0x1]
        %v1158 = vsel %vm1069, 0, %v1157
        %1159 = vst [vmem:[#allocation2 + $0x54] sm:$0x1] %v1158
        %v1160 = vld [vmem:[#allocation2 + $0x60] sm:$0x1]
        %v1161 = vsel %vm1069, 0, %v1160
        %1162 = vst [vmem:[#allocation2 + $0x60] sm:$0x1] %v1161
        %v1163 = vld [vmem:[#allocation2 + $0x6c] sm:$0x1]
        %v1164 = vsel %vm1069, 0, %v1163
        %1165 = vst [vmem:[#allocation2 + $0x6c] sm:$0x1] %v1164
        %vm1166 = vmand %vm1068, %vm1062
        %v1167 = vld [vmem:[#allocation2 + $0x8] sm:$0x1]
        %v1168 = vsel %vm1166, 0, %v1167
        %1169 = vst [vmem:[#allocation2 + $0x8] sm:$0x1] %v1168
        %v1170 = vld [vmem:[#allocation2 + $0x14] sm:$0x1]
        %v1171 = vsel %vm1166, 0, %v1170
        %1172 = vst [vmem:[#allocation2 + $0x14] sm:$0x1] %v1171
        %v1173 = vld [vmem:[#allocation2 + $0x20] sm:$0x1]
        %v1174 = vsel %vm1166, 0, %v1173
        %1175 = vst [vmem:[#allocation2 + $0x20] sm:$0x1] %v1174
        %v1176 = vld [vmem:[#allocation2 + $0x2c] sm:$0x1]
        %v1177 = vsel %vm1166, 0, %v1176
        %1178 = vst [vmem:[#allocation2 + $0x2c] sm:$0x1] %v1177
        %v1179 = vld [vmem:[#allocation2 + $0x38] sm:$0x1]
        %v1180 = vsel %vm1166, 0, %v1179
        %1181 = vst [vmem:[#allocation2 + $0x38] sm:$0x1] %v1180
        %v1182 = vld [vmem:[#allocation2 + $0x44] sm:$0x1]
        %v1183 = vsel %vm1166, 0, %v1182
        %1184 = vst [vmem:[#allocation2 + $0x44] sm:$0x1] %v1183
        %v1185 = vld [vmem:[#allocation2 + $0x50] sm:$0x1]
        %v1186 = vsel %vm1166, 0, %v1185
        %1187 = vst [vmem:[#allocation2 + $0x50] sm:$0x1] %v1186
        %v1188 = vld [vmem:[#allocation2 + $0x5c] sm:$0x1]
        %v1189 = vsel %vm1166, 0, %v1188
        %1190 = vst [vmem:[#allocation2 + $0x5c] sm:$0x1] %v1189
        %v1191 = vld [vmem:[#allocation2 + $0x68] sm:$0x1]
        %v1192 = vsel %vm1166, 0, %v1191
        %1193 = vst [vmem:[#allocation2 + $0x68] sm:$0x1] %v1192
        %v1194 = vld [vmem:[#allocation2 + $0x74] sm:$0x1]
        %v1195 = vsel %vm1166, 0, %v1194
        %1196 = vst [vmem:[#allocation2 + $0x74] sm:$0x1] %v1195
        %p1197 = scmp.eq.s32.totalorder %s36, 0
        // Predicated region
        $region81: #{tpu_custom_call.1} parent=55 // pred_check
          %p1198 = pneg %p1197
        $region82: #{tpu_custom_call.1} parent=55 // pred_check_branch
          %1200 = sbr.rel (%p1198) target = $region84
        $region83: #{tpu_custom_call.1} parent=55 // pred_region
          %1201 = vst [vmem:[#allocation2] sm:$0xf] 0
          %1202 = vst [vmem:[#allocation2 + $0x4] sm:$0xf] 0
          %1203 = vst [vmem:[#allocation2 + $0x8] sm:$0x1] 0
        $region84: #{tpu_custom_call.1} parent=55 // pred_fallthru
          _
        %p1204 = scmp.eq.s32.totalorder %s36, 1
        // Predicated region
        $region85: #{tpu_custom_call.1} parent=55 // pred_check
          %p1205 = pneg %p1204
        $region86: #{tpu_custom_call.1} parent=55 // pred_check_branch
          %1207 = sbr.rel (%p1205) target = $region88
        $region87: #{tpu_custom_call.1} parent=55 // pred_region
          %s1208 = scalar_lea.vmem [#allocation2], 108
          %1209 = vst [vmem:[%s1208] sm:$0xf] 0
          %1210 = vst [vmem:[%s1208 + $0x4] sm:$0xf] 0
          %1211 = vst [vmem:[%s1208 + $0x8] sm:$0x1] 0
        $region88: #{tpu_custom_call.1} parent=55 // pred_fallthru
          _
        %v1212 = vld [vmem:[#allocation2] sm:$0xf]
        %v1213 = vld [vmem:[#allocation2 + $0x4] sm:$0xf]
        %v1214 = vld [vmem:[#allocation2 + $0xc] sm:$0xf]
        %v1215 = vld [vmem:[#allocation2 + $0x10] sm:$0xf]
        %v1216 = vld [vmem:[#allocation2 + $0x18] sm:$0xf]
        %v1217 = vld [vmem:[#allocation2 + $0x1c] sm:$0xf]
        %v1218 = vld [vmem:[#allocation2 + $0x24] sm:$0xf]
        %v1219 = vld [vmem:[#allocation2 + $0x28] sm:$0xf]
        %v1220 = vld [vmem:[#allocation2 + $0x30] sm:$0xf]
        %v1221 = vld [vmem:[#allocation2 + $0x34] sm:$0xf]
        %v1222 = vld [vmem:[#allocation2 + $0x3c] sm:$0xf]
        %v1223 = vld [vmem:[#allocation2 + $0x40] sm:$0xf]
        %v1224 = vld [vmem:[#allocation2 + $0x48] sm:$0xf]
        %v1225 = vld [vmem:[#allocation2 + $0x4c] sm:$0xf]
        %v1226 = vld [vmem:[#allocation2 + $0x54] sm:$0xf]
        %v1227 = vld [vmem:[#allocation2 + $0x58] sm:$0xf]
        %v1228 = vld [vmem:[#allocation2 + $0x8] sm:$0x1]
        %v1229 = vld [vmem:[#allocation2 + $0x14] sm:$0x1]
        %v1230 = vld [vmem:[#allocation2 + $0x20] sm:$0x1]
        %v1231 = vld [vmem:[#allocation2 + $0x2c] sm:$0x1]
        %v1232 = vld [vmem:[#allocation2 + $0x38] sm:$0x1]
        %v1233 = vld [vmem:[#allocation2 + $0x44] sm:$0x1]
        %v1234 = vld [vmem:[#allocation2 + $0x50] sm:$0x1]
        %v1235 = vld [vmem:[#allocation2 + $0x5c] sm:$0x1]
        %v1236 = vld [vmem:[#allocation2] sm:$0xe]
        %v1237 = vld [vmem:[#allocation2 + $0xc] sm:$0xe]
        %v1238 = vld [vmem:[#allocation2 + $0x18] sm:$0xe]
        %v1239 = vld [vmem:[#allocation2 + $0x24] sm:$0xe]
        %v1240 = vld [vmem:[#allocation2 + $0x30] sm:$0xe]
        %v1241 = vld [vmem:[#allocation2 + $0x3c] sm:$0xe]
        %v1242 = vld [vmem:[#allocation2 + $0x48] sm:$0xe]
        %v1243 = vld [vmem:[#allocation2 + $0x54] sm:$0xe]
        %s1244 = scalar_lea.vmem [#allocation2], 12
        %v1245 = vld [vmem:[%s1244] sm:$0xf]
        %v1246 = vld [vmem:[%s1244 + $0x4] sm:$0xf]
        %v1247 = vld [vmem:[%s1244 + $0xc] sm:$0xf]
        %v1248 = vld [vmem:[%s1244 + $0x10] sm:$0xf]
        %v1249 = vld [vmem:[%s1244 + $0x18] sm:$0xf]
        %v1250 = vld [vmem:[%s1244 + $0x1c] sm:$0xf]
        %v1251 = vld [vmem:[%s1244 + $0x24] sm:$0xf]
        %v1252 = vld [vmem:[%s1244 + $0x28] sm:$0xf]
        %v1253 = vld [vmem:[%s1244 + $0x30] sm:$0xf]
        %v1254 = vld [vmem:[%s1244 + $0x34] sm:$0xf]
        %v1255 = vld [vmem:[%s1244 + $0x3c] sm:$0xf]
        %v1256 = vld [vmem:[%s1244 + $0x40] sm:$0xf]
        %v1257 = vld [vmem:[%s1244 + $0x48] sm:$0xf]
        %v1258 = vld [vmem:[%s1244 + $0x4c] sm:$0xf]
        %v1259 = vld [vmem:[%s1244 + $0x54] sm:$0xf]
        %v1260 = vld [vmem:[%s1244 + $0x58] sm:$0xf]
        %v1261 = vld [vmem:[%s1244 + $0x8] sm:$0x1]
        %v1262 = vld [vmem:[%s1244 + $0x14] sm:$0x1]
        %v1263 = vld [vmem:[%s1244 + $0x20] sm:$0x1]
        %v1264 = vld [vmem:[%s1244 + $0x2c] sm:$0x1]
        %v1265 = vld [vmem:[%s1244 + $0x38] sm:$0x1]
        %v1266 = vld [vmem:[%s1244 + $0x44] sm:$0x1]
        %v1267 = vld [vmem:[%s1244 + $0x50] sm:$0x1]
        %v1268 = vld [vmem:[%s1244 + $0x5c] sm:$0x1]
        %v1269 = vld [vmem:[%s1244] sm:$0xe]
        %v1270 = vld [vmem:[%s1244 + $0xc] sm:$0xe]
        %v1271 = vld [vmem:[%s1244 + $0x18] sm:$0xe]
        %v1272 = vld [vmem:[%s1244 + $0x24] sm:$0xe]
        %v1273 = vld [vmem:[%s1244 + $0x30] sm:$0xe]
        %v1274 = vld [vmem:[%s1244 + $0x3c] sm:$0xe]
        %v1275 = vld [vmem:[%s1244 + $0x48] sm:$0xe]
        %v1276 = vld [vmem:[%s1244 + $0x54] sm:$0xe]
        %s1277 = scalar_lea.vmem [#allocation2], 24
        %v1278 = vld [vmem:[%s1277] sm:$0xf]
        %v1279 = vld [vmem:[%s1277 + $0x4] sm:$0xf]
        %v1280 = vld [vmem:[%s1277 + $0xc] sm:$0xf]
        %v1281 = vld [vmem:[%s1277 + $0x10] sm:$0xf]
        %v1282 = vld [vmem:[%s1277 + $0x18] sm:$0xf]
        %v1283 = vld [vmem:[%s1277 + $0x1c] sm:$0xf]
        %v1284 = vld [vmem:[%s1277 + $0x24] sm:$0xf]
        %v1285 = vld [vmem:[%s1277 + $0x28] sm:$0xf]
        %v1286 = vld [vmem:[%s1277 + $0x30] sm:$0xf]
        %v1287 = vld [vmem:[%s1277 + $0x34] sm:$0xf]
        %v1288 = vld [vmem:[%s1277 + $0x3c] sm:$0xf]
        %v1289 = vld [vmem:[%s1277 + $0x40] sm:$0xf]
        %v1290 = vld [vmem:[%s1277 + $0x48] sm:$0xf]
        %v1291 = vld [vmem:[%s1277 + $0x4c] sm:$0xf]
        %v1292 = vld [vmem:[%s1277 + $0x54] sm:$0xf]
        %v1293 = vld [vmem:[%s1277 + $0x58] sm:$0xf]
        %v1294 = vld [vmem:[%s1277 + $0x8] sm:$0x1]
        %v1295 = vld [vmem:[%s1277 + $0x14] sm:$0x1]
        %v1296 = vld [vmem:[%s1277 + $0x20] sm:$0x1]
        %v1297 = vld [vmem:[%s1277 + $0x2c] sm:$0x1]
        %v1298 = vld [vmem:[%s1277 + $0x38] sm:$0x1]
        %v1299 = vld [vmem:[%s1277 + $0x44] sm:$0x1]
        %v1300 = vld [vmem:[%s1277 + $0x50] sm:$0x1]
        %v1301 = vld [vmem:[%s1277 + $0x5c] sm:$0x1]
        %v1302 = vld [vmem:[%s1277] sm:$0xe]
        %v1303 = vld [vmem:[%s1277 + $0xc] sm:$0xe]
        %v1304 = vld [vmem:[%s1277 + $0x18] sm:$0xe]
        %v1305 = vld [vmem:[%s1277 + $0x24] sm:$0xe]
        %v1306 = vld [vmem:[%s1277 + $0x30] sm:$0xe]
        %v1307 = vld [vmem:[%s1277 + $0x3c] sm:$0xe]
        %v1308 = vld [vmem:[%s1277 + $0x48] sm:$0xe]
        %v1309 = vld [vmem:[%s1277 + $0x54] sm:$0xe]
        %v1326 = vunpack.c.l.b16 %v1212
        %v1327 = vunpack.c.l.b16 %v1213
        %v1328 = vunpack.c.l.b16 %v1214
        %v1329 = vunpack.c.l.b16 %v1215
        %v1330 = vunpack.c.l.b16 %v1216
        %v1331 = vunpack.c.l.b16 %v1217
        %v1332 = vunpack.c.l.b16 %v1218
        %v1333 = vunpack.c.l.b16 %v1219
        %v1334 = vunpack.c.l.b16 %v1220
        %v1335 = vunpack.c.l.b16 %v1221
        %v1336 = vunpack.c.l.b16 %v1222
        %v1337 = vunpack.c.l.b16 %v1223
        %v1338 = vunpack.c.l.b16 %v1224
        %v1339 = vunpack.c.l.b16 %v1225
        %v1340 = vunpack.c.l.b16 %v1226
        %v1341 = vunpack.c.l.b16 %v1227
        %v1342 = vpack.c.b16 %v1327, %v1326
        %v1343 = vpack.c.b16 %v1329, %v1328
        %v1344 = vpack.c.b16 %v1331, %v1330
        %v1345 = vpack.c.b16 %v1333, %v1332
        %v1346 = vpack.c.b16 %v1335, %v1334
        %v1347 = vpack.c.b16 %v1337, %v1336
        %v1348 = vpack.c.b16 %v1339, %v1338
        %v1349 = vpack.c.b16 %v1341, %v1340
        %v1366 = vunpack.c.l.b16 %v1228
        %v1367 = vunpack.c.l.b16 %v1229
        %v1368 = vunpack.c.l.b16 %v1230
        %v1369 = vunpack.c.l.b16 %v1231
        %v1370 = vunpack.c.l.b16 %v1232
        %v1371 = vunpack.c.l.b16 %v1233
        %v1372 = vunpack.c.l.b16 %v1234
        %v1373 = vunpack.c.l.b16 %v1235
        %v1374 = vpack.c.b16 %v1366, %v1366
        %v1375 = vpack.c.b16 %v1367, %v1367
        %v1376 = vpack.c.b16 %v1368, %v1368
        %v1377 = vpack.c.b16 %v1369, %v1369
        %v1378 = vpack.c.b16 %v1370, %v1370
        %v1379 = vpack.c.b16 %v1371, %v1371
        %v1380 = vpack.c.b16 %v1372, %v1372
        %v1381 = vpack.c.b16 %v1373, %v1373
        %vm1382 = vsmask.f32 7424
        %v1384 = vshrl.u32 %v1342, 16
        %v1386 = vshll.u32 %v1342, 16
        %v1388 = vrot.slane %v1386, 1
        %v1389 = vor.u32 %v1384, %v1388
        %v1391 = vshll.u32 %v1374, 16
        %v1393 = vrot.slane %v1391, 1
        %v1394 = vsel %vm1382, %v1389, %v1393
        %v1396 = vshrl.u32 %v1343, 16
        %v1398 = vshll.u32 %v1343, 16
        %v1400 = vrot.slane %v1398, 1
        %v1401 = vor.u32 %v1396, %v1400
        %v1403 = vshll.u32 %v1375, 16
        %v1405 = vrot.slane %v1403, 1
        %v1406 = vsel %vm1382, %v1401, %v1405
        %v1408 = vshrl.u32 %v1344, 16
        %v1410 = vshll.u32 %v1344, 16
        %v1412 = vrot.slane %v1410, 1
        %v1413 = vor.u32 %v1408, %v1412
        %v1415 = vshll.u32 %v1376, 16
        %v1417 = vrot.slane %v1415, 1
        %v1418 = vsel %vm1382, %v1413, %v1417
        %v1420 = vshrl.u32 %v1345, 16
        %v1422 = vshll.u32 %v1345, 16
        %v1424 = vrot.slane %v1422, 1
        %v1425 = vor.u32 %v1420, %v1424
        %v1427 = vshll.u32 %v1377, 16
        %v1429 = vrot.slane %v1427, 1
        %v1430 = vsel %vm1382, %v1425, %v1429
        %v1432 = vshrl.u32 %v1346, 16
        %v1434 = vshll.u32 %v1346, 16
        %v1436 = vrot.slane %v1434, 1
        %v1437 = vor.u32 %v1432, %v1436
        %v1439 = vshll.u32 %v1378, 16
        %v1441 = vrot.slane %v1439, 1
        %v1442 = vsel %vm1382, %v1437, %v1441
        %v1444 = vshrl.u32 %v1347, 16
        %v1446 = vshll.u32 %v1347, 16
        %v1448 = vrot.slane %v1446, 1
        %v1449 = vor.u32 %v1444, %v1448
        %v1451 = vshll.u32 %v1379, 16
        %v1453 = vrot.slane %v1451, 1
        %v1454 = vsel %vm1382, %v1449, %v1453
        %v1456 = vshrl.u32 %v1348, 16
        %v1458 = vshll.u32 %v1348, 16
        %v1460 = vrot.slane %v1458, 1
        %v1461 = vor.u32 %v1456, %v1460
        %v1463 = vshll.u32 %v1380, 16
        %v1465 = vrot.slane %v1463, 1
        %v1466 = vsel %vm1382, %v1461, %v1465
        %v1468 = vshrl.u32 %v1349, 16
        %v1470 = vshll.u32 %v1349, 16
        %v1472 = vrot.slane %v1470, 1
        %v1473 = vor.u32 %v1468, %v1472
        %v1475 = vshll.u32 %v1381, 16
        %v1477 = vrot.slane %v1475, 1
        %v1478 = vsel %vm1382, %v1473, %v1477
        %v1495 = vunpack.c.l.b16 %v1236
        %v1496 = vunpack.c.l.b16 %v1237
        %v1497 = vunpack.c.l.b16 %v1238
        %v1498 = vunpack.c.l.b16 %v1239
        %v1499 = vunpack.c.l.b16 %v1240
        %v1500 = vunpack.c.l.b16 %v1241
        %v1501 = vunpack.c.l.b16 %v1242
        %v1502 = vunpack.c.l.b16 %v1243
        %v1503 = vpack.c.b16 %v1327, %v1495
        %v1504 = vpack.c.b16 %v1329, %v1496
        %v1505 = vpack.c.b16 %v1331, %v1497
        %v1506 = vpack.c.b16 %v1333, %v1498
        %v1507 = vpack.c.b16 %v1335, %v1499
        %v1508 = vpack.c.b16 %v1337, %v1500
        %v1509 = vpack.c.b16 %v1339, %v1501
        %v1510 = vpack.c.b16 %v1341, %v1502
        %vm1511 = vcmask 1046528
        %v1512 = vrot.slane %v1503, 1
        %v1513 = vrot.slane %v1374, 1
        %v1514 = vsel %vm1511, %v1512, %v1513
        %v1515 = vrot.slane %v1504, 1
        %v1516 = vrot.slane %v1375, 1
        %v1517 = vsel %vm1511, %v1515, %v1516
        %v1518 = vrot.slane %v1505, 1
        %v1519 = vrot.slane %v1376, 1
        %v1520 = vsel %vm1511, %v1518, %v1519
        %v1521 = vrot.slane %v1506, 1
        %v1522 = vrot.slane %v1377, 1
        %v1523 = vsel %vm1511, %v1521, %v1522
        %v1524 = vrot.slane %v1507, 1
        %v1525 = vrot.slane %v1378, 1
        %v1526 = vsel %vm1511, %v1524, %v1525
        %v1527 = vrot.slane %v1508, 1
        %v1528 = vrot.slane %v1379, 1
        %v1529 = vsel %vm1511, %v1527, %v1528
        %v1530 = vrot.slane %v1509, 1
        %v1531 = vrot.slane %v1380, 1
        %v1532 = vsel %vm1511, %v1530, %v1531
        %v1533 = vrot.slane %v1510, 1
        %v1534 = vrot.slane %v1381, 1
        %v1535 = vsel %vm1511, %v1533, %v1534
        %v1560 = vunpack.c.l.b16 %v1245
        %v1561 = vunpack.c.l.b16 %v1246
        %v1562 = vunpack.c.l.b16 %v1247
        %v1563 = vunpack.c.l.b16 %v1248
        %v1564 = vunpack.c.l.b16 %v1249
        %v1565 = vunpack.c.l.b16 %v1250
        %v1566 = vunpack.c.l.b16 %v1251
        %v1567 = vunpack.c.l.b16 %v1252
        %v1568 = vunpack.c.l.b16 %v1253
        %v1569 = vunpack.c.l.b16 %v1254
        %v1570 = vunpack.c.l.b16 %v1255
        %v1571 = vunpack.c.l.b16 %v1256
        %v1572 = vunpack.c.l.b16 %v1257
        %v1573 = vunpack.c.l.b16 %v1258
        %v1574 = vunpack.c.l.b16 %v1259
        %v1575 = vunpack.c.l.b16 %v1260
        %v1576 = vpack.c.b16 %v1561, %v1560
        %v1577 = vpack.c.b16 %v1563, %v1562
        %v1578 = vpack.c.b16 %v1565, %v1564
        %v1579 = vpack.c.b16 %v1567, %v1566
        %v1580 = vpack.c.b16 %v1569, %v1568
        %v1581 = vpack.c.b16 %v1571, %v1570
        %v1582 = vpack.c.b16 %v1573, %v1572
        %v1583 = vpack.c.b16 %v1575, %v1574
        %v1600 = vunpack.c.l.b16 %v1261
        %v1601 = vunpack.c.l.b16 %v1262
        %v1602 = vunpack.c.l.b16 %v1263
        %v1603 = vunpack.c.l.b16 %v1264
        %v1604 = vunpack.c.l.b16 %v1265
        %v1605 = vunpack.c.l.b16 %v1266
        %v1606 = vunpack.c.l.b16 %v1267
        %v1607 = vunpack.c.l.b16 %v1268
        %v1608 = vpack.c.b16 %v1600, %v1600
        %v1609 = vpack.c.b16 %v1601, %v1601
        %v1610 = vpack.c.b16 %v1602, %v1602
        %v1611 = vpack.c.b16 %v1603, %v1603
        %v1612 = vpack.c.b16 %v1604, %v1604
        %v1613 = vpack.c.b16 %v1605, %v1605
        %v1614 = vpack.c.b16 %v1606, %v1606
        %v1615 = vpack.c.b16 %v1607, %v1607
        %v1617 = vshrl.u32 %v1576, 16
        %v1619 = vshll.u32 %v1576, 16
        %v1621 = vrot.slane %v1619, 1
        %v1622 = vor.u32 %v1617, %v1621
        %v1624 = vshll.u32 %v1608, 16
        %v1626 = vrot.slane %v1624, 1
        %v1627 = vsel %vm1382, %v1622, %v1626
        %v1629 = vshrl.u32 %v1577, 16
        %v1631 = vshll.u32 %v1577, 16
        %v1633 = vrot.slane %v1631, 1
        %v1634 = vor.u32 %v1629, %v1633
        %v1636 = vshll.u32 %v1609, 16
        %v1638 = vrot.slane %v1636, 1
        %v1639 = vsel %vm1382, %v1634, %v1638
        %v1641 = vshrl.u32 %v1578, 16
        %v1643 = vshll.u32 %v1578, 16
        %v1645 = vrot.slane %v1643, 1
        %v1646 = vor.u32 %v1641, %v1645
        %v1648 = vshll.u32 %v1610, 16
        %v1650 = vrot.slane %v1648, 1
        %v1651 = vsel %vm1382, %v1646, %v1650
        %v1653 = vshrl.u32 %v1579, 16
        %v1655 = vshll.u32 %v1579, 16
        %v1657 = vrot.slane %v1655, 1
        %v1658 = vor.u32 %v1653, %v1657
        %v1660 = vshll.u32 %v1611, 16
        %v1662 = vrot.slane %v1660, 1
        %v1663 = vsel %vm1382, %v1658, %v1662
        %v1665 = vshrl.u32 %v1580, 16
        %v1667 = vshll.u32 %v1580, 16
        %v1669 = vrot.slane %v1667, 1
        %v1670 = vor.u32 %v1665, %v1669
        %v1672 = vshll.u32 %v1612, 16
        %v1674 = vrot.slane %v1672, 1
        %v1675 = vsel %vm1382, %v1670, %v1674
        %v1677 = vshrl.u32 %v1581, 16
        %v1679 = vshll.u32 %v1581, 16
        %v1681 = vrot.slane %v1679, 1
        %v1682 = vor.u32 %v1677, %v1681
        %v1684 = vshll.u32 %v1613, 16
        %v1686 = vrot.slane %v1684, 1
        %v1687 = vsel %vm1382, %v1682, %v1686
        %v1689 = vshrl.u32 %v1582, 16
        %v1691 = vshll.u32 %v1582, 16
        %v1693 = vrot.slane %v1691, 1
        %v1694 = vor.u32 %v1689, %v1693
        %v1696 = vshll.u32 %v1614, 16
        %v1698 = vrot.slane %v1696, 1
        %v1699 = vsel %vm1382, %v1694, %v1698
        %v1701 = vshrl.u32 %v1583, 16
        %v1703 = vshll.u32 %v1583, 16
        %v1705 = vrot.slane %v1703, 1
        %v1706 = vor.u32 %v1701, %v1705
        %v1708 = vshll.u32 %v1615, 16
        %v1710 = vrot.slane %v1708, 1
        %v1711 = vsel %vm1382, %v1706, %v1710
        %v1728 = vunpack.c.l.b16 %v1269
        %v1729 = vunpack.c.l.b16 %v1270
        %v1730 = vunpack.c.l.b16 %v1271
        %v1731 = vunpack.c.l.b16 %v1272
        %v1732 = vunpack.c.l.b16 %v1273
        %v1733 = vunpack.c.l.b16 %v1274
        %v1734 = vunpack.c.l.b16 %v1275
        %v1735 = vunpack.c.l.b16 %v1276
        %v1736 = vpack.c.b16 %v1561, %v1728
        %v1737 = vpack.c.b16 %v1563, %v1729
        %v1738 = vpack.c.b16 %v1565, %v1730
        %v1739 = vpack.c.b16 %v1567, %v1731
        %v1740 = vpack.c.b16 %v1569, %v1732
        %v1741 = vpack.c.b16 %v1571, %v1733
        %v1742 = vpack.c.b16 %v1573, %v1734
        %v1743 = vpack.c.b16 %v1575, %v1735
        %v1744 = vrot.slane %v1736, 1
        %v1745 = vrot.slane %v1608, 1
        %v1746 = vsel %vm1511, %v1744, %v1745
        %v1747 = vrot.slane %v1737, 1
        %v1748 = vrot.slane %v1609, 1
        %v1749 = vsel %vm1511, %v1747, %v1748
        %v1750 = vrot.slane %v1738, 1
        %v1751 = vrot.slane %v1610, 1
        %v1752 = vsel %vm1511, %v1750, %v1751
        %v1753 = vrot.slane %v1739, 1
        %v1754 = vrot.slane %v1611, 1
        %v1755 = vsel %vm1511, %v1753, %v1754
        %v1756 = vrot.slane %v1740, 1
        %v1757 = vrot.slane %v1612, 1
        %v1758 = vsel %vm1511, %v1756, %v1757
        %v1759 = vrot.slane %v1741, 1
        %v1760 = vrot.slane %v1613, 1
        %v1761 = vsel %vm1511, %v1759, %v1760
        %v1762 = vrot.slane %v1742, 1
        %v1763 = vrot.slane %v1614, 1
        %v1764 = vsel %vm1511, %v1762, %v1763
        %v1765 = vrot.slane %v1743, 1
        %v1766 = vrot.slane %v1615, 1
        %v1767 = vsel %vm1511, %v1765, %v1766
        %v1792 = vunpack.c.l.b16 %v1278
        %v1793 = vunpack.c.l.b16 %v1279
        %v1794 = vunpack.c.l.b16 %v1280
        %v1795 = vunpack.c.l.b16 %v1281
        %v1796 = vunpack.c.l.b16 %v1282
        %v1797 = vunpack.c.l.b16 %v1283
        %v1798 = vunpack.c.l.b16 %v1284
        %v1799 = vunpack.c.l.b16 %v1285
        %v1800 = vunpack.c.l.b16 %v1286
        %v1801 = vunpack.c.l.b16 %v1287
        %v1802 = vunpack.c.l.b16 %v1288
        %v1803 = vunpack.c.l.b16 %v1289
        %v1804 = vunpack.c.l.b16 %v1290
        %v1805 = vunpack.c.l.b16 %v1291
        %v1806 = vunpack.c.l.b16 %v1292
        %v1807 = vunpack.c.l.b16 %v1293
        %v1808 = vpack.c.b16 %v1793, %v1792
        %v1809 = vpack.c.b16 %v1795, %v1794
        %v1810 = vpack.c.b16 %v1797, %v1796
        %v1811 = vpack.c.b16 %v1799, %v1798
        %v1812 = vpack.c.b16 %v1801, %v1800
        %v1813 = vpack.c.b16 %v1803, %v1802
        %v1814 = vpack.c.b16 %v1805, %v1804
        %v1815 = vpack.c.b16 %v1807, %v1806
        %v1832 = vunpack.c.l.b16 %v1294
        %v1833 = vunpack.c.l.b16 %v1295
        %v1834 = vunpack.c.l.b16 %v1296
        %v1835 = vunpack.c.l.b16 %v1297
        %v1836 = vunpack.c.l.b16 %v1298
        %v1837 = vunpack.c.l.b16 %v1299
        %v1838 = vunpack.c.l.b16 %v1300
        %v1839 = vunpack.c.l.b16 %v1301
        %v1840 = vpack.c.b16 %v1832, %v1832
        %v1841 = vpack.c.b16 %v1833, %v1833
        %v1842 = vpack.c.b16 %v1834, %v1834
        %v1843 = vpack.c.b16 %v1835, %v1835
        %v1844 = vpack.c.b16 %v1836, %v1836
        %v1845 = vpack.c.b16 %v1837, %v1837
        %v1846 = vpack.c.b16 %v1838, %v1838
        %v1847 = vpack.c.b16 %v1839, %v1839
        %v1849 = vshrl.u32 %v1808, 16
        %v1851 = vshll.u32 %v1808, 16
        %v1853 = vrot.slane %v1851, 1
        %v1854 = vor.u32 %v1849, %v1853
        %v1856 = vshll.u32 %v1840, 16
        %v1858 = vrot.slane %v1856, 1
        %v1859 = vsel %vm1382, %v1854, %v1858
        %v1861 = vshrl.u32 %v1809, 16
        %v1863 = vshll.u32 %v1809, 16
        %v1865 = vrot.slane %v1863, 1
        %v1866 = vor.u32 %v1861, %v1865
        %v1868 = vshll.u32 %v1841, 16
        %v1870 = vrot.slane %v1868, 1
        %v1871 = vsel %vm1382, %v1866, %v1870
        %v1873 = vshrl.u32 %v1810, 16
        %v1875 = vshll.u32 %v1810, 16
        %v1877 = vrot.slane %v1875, 1
        %v1878 = vor.u32 %v1873, %v1877
        %v1880 = vshll.u32 %v1842, 16
        %v1882 = vrot.slane %v1880, 1
        %v1883 = vsel %vm1382, %v1878, %v1882
        %v1885 = vshrl.u32 %v1811, 16
        %v1887 = vshll.u32 %v1811, 16
        %v1889 = vrot.slane %v1887, 1
        %v1890 = vor.u32 %v1885, %v1889
        %v1892 = vshll.u32 %v1843, 16
        %v1894 = vrot.slane %v1892, 1
        %v1895 = vsel %vm1382, %v1890, %v1894
        %v1897 = vshrl.u32 %v1812, 16
        %v1899 = vshll.u32 %v1812, 16
        %v1901 = vrot.slane %v1899, 1
        %v1902 = vor.u32 %v1897, %v1901
        %v1904 = vshll.u32 %v1844, 16
        %v1906 = vrot.slane %v1904, 1
        %v1907 = vsel %vm1382, %v1902, %v1906
        %v1909 = vshrl.u32 %v1813, 16
        %v1911 = vshll.u32 %v1813, 16
        %v1913 = vrot.slane %v1911, 1
        %v1914 = vor.u32 %v1909, %v1913
        %v1916 = vshll.u32 %v1845, 16
        %v1918 = vrot.slane %v1916, 1
        %v1919 = vsel %vm1382, %v1914, %v1918
        %v1921 = vshrl.u32 %v1814, 16
        %v1923 = vshll.u32 %v1814, 16
        %v1925 = vrot.slane %v1923, 1
        %v1926 = vor.u32 %v1921, %v1925
        %v1928 = vshll.u32 %v1846, 16
        %v1930 = vrot.slane %v1928, 1
        %v1931 = vsel %vm1382, %v1926, %v1930
        %v1933 = vshrl.u32 %v1815, 16
        %v1935 = vshll.u32 %v1815, 16
        %v1937 = vrot.slane %v1935, 1
        %v1938 = vor.u32 %v1933, %v1937
        %v1940 = vshll.u32 %v1847, 16
        %v1942 = vrot.slane %v1940, 1
        %v1943 = vsel %vm1382, %v1938, %v1942
        %v1960 = vunpack.c.l.b16 %v1302
        %v1961 = vunpack.c.l.b16 %v1303
        %v1962 = vunpack.c.l.b16 %v1304
        %v1963 = vunpack.c.l.b16 %v1305
        %v1964 = vunpack.c.l.b16 %v1306
        %v1965 = vunpack.c.l.b16 %v1307
        %v1966 = vunpack.c.l.b16 %v1308
        %v1967 = vunpack.c.l.b16 %v1309
        %v1968 = vpack.c.b16 %v1793, %v1960
        %v1969 = vpack.c.b16 %v1795, %v1961
        %v1970 = vpack.c.b16 %v1797, %v1962
        %v1971 = vpack.c.b16 %v1799, %v1963
        %v1972 = vpack.c.b16 %v1801, %v1964
        %v1973 = vpack.c.b16 %v1803, %v1965
        %v1974 = vpack.c.b16 %v1805, %v1966
        %v1975 = vpack.c.b16 %v1807, %v1967
        %v1976 = vrot.slane %v1968, 1
        %v1977 = vrot.slane %v1840, 1
        %v1978 = vsel %vm1511, %v1976, %v1977
        %v1979 = vrot.slane %v1969, 1
        %v1980 = vrot.slane %v1841, 1
        %v1981 = vsel %vm1511, %v1979, %v1980
        %v1982 = vrot.slane %v1970, 1
        %v1983 = vrot.slane %v1842, 1
        %v1984 = vsel %vm1511, %v1982, %v1983
        %v1985 = vrot.slane %v1971, 1
        %v1986 = vrot.slane %v1843, 1
        %v1987 = vsel %vm1511, %v1985, %v1986
        %v1988 = vrot.slane %v1972, 1
        %v1989 = vrot.slane %v1844, 1
        %v1990 = vsel %vm1511, %v1988, %v1989
        %v1991 = vrot.slane %v1973, 1
        %v1992 = vrot.slane %v1845, 1
        %v1993 = vsel %vm1511, %v1991, %v1992
        %v1994 = vrot.slane %v1974, 1
        %v1995 = vrot.slane %v1846, 1
        %v1996 = vsel %vm1511, %v1994, %v1995
        %v1997 = vrot.slane %v1975, 1
        %v1998 = vrot.slane %v1847, 1
        %v1999 = vsel %vm1511, %v1997, %v1998
        %v2008 = vld [vmem:[#allocation11] sm:$0xf]
        %v2009 = vld [vmem:[#allocation11 + $0x4] sm:$0xf]
        %v2010 = vld [vmem:[#allocation11 + $0x8] sm:$0xf]
        %v2011 = vld [vmem:[#allocation11 + $0xc] sm:$0xf]
        %v2012 = vld [vmem:[#allocation11 + $0x10] sm:$0xf]
        %v2013 = vld [vmem:[#allocation11 + $0x14] sm:$0xf]
        %v2014 = vld [vmem:[#allocation11 + $0x18] sm:$0xf]
        %v2015 = vld [vmem:[#allocation11 + $0x1c] sm:$0xf]
        %v2016 = vld [vmem:[#allocation11 + $0x20] sm:$0xf]
        %v2017 = vld [vmem:[#allocation11 + $0x24] sm:$0xf]
        %v2018 = vld [vmem:[#allocation11 + $0x28] sm:$0xf]
        %v2019 = vld [vmem:[#allocation11 + $0x2c] sm:$0xf]
        %v2020 = vld [vmem:[#allocation11 + $0x30] sm:$0xf]
        %v2021 = vld [vmem:[#allocation11 + $0x34] sm:$0xf]
        %v2022 = vld [vmem:[#allocation11 + $0x38] sm:$0xf]
        %v2023 = vld [vmem:[#allocation11 + $0x3c] sm:$0xf]
        %v2024 = vld [vmem:[#allocation11 + $0x40] sm:$0xf]
        %v2025 = vld [vmem:[#allocation11 + $0x44] sm:$0xf]
        %v2026 = vld [vmem:[#allocation11 + $0x48] sm:$0xf]
        %v2027 = vld [vmem:[#allocation11 + $0x4c] sm:$0xf]
        %v2028 = vld [vmem:[#allocation11 + $0x50] sm:$0xf]
        %v2029 = vld [vmem:[#allocation11 + $0x54] sm:$0xf]
        %v2030 = vld [vmem:[#allocation11 + $0x58] sm:$0xf]
        %v2031 = vld [vmem:[#allocation11 + $0x5c] sm:$0xf]
        %v2032 = vld [vmem:[#allocation11 + $0x60] sm:$0xf]
        %v2033 = vld [vmem:[#allocation11 + $0x64] sm:$0xf]
        %v2034 = vld [vmem:[#allocation11 + $0x68] sm:$0xf]
        %v2035 = vld [vmem:[#allocation11 + $0x6c] sm:$0xf]
        %v2036 = vld [vmem:[#allocation11 + $0x70] sm:$0xf]
        %v2037 = vld [vmem:[#allocation11 + $0x74] sm:$0xf]
        %v2038 = vld [vmem:[#allocation11 + $0x78] sm:$0xf]
        %v2039 = vld [vmem:[#allocation11 + $0x7c] sm:$0xf]
        %v2040 = vld [vmem:[#allocation11 + $0x80] sm:$0xf]
        %v2041 = vld [vmem:[#allocation11 + $0x84] sm:$0xf]
        %v2042 = vld [vmem:[#allocation11 + $0x88] sm:$0xf]
        %v2043 = vld [vmem:[#allocation11 + $0x8c] sm:$0xf]
        %v2044 = vld [vmem:[#allocation11 + $0x90] sm:$0xf]
        %v2045 = vld [vmem:[#allocation11 + $0x94] sm:$0xf]
        %v2046 = vld [vmem:[#allocation11 + $0x98] sm:$0xf]
        %v2047 = vld [vmem:[#allocation11 + $0x9c] sm:$0xf]
        %v2048 = vld [vmem:[#allocation11 + $0xa0] sm:$0xf]
        %v2049 = vld [vmem:[#allocation11 + $0xa4] sm:$0xf]
        %v2050 = vld [vmem:[#allocation11 + $0xa8] sm:$0xf]
        %v2051 = vld [vmem:[#allocation11 + $0xac] sm:$0xf]
        %v2052 = vld [vmem:[#allocation11 + $0xb0] sm:$0xf]
        %v2053 = vld [vmem:[#allocation11 + $0xb4] sm:$0xf]
        %v2054 = vld [vmem:[#allocation11 + $0xb8] sm:$0xf]
        %v2055 = vld [vmem:[#allocation11 + $0xbc] sm:$0xf]
        %v2056 = vld [vmem:[#allocation11 + $0xc0] sm:$0xf]
        %v2057 = vld [vmem:[#allocation11 + $0xc4] sm:$0xf]
        %v2058 = vld [vmem:[#allocation11 + $0xc8] sm:$0xf]
        %v2059 = vld [vmem:[#allocation11 + $0xcc] sm:$0xf]
        %v2060 = vld [vmem:[#allocation11 + $0xd0] sm:$0xf]
        %v2061 = vld [vmem:[#allocation11 + $0xd4] sm:$0xf]
        %v2062 = vld [vmem:[#allocation11 + $0xd8] sm:$0xf]
        %v2063 = vld [vmem:[#allocation11 + $0xdc] sm:$0xf]
        %v2064 = vld [vmem:[#allocation11 + $0xe0] sm:$0xf]
        %v2065 = vld [vmem:[#allocation11 + $0xe4] sm:$0xf]
        %v2066 = vld [vmem:[#allocation11 + $0xe8] sm:$0xf]
        %v2067 = vld [vmem:[#allocation11 + $0xec] sm:$0xf]
        %v2068 = vld [vmem:[#allocation11 + $0xf0] sm:$0xf]
        %v2069 = vld [vmem:[#allocation11 + $0xf4] sm:$0xf]
        %v2070 = vld [vmem:[#allocation11 + $0xf8] sm:$0xf]
        %v2071 = vld [vmem:[#allocation11 + $0xfc] sm:$0xf]
        %v2072 = vld [vmem:[#allocation11 + $0x100] sm:$0xf]
        %v2073 = vld [vmem:[#allocation11 + $0x104] sm:$0xf]
        %v2074 = vld [vmem:[#allocation11 + $0x108] sm:$0xf]
        %v2075 = vld [vmem:[#allocation11 + $0x10c] sm:$0xf]
        %v2076 = vld [vmem:[#allocation11 + $0x110] sm:$0xf]
        %v2077 = vld [vmem:[#allocation11 + $0x114] sm:$0xf]
        %v2078 = vld [vmem:[#allocation11 + $0x118] sm:$0xf]
        %v2079 = vld [vmem:[#allocation11 + $0x11c] sm:$0xf]
        %v2080 = vld [vmem:[#allocation11 + $0x120] sm:$0xf]
        %v2081 = vld [vmem:[#allocation11 + $0x124] sm:$0xf]
        %v2082 = vld [vmem:[#allocation11 + $0x128] sm:$0xf]
        %v2083 = vld [vmem:[#allocation11 + $0x12c] sm:$0xf]
        %v2084 = vld [vmem:[#allocation11 + $0x130] sm:$0xf]
        %v2085 = vld [vmem:[#allocation11 + $0x134] sm:$0xf]
        %v2086 = vld [vmem:[#allocation11 + $0x138] sm:$0xf]
        %v2087 = vld [vmem:[#allocation11 + $0x13c] sm:$0xf]
        %v2088 = vld [vmem:[#allocation11 + $0x140] sm:$0xf]
        %v2089 = vld [vmem:[#allocation11 + $0x144] sm:$0xf]
        %v2090 = vld [vmem:[#allocation11 + $0x148] sm:$0xf]
        %v2091 = vld [vmem:[#allocation11 + $0x14c] sm:$0xf]
        %v2092 = vld [vmem:[#allocation11 + $0x150] sm:$0xf]
        %v2093 = vld [vmem:[#allocation11 + $0x154] sm:$0xf]
        %v2094 = vld [vmem:[#allocation11 + $0x158] sm:$0xf]
        %v2095 = vld [vmem:[#allocation11 + $0x15c] sm:$0xf]
        %v2096 = vld [vmem:[#allocation11 + $0x160] sm:$0xf]
        %v2097 = vld [vmem:[#allocation11 + $0x164] sm:$0xf]
        %v2098 = vld [vmem:[#allocation11 + $0x168] sm:$0xf]
        %v2099 = vld [vmem:[#allocation11 + $0x16c] sm:$0xf]
        %v2100 = vld [vmem:[#allocation11 + $0x170] sm:$0xf]
        %v2101 = vld [vmem:[#allocation11 + $0x174] sm:$0xf]
        %v2102 = vld [vmem:[#allocation11 + $0x178] sm:$0xf]
        %v2103 = vld [vmem:[#allocation11 + $0x17c] sm:$0xf]
        %v2104 = vld [vmem:[#allocation11 + $0x180] sm:$0xf]
        %v2105 = vld [vmem:[#allocation11 + $0x184] sm:$0xf]
        %v2106 = vld [vmem:[#allocation11 + $0x188] sm:$0xf]
        %v2107 = vld [vmem:[#allocation11 + $0x18c] sm:$0xf]
        %v2108 = vld [vmem:[#allocation11 + $0x190] sm:$0xf]
        %v2109 = vld [vmem:[#allocation11 + $0x194] sm:$0xf]
        %v2110 = vld [vmem:[#allocation11 + $0x198] sm:$0xf]
        %v2111 = vld [vmem:[#allocation11 + $0x19c] sm:$0xf]
        %v2112 = vld [vmem:[#allocation11 + $0x1a0] sm:$0xf]
        %v2113 = vld [vmem:[#allocation11 + $0x1a4] sm:$0xf]
        %v2114 = vld [vmem:[#allocation11 + $0x1a8] sm:$0xf]
        %v2115 = vld [vmem:[#allocation11 + $0x1ac] sm:$0xf]
        %v2116 = vld [vmem:[#allocation11 + $0x1b0] sm:$0xf]
        %v2117 = vld [vmem:[#allocation11 + $0x1b4] sm:$0xf]
        %v2118 = vld [vmem:[#allocation11 + $0x1b8] sm:$0xf]
        %v2119 = vld [vmem:[#allocation11 + $0x1bc] sm:$0xf]
        %v2120 = vld [vmem:[#allocation11 + $0x1c0] sm:$0xf]
        %v2121 = vld [vmem:[#allocation11 + $0x1c4] sm:$0xf]
        %v2122 = vld [vmem:[#allocation11 + $0x1c8] sm:$0xf]
        %v2123 = vld [vmem:[#allocation11 + $0x1cc] sm:$0xf]
        %v2124 = vld [vmem:[#allocation11 + $0x1d0] sm:$0xf]
        %v2125 = vld [vmem:[#allocation11 + $0x1d4] sm:$0xf]
        %v2126 = vld [vmem:[#allocation11 + $0x1d8] sm:$0xf]
        %v2127 = vld [vmem:[#allocation11 + $0x1dc] sm:$0xf]
        %v2128 = vld [vmem:[#allocation11 + $0x1e0] sm:$0xf]
        %v2129 = vld [vmem:[#allocation11 + $0x1e4] sm:$0xf]
        %v2130 = vld [vmem:[#allocation11 + $0x1e8] sm:$0xf]
        %v2131 = vld [vmem:[#allocation11 + $0x1ec] sm:$0xf]
        %v2132 = vld [vmem:[#allocation11 + $0x1f0] sm:$0xf]
        %v2133 = vld [vmem:[#allocation11 + $0x1f4] sm:$0xf]
        %v2134 = vld [vmem:[#allocation11 + $0x1f8] sm:$0xf]
        %v2135 = vld [vmem:[#allocation11 + $0x1fc] sm:$0xf]
        %v2136 = vld [vmem:[#allocation11 + $0x200] sm:$0xf]
        %v2137 = vld [vmem:[#allocation11 + $0x204] sm:$0xf]
        %v2138 = vld [vmem:[#allocation11 + $0x208] sm:$0xf]
        %v2139 = vld [vmem:[#allocation11 + $0x20c] sm:$0xf]
        %v2140 = vld [vmem:[#allocation11 + $0x210] sm:$0xf]
        %v2141 = vld [vmem:[#allocation11 + $0x214] sm:$0xf]
        %v2142 = vld [vmem:[#allocation11 + $0x218] sm:$0xf]
        %v2143 = vld [vmem:[#allocation11 + $0x21c] sm:$0xf]
        %v2144 = vld [vmem:[#allocation11 + $0x220] sm:$0xf]
        %v2145 = vld [vmem:[#allocation11 + $0x224] sm:$0xf]
        %v2146 = vld [vmem:[#allocation11 + $0x228] sm:$0xf]
        %v2147 = vld [vmem:[#allocation11 + $0x22c] sm:$0xf]
        %v2148 = vld [vmem:[#allocation11 + $0x230] sm:$0xf]
        %v2149 = vld [vmem:[#allocation11 + $0x234] sm:$0xf]
        %v2150 = vld [vmem:[#allocation11 + $0x238] sm:$0xf]
        %v2151 = vld [vmem:[#allocation11 + $0x23c] sm:$0xf]
        %v2152 = vld [vmem:[%s6] sm:$0x1]
        %v2154 = vlaneseq
        %v2155 = vshrl.u32 %v2154, 7
        %v2156 = vsub.s32 0, %v2155
        %v2157 = vrot.slane %v2152, %v2156
        %v2303 = vunpack.c.l.b16 %v2008
        %v2304 = vunpack.c.l.b16 %v2009
        %v2305 = vunpack.c.l.b16 %v2010
        %v2306 = vunpack.c.l.b16 %v2011
        %v2307 = vunpack.c.l.b16 %v2012
        %v2308 = vunpack.c.l.b16 %v2013
        %v2309 = vunpack.c.l.b16 %v2014
        %v2310 = vunpack.c.l.b16 %v2015
        %v2311 = vunpack.c.l.b16 %v2016
        %v2312 = vunpack.c.l.b16 %v2017
        %v2313 = vunpack.c.l.b16 %v2018
        %v2314 = vunpack.c.l.b16 %v2019
        %v2315 = vunpack.c.l.b16 %v2020
        %v2316 = vunpack.c.l.b16 %v2021
        %v2317 = vunpack.c.l.b16 %v2022
        %v2318 = vunpack.c.l.b16 %v2023
        %v2319 = vunpack.c.l.b16 %v2024
        %v2320 = vunpack.c.l.b16 %v2025
        %v2321 = vunpack.c.l.b16 %v2026
        %v2322 = vunpack.c.l.b16 %v2027
        %v2323 = vunpack.c.l.b16 %v2028
        %v2324 = vunpack.c.l.b16 %v2029
        %v2325 = vunpack.c.l.b16 %v2030
        %v2326 = vunpack.c.l.b16 %v2031
        %v2327 = vunpack.c.l.b16 %v2032
        %v2328 = vunpack.c.l.b16 %v2033
        %v2329 = vunpack.c.l.b16 %v2034
        %v2330 = vunpack.c.l.b16 %v2035
        %v2331 = vunpack.c.l.b16 %v2036
        %v2332 = vunpack.c.l.b16 %v2037
        %v2333 = vunpack.c.l.b16 %v2038
        %v2334 = vunpack.c.l.b16 %v2039
        %v2335 = vunpack.c.l.b16 %v2040
        %v2336 = vunpack.c.l.b16 %v2041
        %v2337 = vunpack.c.l.b16 %v2042
        %v2338 = vunpack.c.l.b16 %v2043
        %v2339 = vunpack.c.l.b16 %v2044
        %v2340 = vunpack.c.l.b16 %v2045
        %v2341 = vunpack.c.l.b16 %v2046
        %v2342 = vunpack.c.l.b16 %v2047
        %v2343 = vunpack.c.l.b16 %v2048
        %v2344 = vunpack.c.l.b16 %v2049
        %v2345 = vunpack.c.l.b16 %v2050
        %v2346 = vunpack.c.l.b16 %v2051
        %v2347 = vunpack.c.l.b16 %v2052
        %v2348 = vunpack.c.l.b16 %v2053
        %v2349 = vunpack.c.l.b16 %v2054
        %v2350 = vunpack.c.l.b16 %v2055
        %v2351 = vunpack.c.l.b16 %v2056
        %v2352 = vunpack.c.l.b16 %v2057
        %v2353 = vunpack.c.l.b16 %v2058
        %v2354 = vunpack.c.l.b16 %v2059
        %v2355 = vunpack.c.l.b16 %v2060
        %v2356 = vunpack.c.l.b16 %v2061
        %v2357 = vunpack.c.l.b16 %v2062
        %v2358 = vunpack.c.l.b16 %v2063
        %v2359 = vunpack.c.l.b16 %v2064
        %v2360 = vunpack.c.l.b16 %v2065
        %v2361 = vunpack.c.l.b16 %v2066
        %v2362 = vunpack.c.l.b16 %v2067
        %v2363 = vunpack.c.l.b16 %v2068
        %v2364 = vunpack.c.l.b16 %v2069
        %v2365 = vunpack.c.l.b16 %v2070
        %v2366 = vunpack.c.l.b16 %v2071
        %v2367 = vunpack.c.l.b16 %v2072
        %v2368 = vunpack.c.l.b16 %v2073
        %v2369 = vunpack.c.l.b16 %v2074
        %v2370 = vunpack.c.l.b16 %v2075
        %v2371 = vunpack.c.l.b16 %v2076
        %v2372 = vunpack.c.l.b16 %v2077
        %v2373 = vunpack.c.l.b16 %v2078
        %v2374 = vunpack.c.l.b16 %v2079
        %v2375 = vunpack.c.l.b16 %v2080
        %v2376 = vunpack.c.l.b16 %v2081
        %v2377 = vunpack.c.l.b16 %v2082
        %v2378 = vunpack.c.l.b16 %v2083
        %v2379 = vunpack.c.l.b16 %v2084
        %v2380 = vunpack.c.l.b16 %v2085
        %v2381 = vunpack.c.l.b16 %v2086
        %v2382 = vunpack.c.l.b16 %v2087
        %v2383 = vunpack.c.l.b16 %v2088
        %v2384 = vunpack.c.l.b16 %v2089
        %v2385 = vunpack.c.l.b16 %v2090
        %v2386 = vunpack.c.l.b16 %v2091
        %v2387 = vunpack.c.l.b16 %v2092
        %v2388 = vunpack.c.l.b16 %v2093
        %v2389 = vunpack.c.l.b16 %v2094
        %v2390 = vunpack.c.l.b16 %v2095
        %v2391 = vunpack.c.l.b16 %v2096
        %v2392 = vunpack.c.l.b16 %v2097
        %v2393 = vunpack.c.l.b16 %v2098
        %v2394 = vunpack.c.l.b16 %v2099
        %v2395 = vunpack.c.l.b16 %v2100
        %v2396 = vunpack.c.l.b16 %v2101
        %v2397 = vunpack.c.l.b16 %v2102
        %v2398 = vunpack.c.l.b16 %v2103
        %v2399 = vunpack.c.l.b16 %v2104
        %v2400 = vunpack.c.l.b16 %v2105
        %v2401 = vunpack.c.l.b16 %v2106
        %v2402 = vunpack.c.l.b16 %v2107
        %v2403 = vunpack.c.l.b16 %v2108
        %v2404 = vunpack.c.l.b16 %v2109
        %v2405 = vunpack.c.l.b16 %v2110
        %v2406 = vunpack.c.l.b16 %v2111
        %v2407 = vunpack.c.l.b16 %v2112
        %v2408 = vunpack.c.l.b16 %v2113
        %v2409 = vunpack.c.l.b16 %v2114
        %v2410 = vunpack.c.l.b16 %v2115
        %v2411 = vunpack.c.l.b16 %v2116
        %v2412 = vunpack.c.l.b16 %v2117
        %v2413 = vunpack.c.l.b16 %v2118
        %v2414 = vunpack.c.l.b16 %v2119
        %v2415 = vunpack.c.l.b16 %v2120
        %v2416 = vunpack.c.l.b16 %v2121
        %v2417 = vunpack.c.l.b16 %v2122
        %v2418 = vunpack.c.l.b16 %v2123
        %v2419 = vunpack.c.l.b16 %v2124
        %v2420 = vunpack.c.l.b16 %v2125
        %v2421 = vunpack.c.l.b16 %v2126
        %v2422 = vunpack.c.l.b16 %v2127
        %v2423 = vunpack.c.l.b16 %v2128
        %v2424 = vunpack.c.l.b16 %v2129
        %v2425 = vunpack.c.l.b16 %v2130
        %v2426 = vunpack.c.l.b16 %v2131
        %v2427 = vunpack.c.l.b16 %v2132
        %v2428 = vunpack.c.l.b16 %v2133
        %v2429 = vunpack.c.l.b16 %v2134
        %v2430 = vunpack.c.l.b16 %v2135
        %v2431 = vunpack.c.l.b16 %v2136
        %v2432 = vunpack.c.l.b16 %v2137
        %v2433 = vunpack.c.l.b16 %v2138
        %v2434 = vunpack.c.l.b16 %v2139
        %v2435 = vunpack.c.l.b16 %v2140
        %v2436 = vunpack.c.l.b16 %v2141
        %v2437 = vunpack.c.l.b16 %v2142
        %v2438 = vunpack.c.l.b16 %v2143
        %v2439 = vunpack.c.l.b16 %v2144
        %v2440 = vunpack.c.l.b16 %v2145
        %v2441 = vunpack.c.l.b16 %v2146
        %v2442 = vunpack.c.l.b16 %v2147
        %v2443 = vunpack.c.l.b16 %v2148
        %v2444 = vunpack.c.l.b16 %v2149
        %v2445 = vunpack.c.l.b16 %v2150
        %v2446 = vunpack.c.l.b16 %v2151
        %v2447 = vpack.c.b16 %v2304, %v2303
        %v2448 = vpack.c.b16 %v2306, %v2305
        %v2449 = vpack.c.b16 %v2308, %v2307
        %v2450 = vpack.c.b16 %v2310, %v2309
        %v2451 = vpack.c.b16 %v2312, %v2311
        %v2452 = vpack.c.b16 %v2314, %v2313
        %v2453 = vpack.c.b16 %v2316, %v2315
        %v2454 = vpack.c.b16 %v2318, %v2317
        %v2455 = vpack.c.b16 %v2320, %v2319
        %v2456 = vpack.c.b16 %v2322, %v2321
        %v2457 = vpack.c.b16 %v2324, %v2323
        %v2458 = vpack.c.b16 %v2326, %v2325
        %v2459 = vpack.c.b16 %v2328, %v2327
        %v2460 = vpack.c.b16 %v2330, %v2329
        %v2461 = vpack.c.b16 %v2332, %v2331
        %v2462 = vpack.c.b16 %v2334, %v2333
        %v2463 = vpack.c.b16 %v2336, %v2335
        %v2464 = vpack.c.b16 %v2338, %v2337
        %v2465 = vpack.c.b16 %v2340, %v2339
        %v2466 = vpack.c.b16 %v2342, %v2341
        %v2467 = vpack.c.b16 %v2344, %v2343
        %v2468 = vpack.c.b16 %v2346, %v2345
        %v2469 = vpack.c.b16 %v2348, %v2347
        %v2470 = vpack.c.b16 %v2350, %v2349
        %v2471 = vpack.c.b16 %v2352, %v2351
        %v2472 = vpack.c.b16 %v2354, %v2353
        %v2473 = vpack.c.b16 %v2356, %v2355
        %v2474 = vpack.c.b16 %v2358, %v2357
        %v2475 = vpack.c.b16 %v2360, %v2359
        %v2476 = vpack.c.b16 %v2362, %v2361
        %v2477 = vpack.c.b16 %v2364, %v2363
        %v2478 = vpack.c.b16 %v2366, %v2365
        %v2479 = vpack.c.b16 %v2368, %v2367
        %v2480 = vpack.c.b16 %v2370, %v2369
        %v2481 = vpack.c.b16 %v2372, %v2371
        %v2482 = vpack.c.b16 %v2374, %v2373
        %v2483 = vpack.c.b16 %v2376, %v2375
        %v2484 = vpack.c.b16 %v2378, %v2377
        %v2485 = vpack.c.b16 %v2380, %v2379
        %v2486 = vpack.c.b16 %v2382, %v2381
        %v2487 = vpack.c.b16 %v2384, %v2383
        %v2488 = vpack.c.b16 %v2386, %v2385
        %v2489 = vpack.c.b16 %v2388, %v2387
        %v2490 = vpack.c.b16 %v2390, %v2389
        %v2491 = vpack.c.b16 %v2392, %v2391
        %v2492 = vpack.c.b16 %v2394, %v2393
        %v2493 = vpack.c.b16 %v2396, %v2395
        %v2494 = vpack.c.b16 %v2398, %v2397
        %v2495 = vpack.c.b16 %v2400, %v2399
        %v2496 = vpack.c.b16 %v2402, %v2401
        %v2497 = vpack.c.b16 %v2404, %v2403
        %v2498 = vpack.c.b16 %v2406, %v2405
        %v2499 = vpack.c.b16 %v2408, %v2407
        %v2500 = vpack.c.b16 %v2410, %v2409
        %v2501 = vpack.c.b16 %v2412, %v2411
        %v2502 = vpack.c.b16 %v2414, %v2413
        %v2503 = vpack.c.b16 %v2416, %v2415
        %v2504 = vpack.c.b16 %v2418, %v2417
        %v2505 = vpack.c.b16 %v2420, %v2419
        %v2506 = vpack.c.b16 %v2422, %v2421
        %v2507 = vpack.c.b16 %v2424, %v2423
        %v2508 = vpack.c.b16 %v2426, %v2425
        %v2509 = vpack.c.b16 %v2428, %v2427
        %v2510 = vpack.c.b16 %v2430, %v2429
        %v2511 = vpack.c.b16 %v2432, %v2431
        %v2512 = vpack.c.b16 %v2434, %v2433
        %v2513 = vpack.c.b16 %v2436, %v2435
        %v2514 = vpack.c.b16 %v2438, %v2437
        %v2515 = vpack.c.b16 %v2440, %v2439
        %v2516 = vpack.c.b16 %v2442, %v2441
        %v2517 = vpack.c.b16 %v2444, %v2443
        %v2518 = vpack.c.b16 %v2446, %v2445
        %2591 = vmatprep.subr.bf16.mxu0 0
        %2592 = vmatpush1.bf16.msra.mxu0 %v2454
        %2593 = vmatprep.subr.bf16.mxu0 0
        %2594 = vmatpush1.bf16.msra.mxu0 %v2453
        %2595 = vmatprep.subr.bf16.mxu0 0
        %2596 = vmatpush1.bf16.msra.mxu0 %v2452
        %2597 = vmatprep.subr.bf16.mxu0 0
        %2598 = vmatpush1.bf16.msra.mxu0 %v2451
        %2599 = vmatprep.subr.bf16.mxu0 0
        %2600 = vmatpush1.bf16.msra.mxu0 %v2450
        %2601 = vmatprep.subr.bf16.mxu0 0
        %2602 = vmatpush1.bf16.msra.mxu0 %v2449
        %2603 = vmatprep.subr.bf16.mxu0 0
        %2604 = vmatpush1.bf16.msra.mxu0 %v2448
        %2605 = vmatprep.subr.bf16.mxu0 0
        %2606 = vmatpush1.bf16.msra.mxu0 %v2447
        %2607 = vmatprep.subr.bf16.mxu0 0
        %2608 = vmatpush2.bf16.msra.mxu0 %v2462
        %2609 = vmatprep.subr.bf16.mxu0 0
        %2610 = vmatpush2.bf16.msra.mxu0 %v2461
        %2611 = vmatprep.subr.bf16.mxu0 0
        %2612 = vmatpush2.bf16.msra.mxu0 %v2460
        %2613 = vmatprep.subr.bf16.mxu0 0
        %2614 = vmatpush2.bf16.msra.mxu0 %v2459
        %2615 = vmatprep.subr.bf16.mxu0 0
        %2616 = vmatpush2.bf16.msra.mxu0 %v2458
        %2617 = vmatprep.subr.bf16.mxu0 0
        %2618 = vmatpush2.bf16.msra.mxu0 %v2457
        %2619 = vmatprep.subr.bf16.mxu0 0
        %2620 = vmatpush2.bf16.msra.mxu0 %v2456
        %2621 = vmatprep.subr.bf16.mxu0 0
        %2622 = vmatpush2.bf16.msra.mxu0 %v2455
        %2623 = vmatprep.mubr.bf16.mxu0 %v1394
        %2624 = vmatmul.mubr.bf16.gmra.mxu0 %v1342
        %v2625 = vpop.f32.mrf.mxu0
        %v2626 = vadd.f32 %v2157, %v2625
        %v2627 = vpop.f32.mrf.mxu0
        %v2628 = vpop.f32.mrf.mxu0
        %v2629 = vadd.f32 %v2157, %v2628
        %v2630 = vpop.f32.mrf.mxu0
        %2631 = vmatprep.mubr.bf16.mxu0 %v1406
        %2632 = vmatmul.mubr.bf16.gmra.mxu0 %v1343
        %v2633 = vpop.f32.mrf.mxu0
        %v2634 = vadd.f32 %v2157, %v2633
        %v2635 = vpop.f32.mrf.mxu0
        %v2636 = vpop.f32.mrf.mxu0
        %v2637 = vadd.f32 %v2157, %v2636
        %v2638 = vpop.f32.mrf.mxu0
        %2639 = vmatprep.mubr.bf16.mxu0 %v1418
        %2640 = vmatmul.mubr.bf16.gmra.mxu0 %v1344
        %v2641 = vpop.f32.mrf.mxu0
        %v2642 = vadd.f32 %v2157, %v2641
        %v2643 = vpop.f32.mrf.mxu0
        %v2644 = vpop.f32.mrf.mxu0
        %v2645 = vadd.f32 %v2157, %v2644
        %v2646 = vpop.f32.mrf.mxu0
        %2647 = vmatprep.mubr.bf16.mxu0 %v1430
        %2648 = vmatmul.mubr.bf16.gmra.mxu0 %v1345
        %v2649 = vpop.f32.mrf.mxu0
        %v2650 = vadd.f32 %v2157, %v2649
        %v2651 = vpop.f32.mrf.mxu0
        %v2652 = vpop.f32.mrf.mxu0
        %v2653 = vadd.f32 %v2157, %v2652
        %v2654 = vpop.f32.mrf.mxu0
        %2655 = vmatprep.mubr.bf16.mxu0 %v1442
        %2656 = vmatmul.mubr.bf16.gmra.mxu0 %v1346
        %v2657 = vpop.f32.mrf.mxu0
        %v2658 = vadd.f32 %v2157, %v2657
        %v2659 = vpop.f32.mrf.mxu0
        %v2660 = vpop.f32.mrf.mxu0
        %v2661 = vadd.f32 %v2157, %v2660
        %v2662 = vpop.f32.mrf.mxu0
        %2663 = vmatprep.mubr.bf16.mxu0 %v1454
        %2664 = vmatmul.mubr.bf16.gmra.mxu0 %v1347
        %v2665 = vpop.f32.mrf.mxu0
        %v2666 = vadd.f32 %v2157, %v2665
        %v2667 = vpop.f32.mrf.mxu0
        %v2668 = vpop.f32.mrf.mxu0
        %v2669 = vadd.f32 %v2157, %v2668
        %v2670 = vpop.f32.mrf.mxu0
        %2671 = vmatprep.mubr.bf16.mxu0 %v1466
        %2672 = vmatmul.mubr.bf16.gmra.mxu0 %v1348
        %v2673 = vpop.f32.mrf.mxu0
        %v2674 = vadd.f32 %v2157, %v2673
        %v2675 = vpop.f32.mrf.mxu0
        %v2676 = vpop.f32.mrf.mxu0
        %v2677 = vadd.f32 %v2157, %v2676
        %v2678 = vpop.f32.mrf.mxu0
        %2679 = vmatprep.mubr.bf16.mxu0 %v1478
        %2680 = vmatmul.mubr.bf16.gmra.mxu0 %v1349
        %v2681 = vpop.f32.mrf.mxu0
        %v2682 = vadd.f32 %v2157, %v2681
        %v2683 = vpop.f32.mrf.mxu0
        %v2684 = vpop.f32.mrf.mxu0
        %v2685 = vadd.f32 %v2157, %v2684
        %v2686 = vpop.f32.mrf.mxu0
        %2687 = vdwg.mxu0
        %2688 = vmatprep.subr.bf16.mxu0 0
        %2689 = vmatpush1.bf16.msra.mxu0 %v2470
        %2690 = vmatprep.subr.bf16.mxu0 0
        %2691 = vmatpush1.bf16.msra.mxu0 %v2469
        %2692 = vmatprep.subr.bf16.mxu0 0
        %2693 = vmatpush1.bf16.msra.mxu0 %v2468
        %2694 = vmatprep.subr.bf16.mxu0 0
        %2695 = vmatpush1.bf16.msra.mxu0 %v2467
        %2696 = vmatprep.subr.bf16.mxu0 0
        %2697 = vmatpush1.bf16.msra.mxu0 %v2466
        %2698 = vmatprep.subr.bf16.mxu0 0
        %2699 = vmatpush1.bf16.msra.mxu0 %v2465
        %2700 = vmatprep.subr.bf16.mxu0 0
        %2701 = vmatpush1.bf16.msra.mxu0 %v2464
        %2702 = vmatprep.subr.bf16.mxu0 0
        %2703 = vmatpush1.bf16.msra.mxu0 %v2463
        %2704 = vmatprep.subr.bf16.mxu0 0
        %2705 = vmatpush2.bf16.msra.mxu0 %v2478
        %2706 = vmatprep.subr.bf16.mxu0 0
        %2707 = vmatpush2.bf16.msra.mxu0 %v2477
        %2708 = vmatprep.subr.bf16.mxu0 0
        %2709 = vmatpush2.bf16.msra.mxu0 %v2476
        %2710 = vmatprep.subr.bf16.mxu0 0
        %2711 = vmatpush2.bf16.msra.mxu0 %v2475
        %2712 = vmatprep.subr.bf16.mxu0 0
        %2713 = vmatpush2.bf16.msra.mxu0 %v2474
        %2714 = vmatprep.subr.bf16.mxu0 0
        %2715 = vmatpush2.bf16.msra.mxu0 %v2473
        %2716 = vmatprep.subr.bf16.mxu0 0
        %2717 = vmatpush2.bf16.msra.mxu0 %v2472
        %2718 = vmatprep.subr.bf16.mxu0 0
        %2719 = vmatpush2.bf16.msra.mxu0 %v2471
        %2720 = vmatprep.mubr.bf16.mxu0 %v1576
        %2721 = vmatmul.mubr.bf16.gmra.mxu0 %v1514
        %v2722 = vpop.f32.mrf.mxu0
        %v2723 = vadd.f32 %v2626, %v2722
        %v2724 = vpop.f32.mrf.mxu0
        %v2725 = vpop.f32.mrf.mxu0
        %v2726 = vadd.f32 %v2629, %v2725
        %v2727 = vpop.f32.mrf.mxu0
        %2728 = vmatprep.mubr.bf16.mxu0 %v1577
        %2729 = vmatmul.mubr.bf16.gmra.mxu0 %v1517
        %v2730 = vpop.f32.mrf.mxu0
        %v2731 = vadd.f32 %v2634, %v2730
        %v2732 = vpop.f32.mrf.mxu0
        %v2733 = vpop.f32.mrf.mxu0
        %v2734 = vadd.f32 %v2637, %v2733
        %v2735 = vpop.f32.mrf.mxu0
        %2736 = vmatprep.mubr.bf16.mxu0 %v1578
        %2737 = vmatmul.mubr.bf16.gmra.mxu0 %v1520
        %v2738 = vpop.f32.mrf.mxu0
        %v2739 = vadd.f32 %v2642, %v2738
        %v2740 = vpop.f32.mrf.mxu0
        %v2741 = vpop.f32.mrf.mxu0
        %v2742 = vadd.f32 %v2645, %v2741
        %v2743 = vpop.f32.mrf.mxu0
        %2744 = vmatprep.mubr.bf16.mxu0 %v1579
        %2745 = vmatmul.mubr.bf16.gmra.mxu0 %v1523
        %v2746 = vpop.f32.mrf.mxu0
        %v2747 = vadd.f32 %v2650, %v2746
        %v2748 = vpop.f32.mrf.mxu0
        %v2749 = vpop.f32.mrf.mxu0
        %v2750 = vadd.f32 %v2653, %v2749
        %v2751 = vpop.f32.mrf.mxu0
        %2752 = vmatprep.mubr.bf16.mxu0 %v1580
        %2753 = vmatmul.mubr.bf16.gmra.mxu0 %v1526
        %v2754 = vpop.f32.mrf.mxu0
        %v2755 = vadd.f32 %v2658, %v2754
        %v2756 = vpop.f32.mrf.mxu0
        %v2757 = vpop.f32.mrf.mxu0
        %v2758 = vadd.f32 %v2661, %v2757
        %v2759 = vpop.f32.mrf.mxu0
        %2760 = vmatprep.mubr.bf16.mxu0 %v1581
        %2761 = vmatmul.mubr.bf16.gmra.mxu0 %v1529
        %v2762 = vpop.f32.mrf.mxu0
        %v2763 = vadd.f32 %v2666, %v2762
        %v2764 = vpop.f32.mrf.mxu0
        %v2765 = vpop.f32.mrf.mxu0
        %v2766 = vadd.f32 %v2669, %v2765
        %v2767 = vpop.f32.mrf.mxu0
        %2768 = vmatprep.mubr.bf16.mxu0 %v1582
        %2769 = vmatmul.mubr.bf16.gmra.mxu0 %v1532
        %v2770 = vpop.f32.mrf.mxu0
        %v2771 = vadd.f32 %v2674, %v2770
        %v2772 = vpop.f32.mrf.mxu0
        %v2773 = vpop.f32.mrf.mxu0
        %v2774 = vadd.f32 %v2677, %v2773
        %v2775 = vpop.f32.mrf.mxu0
        %2776 = vmatprep.mubr.bf16.mxu0 %v1583
        %2777 = vmatmul.mubr.bf16.gmra.mxu0 %v1535
        %v2778 = vpop.f32.mrf.mxu0
        %v2779 = vadd.f32 %v2682, %v2778
        %v2780 = vpop.f32.mrf.mxu0
        %v2781 = vpop.f32.mrf.mxu0
        %v2782 = vadd.f32 %v2685, %v2781
        %v2783 = vpop.f32.mrf.mxu0
        %2784 = vdwg.mxu0
        %2785 = vmatprep.subr.bf16.mxu0 0
        %2786 = vmatpush1.bf16.msra.mxu0 %v2486
        %2787 = vmatprep.subr.bf16.mxu0 0
        %2788 = vmatpush1.bf16.msra.mxu0 %v2485
        %2789 = vmatprep.subr.bf16.mxu0 0
        %2790 = vmatpush1.bf16.msra.mxu0 %v2484
        %2791 = vmatprep.subr.bf16.mxu0 0
        %2792 = vmatpush1.bf16.msra.mxu0 %v2483
        %2793 = vmatprep.subr.bf16.mxu0 0
        %2794 = vmatpush1.bf16.msra.mxu0 %v2482
        %2795 = vmatprep.subr.bf16.mxu0 0
        %2796 = vmatpush1.bf16.msra.mxu0 %v2481
        %2797 = vmatprep.subr.bf16.mxu0 0
        %2798 = vmatpush1.bf16.msra.mxu0 %v2480
        %2799 = vmatprep.subr.bf16.mxu0 0
        %2800 = vmatpush1.bf16.msra.mxu0 %v2479
        %2801 = vmatprep.subr.bf16.mxu0 0
        %2802 = vmatpush2.bf16.msra.mxu0 %v2494
        %2803 = vmatprep.subr.bf16.mxu0 0
        %2804 = vmatpush2.bf16.msra.mxu0 %v2493
        %2805 = vmatprep.subr.bf16.mxu0 0
        %2806 = vmatpush2.bf16.msra.mxu0 %v2492
        %2807 = vmatprep.subr.bf16.mxu0 0
        %2808 = vmatpush2.bf16.msra.mxu0 %v2491
        %2809 = vmatprep.subr.bf16.mxu0 0
        %2810 = vmatpush2.bf16.msra.mxu0 %v2490
        %2811 = vmatprep.subr.bf16.mxu0 0
        %2812 = vmatpush2.bf16.msra.mxu0 %v2489
        %2813 = vmatprep.subr.bf16.mxu0 0
        %2814 = vmatpush2.bf16.msra.mxu0 %v2488
        %2815 = vmatprep.subr.bf16.mxu0 0
        %2816 = vmatpush2.bf16.msra.mxu0 %v2487
        %2817 = vmatprep.mubr.bf16.mxu0 %v1746
        %2818 = vmatmul.mubr.bf16.gmra.mxu0 %v1627
        %v2819 = vpop.f32.mrf.mxu0
        %v2820 = vadd.f32 %v2723, %v2819
        %v2821 = vpop.f32.mrf.mxu0
        %v2822 = vpop.f32.mrf.mxu0
        %v2823 = vadd.f32 %v2726, %v2822
        %v2824 = vpop.f32.mrf.mxu0
        %2825 = vmatprep.mubr.bf16.mxu0 %v1749
        %2826 = vmatmul.mubr.bf16.gmra.mxu0 %v1639
        %v2827 = vpop.f32.mrf.mxu0
        %v2828 = vadd.f32 %v2731, %v2827
        %v2829 = vpop.f32.mrf.mxu0
        %v2830 = vpop.f32.mrf.mxu0
        %v2831 = vadd.f32 %v2734, %v2830
        %v2832 = vpop.f32.mrf.mxu0
        %2833 = vmatprep.mubr.bf16.mxu0 %v1752
        %2834 = vmatmul.mubr.bf16.gmra.mxu0 %v1651
        %v2835 = vpop.f32.mrf.mxu0
        %v2836 = vadd.f32 %v2739, %v2835
        %v2837 = vpop.f32.mrf.mxu0
        %v2838 = vpop.f32.mrf.mxu0
        %v2839 = vadd.f32 %v2742, %v2838
        %v2840 = vpop.f32.mrf.mxu0
        %2841 = vmatprep.mubr.bf16.mxu0 %v1755
        %2842 = vmatmul.mubr.bf16.gmra.mxu0 %v1663
        %v2843 = vpop.f32.mrf.mxu0
        %v2844 = vadd.f32 %v2747, %v2843
        %v2845 = vpop.f32.mrf.mxu0
        %v2846 = vpop.f32.mrf.mxu0
        %v2847 = vadd.f32 %v2750, %v2846
        %v2848 = vpop.f32.mrf.mxu0
        %2849 = vmatprep.mubr.bf16.mxu0 %v1758
        %2850 = vmatmul.mubr.bf16.gmra.mxu0 %v1675
        %v2851 = vpop.f32.mrf.mxu0
        %v2852 = vadd.f32 %v2755, %v2851
        %v2853 = vpop.f32.mrf.mxu0
        %v2854 = vpop.f32.mrf.mxu0
        %v2855 = vadd.f32 %v2758, %v2854
        %v2856 = vpop.f32.mrf.mxu0
        %2857 = vmatprep.mubr.bf16.mxu0 %v1761
        %2858 = vmatmul.mubr.bf16.gmra.mxu0 %v1687
        %v2859 = vpop.f32.mrf.mxu0
        %v2860 = vadd.f32 %v2763, %v2859
        %v2861 = vpop.f32.mrf.mxu0
        %v2862 = vpop.f32.mrf.mxu0
        %v2863 = vadd.f32 %v2766, %v2862
        %v2864 = vpop.f32.mrf.mxu0
        %2865 = vmatprep.mubr.bf16.mxu0 %v1764
        %2866 = vmatmul.mubr.bf16.gmra.mxu0 %v1699
        %v2867 = vpop.f32.mrf.mxu0
        %v2868 = vadd.f32 %v2771, %v2867
        %v2869 = vpop.f32.mrf.mxu0
        %v2870 = vpop.f32.mrf.mxu0
        %v2871 = vadd.f32 %v2774, %v2870
        %v2872 = vpop.f32.mrf.mxu0
        %2873 = vmatprep.mubr.bf16.mxu0 %v1767
        %2874 = vmatmul.mubr.bf16.gmra.mxu0 %v1711
        %v2875 = vpop.f32.mrf.mxu0
        %v2876 = vadd.f32 %v2779, %v2875
        %v2877 = vpop.f32.mrf.mxu0
        %v2878 = vpop.f32.mrf.mxu0
        %v2879 = vadd.f32 %v2782, %v2878
        %v2880 = vpop.f32.mrf.mxu0
        %2881 = vdwg.mxu0
        %2882 = vmatprep.subr.bf16.mxu0 0
        %2883 = vmatpush1.bf16.msra.mxu0 %v2502
        %2884 = vmatprep.subr.bf16.mxu0 0
        %2885 = vmatpush1.bf16.msra.mxu0 %v2501
        %2886 = vmatprep.subr.bf16.mxu0 0
        %2887 = vmatpush1.bf16.msra.mxu0 %v2500
        %2888 = vmatprep.subr.bf16.mxu0 0
        %2889 = vmatpush1.bf16.msra.mxu0 %v2499
        %2890 = vmatprep.subr.bf16.mxu0 0
        %2891 = vmatpush1.bf16.msra.mxu0 %v2498
        %2892 = vmatprep.subr.bf16.mxu0 0
        %2893 = vmatpush1.bf16.msra.mxu0 %v2497
        %2894 = vmatprep.subr.bf16.mxu0 0
        %2895 = vmatpush1.bf16.msra.mxu0 %v2496
        %2896 = vmatprep.subr.bf16.mxu0 0
        %2897 = vmatpush1.bf16.msra.mxu0 %v2495
        %2898 = vmatprep.subr.bf16.mxu0 0
        %2899 = vmatpush2.bf16.msra.mxu0 %v2510
        %2900 = vmatprep.subr.bf16.mxu0 0
        %2901 = vmatpush2.bf16.msra.mxu0 %v2509
        %2902 = vmatprep.subr.bf16.mxu0 0
        %2903 = vmatpush2.bf16.msra.mxu0 %v2508
        %2904 = vmatprep.subr.bf16.mxu0 0
        %2905 = vmatpush2.bf16.msra.mxu0 %v2507
        %2906 = vmatprep.subr.bf16.mxu0 0
        %2907 = vmatpush2.bf16.msra.mxu0 %v2506
        %2908 = vmatprep.subr.bf16.mxu0 0
        %2909 = vmatpush2.bf16.msra.mxu0 %v2505
        %2910 = vmatprep.subr.bf16.mxu0 0
        %2911 = vmatpush2.bf16.msra.mxu0 %v2504
        %2912 = vmatprep.subr.bf16.mxu0 0
        %2913 = vmatpush2.bf16.msra.mxu0 %v2503
        %2914 = vmatprep.mubr.bf16.mxu0 %v1859
        %2915 = vmatmul.mubr.bf16.gmra.mxu0 %v1808
        %v2916 = vpop.f32.mrf.mxu0
        %v2917 = vadd.f32 %v2820, %v2916
        %v2918 = vpop.f32.mrf.mxu0
        %v2919 = vpop.f32.mrf.mxu0
        %v2920 = vadd.f32 %v2823, %v2919
        %v2921 = vpop.f32.mrf.mxu0
        %2922 = vmatprep.mubr.bf16.mxu0 %v1871
        %2923 = vmatmul.mubr.bf16.gmra.mxu0 %v1809
        %v2924 = vpop.f32.mrf.mxu0
        %v2925 = vadd.f32 %v2828, %v2924
        %v2926 = vpop.f32.mrf.mxu0
        %v2927 = vpop.f32.mrf.mxu0
        %v2928 = vadd.f32 %v2831, %v2927
        %v2929 = vpop.f32.mrf.mxu0
        %2930 = vmatprep.mubr.bf16.mxu0 %v1883
        %2931 = vmatmul.mubr.bf16.gmra.mxu0 %v1810
        %v2932 = vpop.f32.mrf.mxu0
        %v2933 = vadd.f32 %v2836, %v2932
        %v2934 = vpop.f32.mrf.mxu0
        %v2935 = vpop.f32.mrf.mxu0
        %v2936 = vadd.f32 %v2839, %v2935
        %v2937 = vpop.f32.mrf.mxu0
        %2938 = vmatprep.mubr.bf16.mxu0 %v1895
        %2939 = vmatmul.mubr.bf16.gmra.mxu0 %v1811
        %v2940 = vpop.f32.mrf.mxu0
        %v2941 = vadd.f32 %v2844, %v2940
        %v2942 = vpop.f32.mrf.mxu0
        %v2943 = vpop.f32.mrf.mxu0
        %v2944 = vadd.f32 %v2847, %v2943
        %v2945 = vpop.f32.mrf.mxu0
        %2946 = vmatprep.mubr.bf16.mxu0 %v1907
        %2947 = vmatmul.mubr.bf16.gmra.mxu0 %v1812
        %v2948 = vpop.f32.mrf.mxu0
        %v2949 = vadd.f32 %v2852, %v2948
        %v2950 = vpop.f32.mrf.mxu0
        %v2951 = vpop.f32.mrf.mxu0
        %v2952 = vadd.f32 %v2855, %v2951
        %v2953 = vpop.f32.mrf.mxu0
        %2954 = vmatprep.mubr.bf16.mxu0 %v1919
        %2955 = vmatmul.mubr.bf16.gmra.mxu0 %v1813
        %v2956 = vpop.f32.mrf.mxu0
        %v2957 = vadd.f32 %v2860, %v2956
        %v2958 = vpop.f32.mrf.mxu0
        %v2959 = vpop.f32.mrf.mxu0
        %v2960 = vadd.f32 %v2863, %v2959
        %v2961 = vpop.f32.mrf.mxu0
        %2962 = vmatprep.mubr.bf16.mxu0 %v1931
        %2963 = vmatmul.mubr.bf16.gmra.mxu0 %v1814
        %v2964 = vpop.f32.mrf.mxu0
        %v2965 = vadd.f32 %v2868, %v2964
        %v2966 = vpop.f32.mrf.mxu0
        %v2967 = vpop.f32.mrf.mxu0
        %v2968 = vadd.f32 %v2871, %v2967
        %v2969 = vpop.f32.mrf.mxu0
        %2970 = vmatprep.mubr.bf16.mxu0 %v1943
        %2971 = vmatmul.mubr.bf16.gmra.mxu0 %v1815
        %v2972 = vpop.f32.mrf.mxu0
        %v2973 = vadd.f32 %v2876, %v2972
        %v2974 = vpop.f32.mrf.mxu0
        %v2975 = vpop.f32.mrf.mxu0
        %v2976 = vadd.f32 %v2879, %v2975
        %v2977 = vpop.f32.mrf.mxu0
        %2978 = vdwg.mxu0
        %2979 = vmatprep.subr.bf16.mxu0 0
        %2980 = vmatpush1.bf16.msra.mxu0 %v2518
        %2981 = vmatprep.subr.bf16.mxu0 0
        %2982 = vmatpush1.bf16.msra.mxu0 %v2517
        %2983 = vmatprep.subr.bf16.mxu0 0
        %2984 = vmatpush1.bf16.msra.mxu0 %v2516
        %2985 = vmatprep.subr.bf16.mxu0 0
        %2986 = vmatpush1.bf16.msra.mxu0 %v2515
        %2987 = vmatprep.subr.bf16.mxu0 0
        %2988 = vmatpush1.bf16.msra.mxu0 %v2514
        %2989 = vmatprep.subr.bf16.mxu0 0
        %2990 = vmatpush1.bf16.msra.mxu0 %v2513
        %2991 = vmatprep.subr.bf16.mxu0 0
        %2992 = vmatpush1.bf16.msra.mxu0 %v2512
        %2993 = vmatprep.subr.bf16.mxu0 0
        %2994 = vmatpush1.bf16.msra.mxu0 %v2511
        %2995 = vmatprep.subr.bf16.mxu0 0
        %2996 = vmatpush2.bf16.msra.mxu0 0
        %2997 = vmatprep.subr.bf16.mxu0 0
        %2998 = vmatpush2.bf16.msra.mxu0 0
        %2999 = vmatprep.subr.bf16.mxu0 0
        %3000 = vmatpush2.bf16.msra.mxu0 0
        %3001 = vmatprep.subr.bf16.mxu0 0
        %3002 = vmatpush2.bf16.msra.mxu0 0
        %3003 = vmatprep.subr.bf16.mxu0 0
        %3004 = vmatpush2.bf16.msra.mxu0 0
        %3005 = vmatprep.subr.bf16.mxu0 0
        %3006 = vmatpush2.bf16.msra.mxu0 0
        %3007 = vmatprep.subr.bf16.mxu0 0
        %3008 = vmatpush2.bf16.msra.mxu0 0
        %3009 = vmatprep.subr.bf16.mxu0 0
        %3010 = vmatpush2.bf16.msra.mxu0 0
        %3011 = vmatprep.mubr.bf16.mxu0 0
        %3012 = vmatmul.mubr.bf16.gmra.mxu0 %v1978
        %v3013 = vpop.f32.mrf.mxu0
        %v3014 = vadd.f32 %v2917, %v3013
        %v3015 = vpop.f32.mrf.mxu0
        %v3016 = vpop.f32.mrf.mxu0
        %v3017 = vadd.f32 %v2920, %v3016
        %v3018 = vpop.f32.mrf.mxu0
        %3019 = vmatprep.mubr.bf16.mxu0 0
        %3020 = vmatmul.mubr.bf16.gmra.mxu0 %v1981
        %v3021 = vpop.f32.mrf.mxu0
        %v3022 = vadd.f32 %v2925, %v3021
        %v3023 = vpop.f32.mrf.mxu0
        %v3024 = vpop.f32.mrf.mxu0
        %v3025 = vadd.f32 %v2928, %v3024
        %v3026 = vpop.f32.mrf.mxu0
        %3027 = vmatprep.mubr.bf16.mxu0 0
        %3028 = vmatmul.mubr.bf16.gmra.mxu0 %v1984
        %v3029 = vpop.f32.mrf.mxu0
        %v3030 = vadd.f32 %v2933, %v3029
        %v3031 = vpop.f32.mrf.mxu0
        %v3032 = vpop.f32.mrf.mxu0
        %v3033 = vadd.f32 %v2936, %v3032
        %v3034 = vpop.f32.mrf.mxu0
        %3035 = vmatprep.mubr.bf16.mxu0 0
        %3036 = vmatmul.mubr.bf16.gmra.mxu0 %v1987
        %v3037 = vpop.f32.mrf.mxu0
        %v3038 = vadd.f32 %v2941, %v3037
        %v3039 = vpop.f32.mrf.mxu0
        %v3040 = vpop.f32.mrf.mxu0
        %v3041 = vadd.f32 %v2944, %v3040
        %v3042 = vpop.f32.mrf.mxu0
        %3043 = vmatprep.mubr.bf16.mxu0 0
        %3044 = vmatmul.mubr.bf16.gmra.mxu0 %v1990
        %v3045 = vpop.f32.mrf.mxu0
        %v3046 = vadd.f32 %v2949, %v3045
        %v3047 = vpop.f32.mrf.mxu0
        %v3048 = vpop.f32.mrf.mxu0
        %v3049 = vadd.f32 %v2952, %v3048
        %v3050 = vpop.f32.mrf.mxu0
        %3051 = vmatprep.mubr.bf16.mxu0 0
        %3052 = vmatmul.mubr.bf16.gmra.mxu0 %v1993
        %v3053 = vpop.f32.mrf.mxu0
        %v3054 = vadd.f32 %v2957, %v3053
        %v3055 = vpop.f32.mrf.mxu0
        %v3056 = vpop.f32.mrf.mxu0
        %v3057 = vadd.f32 %v2960, %v3056
        %v3058 = vpop.f32.mrf.mxu0
        %3059 = vmatprep.mubr.bf16.mxu0 0
        %3060 = vmatmul.mubr.bf16.gmra.mxu0 %v1996
        %v3061 = vpop.f32.mrf.mxu0
        %v3062 = vadd.f32 %v2965, %v3061
        %v3063 = vpop.f32.mrf.mxu0
        %v3064 = vpop.f32.mrf.mxu0
        %v3065 = vadd.f32 %v2968, %v3064
        %v3066 = vpop.f32.mrf.mxu0
        %3067 = vmatprep.mubr.bf16.mxu0 0
        %3068 = vmatmul.mubr.bf16.gmra.mxu0 %v1999
        %v3069 = vpop.f32.mrf.mxu0
        %v3070 = vadd.f32 %v2973, %v3069
        %v3071 = vpop.f32.mrf.mxu0
        %v3072 = vpop.f32.mrf.mxu0
        %v3073 = vadd.f32 %v2976, %v3072
        %v3074 = vpop.f32.mrf.mxu0
        %3075 = vdwg.mxu0
        %v3076 = vmax.f32 %v3014, 0.0
        %v3077 = vmax.f32 %v3017, 0.0
        %v3078 = vmax.f32 %v3022, 0.0
        %v3079 = vmax.f32 %v3025, 0.0
        %v3080 = vmax.f32 %v3030, 0.0
        %v3081 = vmax.f32 %v3033, 0.0
        %v3082 = vmax.f32 %v3038, 0.0
        %v3083 = vmax.f32 %v3041, 0.0
        %v3084 = vmax.f32 %v3046, 0.0
        %v3085 = vmax.f32 %v3049, 0.0
        %v3086 = vmax.f32 %v3054, 0.0
        %v3087 = vmax.f32 %v3057, 0.0
        %v3088 = vmax.f32 %v3062, 0.0
        %v3089 = vmax.f32 %v3065, 0.0
        %v3090 = vmax.f32 %v3070, 0.0
        %v3091 = vmax.f32 %v3073, 0.0
        %v3092 = vpack.c.bf16 %v3077, %v3076
        %v3093 = vpack.c.bf16 %v3079, %v3078
        %v3094 = vpack.c.bf16 %v3081, %v3080
        %v3095 = vpack.c.bf16 %v3083, %v3082
        %v3096 = vpack.c.bf16 %v3085, %v3084
        %v3097 = vpack.c.bf16 %v3087, %v3086
        %v3098 = vpack.c.bf16 %v3089, %v3088
        %v3099 = vpack.c.bf16 %v3091, %v3090
        %v3100 = vld [vmem:[#allocation12] sm:$0xf]
        %v3101 = vld [vmem:[#allocation12 + $0x4] sm:$0xf]
        %v3102 = vld [vmem:[#allocation12 + $0x8] sm:$0xf]
        %v3103 = vld [vmem:[#allocation12 + $0xc] sm:$0xf]
        %v3104 = vld [vmem:[#allocation12 + $0x10] sm:$0xf]
        %v3105 = vld [vmem:[#allocation12 + $0x14] sm:$0xf]
        %v3106 = vld [vmem:[#allocation12 + $0x18] sm:$0xf]
        %v3107 = vld [vmem:[#allocation12 + $0x1c] sm:$0xf]
        %v3108 = vld [vmem:[#allocation12 + $0x20] sm:$0xf]
        %v3109 = vld [vmem:[#allocation12 + $0x24] sm:$0xf]
        %v3110 = vld [vmem:[#allocation12 + $0x28] sm:$0xf]
        %v3111 = vld [vmem:[#allocation12 + $0x2c] sm:$0xf]
        %v3112 = vld [vmem:[#allocation12 + $0x30] sm:$0xf]
        %v3113 = vld [vmem:[#allocation12 + $0x34] sm:$0xf]
        %v3114 = vld [vmem:[#allocation12 + $0x38] sm:$0xf]
        %v3115 = vld [vmem:[#allocation12 + $0x3c] sm:$0xf]
        %v3116 = vld [vmem:[%s8] sm:$0x1]
        %v3118 = vlaneseq
        %v3119 = vshrl.u32 %v3118, 7
        %v3120 = vsub.s32 0, %v3119
        %v3121 = vrot.slane %v3116, %v3120
        %v3139 = vunpack.c.l.b16 %v3100
        %v3140 = vunpack.c.l.b16 %v3101
        %v3141 = vunpack.c.l.b16 %v3102
        %v3142 = vunpack.c.l.b16 %v3103
        %v3143 = vunpack.c.l.b16 %v3104
        %v3144 = vunpack.c.l.b16 %v3105
        %v3145 = vunpack.c.l.b16 %v3106
        %v3146 = vunpack.c.l.b16 %v3107
        %v3147 = vunpack.c.l.b16 %v3108
        %v3148 = vunpack.c.l.b16 %v3109
        %v3149 = vunpack.c.l.b16 %v3110
        %v3150 = vunpack.c.l.b16 %v3111
        %v3151 = vunpack.c.l.b16 %v3112
        %v3152 = vunpack.c.l.b16 %v3113
        %v3153 = vunpack.c.l.b16 %v3114
        %v3154 = vunpack.c.l.b16 %v3115
        %v3155 = vpack.c.b16 %v3140, %v3139
        %v3156 = vpack.c.b16 %v3142, %v3141
        %v3157 = vpack.c.b16 %v3144, %v3143
        %v3158 = vpack.c.b16 %v3146, %v3145
        %v3159 = vpack.c.b16 %v3148, %v3147
        %v3160 = vpack.c.b16 %v3150, %v3149
        %v3161 = vpack.c.b16 %v3152, %v3151
        %v3162 = vpack.c.b16 %v3154, %v3153
        %3171 = vmatprep.subr.bf16.mxu0 0
        %3172 = vmatpush1.bf16.msra.mxu0 %v3162
        %3173 = vmatprep.subr.bf16.mxu0 0
        %3174 = vmatpush1.bf16.msra.mxu0 %v3161
        %3175 = vmatprep.subr.bf16.mxu0 0
        %3176 = vmatpush1.bf16.msra.mxu0 %v3160
        %3177 = vmatprep.subr.bf16.mxu0 0
        %3178 = vmatpush1.bf16.msra.mxu0 %v3159
        %3179 = vmatprep.subr.bf16.mxu0 0
        %3180 = vmatpush1.bf16.msra.mxu0 %v3158
        %3181 = vmatprep.subr.bf16.mxu0 0
        %3182 = vmatpush1.bf16.msra.mxu0 %v3157
        %3183 = vmatprep.subr.bf16.mxu0 0
        %3184 = vmatpush1.bf16.msra.mxu0 %v3156
        %3185 = vmatprep.subr.bf16.mxu0 0
        %3186 = vmatpush1.bf16.msra.mxu0 %v3155
        %3187 = vmatprep.subr.bf16.mxu0 0
        %3188 = vmatpush2.bf16.msra.mxu0 0
        %3189 = vmatprep.subr.bf16.mxu0 0
        %3190 = vmatpush2.bf16.msra.mxu0 0
        %3191 = vmatprep.subr.bf16.mxu0 0
        %3192 = vmatpush2.bf16.msra.mxu0 0
        %3193 = vmatprep.subr.bf16.mxu0 0
        %3194 = vmatpush2.bf16.msra.mxu0 0
        %3195 = vmatprep.subr.bf16.mxu0 0
        %3196 = vmatpush2.bf16.msra.mxu0 0
        %3197 = vmatprep.subr.bf16.mxu0 0
        %3198 = vmatpush2.bf16.msra.mxu0 0
        %3199 = vmatprep.subr.bf16.mxu0 0
        %3200 = vmatpush2.bf16.msra.mxu0 0
        %3201 = vmatprep.subr.bf16.mxu0 0
        %3202 = vmatpush2.bf16.msra.mxu0 0
        %3203 = vmatprep.mubr.bf16.mxu0 0
        %3204 = vmatmul.mubr.bf16.gmra.mxu0 %v3092
        %v3205 = vpop.f32.mrf.mxu0
        %v3206 = vadd.f32 %v3121, %v3205
        %v3207 = vpop.f32.mrf.mxu0
        %v3208 = vpop.f32.mrf.mxu0
        %v3209 = vadd.f32 %v3121, %v3208
        %v3210 = vpop.f32.mrf.mxu0
        %3211 = vmatprep.mubr.bf16.mxu0 0
        %3212 = vmatmul.mubr.bf16.gmra.mxu0 %v3093
        %v3213 = vpop.f32.mrf.mxu0
        %v3214 = vadd.f32 %v3121, %v3213
        %v3215 = vpop.f32.mrf.mxu0
        %v3216 = vpop.f32.mrf.mxu0
        %v3217 = vadd.f32 %v3121, %v3216
        %v3218 = vpop.f32.mrf.mxu0
        %3219 = vmatprep.mubr.bf16.mxu0 0
        %3220 = vmatmul.mubr.bf16.gmra.mxu0 %v3094
        %v3221 = vpop.f32.mrf.mxu0
        %v3222 = vadd.f32 %v3121, %v3221
        %v3223 = vpop.f32.mrf.mxu0
        %v3224 = vpop.f32.mrf.mxu0
        %v3225 = vadd.f32 %v3121, %v3224
        %v3226 = vpop.f32.mrf.mxu0
        %3227 = vmatprep.mubr.bf16.mxu0 0
        %3228 = vmatmul.mubr.bf16.gmra.mxu0 %v3095
        %v3229 = vpop.f32.mrf.mxu0
        %v3230 = vadd.f32 %v3121, %v3229
        %v3231 = vpop.f32.mrf.mxu0
        %v3232 = vpop.f32.mrf.mxu0
        %v3233 = vadd.f32 %v3121, %v3232
        %v3234 = vpop.f32.mrf.mxu0
        %3235 = vmatprep.mubr.bf16.mxu0 0
        %3236 = vmatmul.mubr.bf16.gmra.mxu0 %v3096
        %v3237 = vpop.f32.mrf.mxu0
        %v3238 = vadd.f32 %v3121, %v3237
        %v3239 = vpop.f32.mrf.mxu0
        %v3240 = vpop.f32.mrf.mxu0
        %v3241 = vadd.f32 %v3121, %v3240
        %v3242 = vpop.f32.mrf.mxu0
        %3243 = vmatprep.mubr.bf16.mxu0 0
        %3244 = vmatmul.mubr.bf16.gmra.mxu0 %v3097
        %v3245 = vpop.f32.mrf.mxu0
        %v3246 = vadd.f32 %v3121, %v3245
        %v3247 = vpop.f32.mrf.mxu0
        %v3248 = vpop.f32.mrf.mxu0
        %v3249 = vadd.f32 %v3121, %v3248
        %v3250 = vpop.f32.mrf.mxu0
        %3251 = vmatprep.mubr.bf16.mxu0 0
        %3252 = vmatmul.mubr.bf16.gmra.mxu0 %v3098
        %v3253 = vpop.f32.mrf.mxu0
        %v3254 = vadd.f32 %v3121, %v3253
        %v3255 = vpop.f32.mrf.mxu0
        %v3256 = vpop.f32.mrf.mxu0
        %v3257 = vadd.f32 %v3121, %v3256
        %v3258 = vpop.f32.mrf.mxu0
        %3259 = vmatprep.mubr.bf16.mxu0 0
        %3260 = vmatmul.mubr.bf16.gmra.mxu0 %v3099
        %v3261 = vpop.f32.mrf.mxu0
        %v3262 = vadd.f32 %v3121, %v3261
        %v3263 = vpop.f32.mrf.mxu0
        %v3264 = vpop.f32.mrf.mxu0
        %v3265 = vadd.f32 %v3121, %v3264
        %v3266 = vpop.f32.mrf.mxu0
        %3267 = vdwg.mxu0
        %v3268 = vpack.c.bf16 %v3209, %v3206
        %v3269 = vpack.c.bf16 %v3217, %v3214
        %v3270 = vpack.c.bf16 %v3225, %v3222
        %v3271 = vpack.c.bf16 %v3233, %v3230
        %v3272 = vpack.c.bf16 %v3241, %v3238
        %v3273 = vpack.c.bf16 %v3249, %v3246
        %v3274 = vpack.c.bf16 %v3257, %v3254
        %v3275 = vpack.c.bf16 %v3265, %v3262
        %v3284 = vunpack.c.l.b16 %v3268
        %v3285 = vunpack.c.h.b16 %v3268
        %v3286 = vunpack.c.l.b16 %v3269
        %v3287 = vunpack.c.h.b16 %v3269
        %v3288 = vunpack.c.l.b16 %v3270
        %v3289 = vunpack.c.h.b16 %v3270
        %v3290 = vunpack.c.l.b16 %v3271
        %v3291 = vunpack.c.h.b16 %v3271
        %v3292 = vunpack.c.l.b16 %v3272
        %v3293 = vunpack.c.h.b16 %v3272
        %v3294 = vunpack.c.l.b16 %v3273
        %v3295 = vunpack.c.h.b16 %v3273
        %v3296 = vunpack.c.l.b16 %v3274
        %v3297 = vunpack.c.h.b16 %v3274
        %v3298 = vunpack.c.l.b16 %v3275
        %v3299 = vunpack.c.h.b16 %v3275
        %v3300 = vpack.c.b16 %v3284, %v3284
        %v3301 = vpack.c.b16 %v3285, %v3285
        %v3302 = vpack.c.b16 %v3286, %v3286
        %v3303 = vpack.c.b16 %v3287, %v3287
        %v3304 = vpack.c.b16 %v3288, %v3288
        %v3305 = vpack.c.b16 %v3289, %v3289
        %v3306 = vpack.c.b16 %v3290, %v3290
        %v3307 = vpack.c.b16 %v3291, %v3291
        %v3308 = vpack.c.b16 %v3292, %v3292
        %v3309 = vpack.c.b16 %v3293, %v3293
        %v3310 = vpack.c.b16 %v3294, %v3294
        %v3311 = vpack.c.b16 %v3295, %v3295
        %v3312 = vpack.c.b16 %v3296, %v3296
        %v3313 = vpack.c.b16 %v3297, %v3297
        %v3314 = vpack.c.b16 %v3298, %v3298
        %v3315 = vpack.c.b16 %v3299, %v3299
        %3332 = vst [vmem:[%s522] sm:$0xf] %v3300
        %3333 = vst [vmem:[%s522 + $0x4] sm:$0xf] %v3301
        %3334 = vst [vmem:[%s522 + $0x8] sm:$0xf] %v3302
        %3335 = vst [vmem:[%s522 + $0xc] sm:$0xf] %v3303
        %3336 = vst [vmem:[%s522 + $0x10] sm:$0xf] %v3304
        %3337 = vst [vmem:[%s522 + $0x14] sm:$0xf] %v3305
        %3338 = vst [vmem:[%s522 + $0x18] sm:$0xf] %v3306
        %3339 = vst [vmem:[%s522 + $0x1c] sm:$0xf] %v3307
        %3340 = vst [vmem:[%s522 + $0x20] sm:$0xf] %v3308
        %3341 = vst [vmem:[%s522 + $0x24] sm:$0xf] %v3309
        %3342 = vst [vmem:[%s522 + $0x28] sm:$0xf] %v3310
        %3343 = vst [vmem:[%s522 + $0x2c] sm:$0xf] %v3311
        %3344 = vst [vmem:[%s522 + $0x30] sm:$0xf] %v3312
        %3345 = vst [vmem:[%s522 + $0x34] sm:$0xf] %v3313
        %3346 = vst [vmem:[%s522 + $0x38] sm:$0xf] %v3314
        %3347 = vst [vmem:[%s522 + $0x3c] sm:$0xf] %v3315
        %s3348 = sand.u32 %s279, 1
        %s3349 = scalar_lea.sflag [#allocation5], %s3348
        %s3350 = sand.u32 %s279, 1
        %s3351 = smul.addr %s3350, 64
        %s3352 = scalar_lea.vmem [#allocation14], %s3351
        // Predicated region
        $region89: #{tpu_custom_call.1} parent=55 // pred_check
          %p3353 = pneg %p289
        $region90: #{tpu_custom_call.1} parent=55 // pred_check_branch
          %3355 = sbr.rel (%p3353) target = $region92
        $region91: #{tpu_custom_call.1} parent=55 // pred_region
          %s3356 = smul.u32 8, %s36
          %s3358 = ssub.s32 1024, 1024
          %3359 = vsyncadd %s3349, %s3358
          %s3360 = smul.addr %s3356, 2
          %s3361 = smul.addr %s35, 32
          %s3362 = sadd.s32 %s3360, %s3361
          %s3363 = smul.addr %s3362, 64
          %s3364 = scalar_lea.hbm %s9, %s3363
          %s3365 = sshll.u32 %s3352, 4
          %s3366 = int_to_ptr.vmem [resolvable:$true] %s3365
          %3371 = dma.vmem_to_hbm [thread:$0]  %s3366, 1024, %s3364, %s3349, 64, 64, 4
        $region92: #{tpu_custom_call.1} parent=55 // pred_fallthru
          _
      $region56: #{tpu_custom_call.1} parent=5 // pred_fallthru
        _
      %p3372 = scmp.le.s32.totalorder 2, %s26
      // Predicated region
      $region93: #{tpu_custom_call.1} parent=5 // pred_check
        %p3373 = pneg %p3372
      $region94: #{tpu_custom_call.1} parent=5 // pred_check_branch
        %3375 = sbr.rel (%p3373) target = $region96
      $region95: #{tpu_custom_call.1} parent=5 // pred_region
        %s3376 = ssub.s32 %s26, 2
        // Predicated region
        $region97: #{tpu_custom_call.1} parent=95 // pred_check
          %p3377 = pneg %p295
        $region98: #{tpu_custom_call.1} parent=95 // pred_check_branch
          %3379 = sbr.rel (%p3377) target = $region100
        $region99: #{tpu_custom_call.1} parent=95 // pred_region
          %s3380 = sand.u32 %s280, 1
          %s3381 = scalar_lea.sflag [#allocation5], %s3380
          %s3382 = sand.u32 %s280, 1
          %s3383 = smul.addr %s3382, 64
          %s3384 = scalar_lea.vmem [#allocation14], %s3383
          %3385 = dma.done %s3381, 1024
        $region100: #{tpu_custom_call.1} parent=95 // pred_fallthru
          _
      $region96: #{tpu_custom_call.1} parent=5 // pred_fallthru
        _
    $region6: #{tpu_custom_call.1} parent=1 // loop_footer
      %s30 = sadd.s32 1, %s26
    $region7: #{tpu_custom_call.1} parent=1 // loop_footer_branch
      %25 = sbr.rel target = $region3
    $region8: #{tpu_custom_call.1} parent=1 // loop_exit
      _
    %3386 = vsyncpa [#allocation4], 1
    %s3387 = scalar_lea.sflag [#allocation4], 1
    %3388 = vsyncpa %s3387, 1
    %3389 = vsyncpa [#allocation7], 1
    %s3390 = scalar_lea.sflag [#allocation7], 1
    %3391 = vsyncpa %s3390, 1
    %3392 = vsyncpa [#allocation10], 1
    %3393 = vsyncpa [#allocation13], 1
    %3394 = vsyncpa [#allocation5], 1
    %s3395 = scalar_lea.sflag [#allocation5], 1
    %3396 = vsyncpa %s3395, 1

</llo_original>
